<compile_context>
chip_gen: v5e
topology: v5e:2x2
jax: 0.10.0
libtpu: 0.0.40
codegen_flags: <defaults>
</compile_context>

<pallas_src>
import functools

import jax
import jax.numpy as jnp
from jax.experimental import pallas as pl
from jax.experimental.pallas import tpu as pltpu


# ----------------------------------------------------------------------------
# Packed-parameter slab layout.
# Kernel-side weight layout: W [in, 4*hid] (pre-transposed), gate columns reordered to
# (i, f, o, g), g columns pre-scaled by 2, b_ih + b_hh folded to one [1, 4*hid] row,
# layer-1 W_ih / W_hh stacked row-wise for the fused per-step matmul.
# ----------------------------------------------------------------------------
def _round_up(n, m):
    return -(-n // m) * m


def _slab_layout(D, H, L):
    entries = [
        ("e_wih0", D, 4 * H), ("e_whh0", H, 4 * H), ("e_b0", 1, 4 * H),
        ("e_w1", 2 * H, 4 * H), ("e_b1", 1, 4 * H),
        ("fe_w", H, L), ("fe_b", 1, L),
        ("fd_w", L, H), ("fd_b", 1, H),
        ("d_wih0", H, 4 * D), ("d_whh0", D, 4 * D), ("d_b0", 1, 4 * D),
        ("d_w1", 2 * D, 4 * D), ("d_b1", 1, 4 * D),
    ]
    layout, off = {}, 0
    for name, rows, cols in entries:
        layout[name] = (off, rows, cols)
        off += _round_up(rows, 8)                 # sublane-group aligned row offsets
    width = _round_up(max(c for _, _, c in entries), 128)   # lane-aligned slab width
    return layout, off, width


# ----------------------------------------------------------------------------
# Fused autoencoder kernel.  x_ref: [B_pad, T*D] (batch rows padded), slab_ref: packed
# parameters, out_ref: [B, T*D] batch-first reconstruction.
# ----------------------------------------------------------------------------
def _lstm_ae_kernel(B, T, D, H, L, B_pad, layout, x_ref, slab_ref, out_ref):
    f32 = jnp.float32

    def wview(name):
        off, r, c = layout[name]
        return slab_ref[off:off + r, :c]          # static sub-view of the packed slab

    e_wih0, e_whh0, e_b0 = wview("e_wih0"), wview("e_whh0"), wview("e_b0")
    e_w1, e_b1 = wview("e_w1"), wview("e_b1")
    fe_w, fe_b = wview("fe_w"), wview("fe_b")
    fd_w, fd_b = wview("fd_w"), wview("fd_b")
    d_wih0, d_whh0, d_b0 = wview("d_wih0"), wview("d_whh0"), wview("d_b0")
    d_w1, d_b1 = wview("d_w1"), wview("d_b1")

    # hoist per-step bias broadcasts out of the unrolled loops
    e_b1_b = jnp.broadcast_to(e_b1, (B_pad, 4 * H))
    d_b1_b = jnp.broadcast_to(d_b1, (B_pad, 4 * D))

    def lstm_gates(gates, c, hid):
        # gate column order (i, f, o, g); g columns were pre-scaled by 2 at prep time so
        # one contiguous sigmoid covers all 4*hid columns and
        # g = 2*sigmoid(2x) - 1 == tanh(x) is a cheap VPU fixup on the last hid lanes.
        sig = jax.nn.sigmoid(gates)
        i = sig[:, :hid]
        f = sig[:, hid:2 * hid]
        o = sig[:, 2 * hid:3 * hid]
        g = 2.0 * sig[:, 3 * hid:] - 1.0
        c_new = f * c + i * g
        return o * jnp.tanh(c_new), c_new

    # ---------------- encoder: 2-layer LSTM over T steps ----------------
    # Hoisted layer-0 input projection: one [T*B_pad, D] @ [D, 4H] matmul for all steps.
    xr = x_ref[...]                                                    # [B_pad, T*D]
    xt = jnp.concatenate([xr[:, t * D:(t + 1) * D] for t in range(T)], axis=0)
    gx_all = jnp.dot(xt, e_wih0, preferred_element_type=f32) + e_b0    # [T*B_pad, 4H]

    zh = jnp.zeros((B_pad, H), f32)
    h0, c0, h1, c1 = zh, zh, zh, zh
    for t in range(T):                  # static unroll; per-step gx slice is tile-aligned
        g0 = gx_all[t * B_pad:(t + 1) * B_pad, :] + jnp.dot(
            h0, e_whh0, preferred_element_type=f32)
        h0, c0 = lstm_gates(g0, c0, H)
        # fused layer-1: single matmul against the stacked [W_ih1; W_hh1]
        g1 = jnp.dot(jnp.concatenate([h0, h1], axis=-1), e_w1,
                     preferred_element_type=f32) + e_b1_b
        h1, c1 = lstm_gates(g1, c1, H)

    # ---------------- fused fc_enc -> fc_dec -> decoder input projection ----------------
    z = jnp.dot(h1, fe_w, preferred_element_type=f32) + fe_b           # [B_pad, L]
    h_dec = jnp.dot(z, fd_w, preferred_element_type=f32) + fd_b        # [B_pad, H]
    # decoder layer-0 sees the SAME h_dec at every step: project it once, reuse T times.
    gx0_dec = jnp.dot(h_dec, d_wih0, preferred_element_type=f32) + d_b0  # [B_pad, 4D]

    # ---------------- decoder: 2-layer LSTM over T steps ----------------
    zd = jnp.zeros((B_pad, D), f32)
    h0, c0, h1, c1 = zd, zd, zd, zd
    outs = []
    for t in range(T):
        g0 = gx0_dec + jnp.dot(h0, d_whh0, preferred_element_type=f32)
        h0, c0 = lstm_gates(g0, c0, D)
        g1 = jnp.dot(jnp.concatenate([h0, h1], axis=-1), d_w1,
                     preferred_element_type=f32) + d_b1_b
        h1, c1 = lstm_gates(g1, c1, D)
        outs.append(h1)

    # one batch-first store; padded batch rows are dropped here and never reach HBM
    out_ref[...] = jnp.concatenate(outs, axis=-1)[:B, :]               # [B, T*D]


def lstm_autoencoder_forward(x, slab, hidden_dim, latent_dim):
    """x: [B, T, D] batch-first -> reconstruction [B, T, D]. Single fused pallas_call."""
    B, T, D = x.shape
    H, L = hidden_dim, latent_dim
    B_pad = _round_up(B, 8)                       # full f32 sublane group
    layout, _, _ = _slab_layout(D, H, L)

    x2d = x.reshape(B, T * D)                     # free bitcast, no transpose
    if B_pad > B:
        x2d = jnp.pad(x2d, ((0, B_pad - B), (0, 0)))   # cheap wrapper-side batch pad

    out2d = pl.pallas_call(
        functools.partial(_lstm_ae_kernel, B, T, D, H, L, B_pad, layout),
        out_shape=jax.ShapeDtypeStruct((B, T * D), jnp.float32),
        in_specs=[pl.BlockSpec(memory_space=pltpu.MemorySpace.VMEM),
                  pl.BlockSpec(memory_space=pltpu.MemorySpace.VMEM)],
        out_specs=pl.BlockSpec(memory_space=pltpu.MemorySpace.VMEM),
    )(x2d, slab)
    return out2d.reshape(B, T, D)                 # free bitcast back to [B, T, D]


# ----------------------------------------------------------------------------
# Parameter init in PyTorch layout (w_ih [4H,in], w_hh [4H,H], gate order i,f,g,o)
# and conversion to the single packed kernel slab.
# ----------------------------------------------------------------------------
def init_torch_params(key, input_dim, hidden_dim, latent_dim):
    def uni(k, shape, bound):
        return jax.random.uniform(k, shape, jnp.float32, -bound, bound)

    keys = iter(jax.random.split(key, 20))

    def lstm2(in_dim, hid):
        bnd = 1.0 / (hid ** 0.5)
        p = {}
        for layer, d_in in (("l0", in_dim), ("l1", hid)):
            p[f"w_ih_{layer}"] = uni(next(keys), (4 * hid, d_in), bnd)
            p[f"w_hh_{layer}"] = uni(next(keys), (4 * hid, hid), bnd)
            p[f"b_ih_{layer}"] = uni(next(keys), (4 * hid,), bnd)
            p[f"b_hh_{layer}"] = uni(next(keys), (4 * hid,), bnd)
        return p

    enc = lstm2(input_dim, hidden_dim)        # encoder: hidden_size = hidden_dim
    dec = lstm2(hidden_dim, input_dim)        # decoder: hidden_size = input_dim
    be = 1.0 / (hidden_dim ** 0.5)
    bl = 1.0 / (latent_dim ** 0.5)
    return {
        "enc": enc,
        "dec": dec,
        "fc_enc_w": uni(next(keys), (latent_dim, hidden_dim), be),   # torch Linear [out, in]
        "fc_enc_b": uni(next(keys), (latent_dim,), be),
        "fc_dec_w": uni(next(keys), (hidden_dim, latent_dim), bl),
        "fc_dec_b": uni(next(keys), (hidden_dim,), bl),
    }


def prep_kernel_params(tp, input_dim, hidden_dim, latent_dim):
    """PyTorch layout -> one packed, lane-padded kernel slab (single pallas_call operand)."""
    D, H, L = input_dim, hidden_dim, latent_dim

    def ifog(m):
        i, f, g, o = jnp.split(m, 4, axis=-1)
        return jnp.concatenate([i, f, o, g], axis=-1)

    def scale_g(m, hid):
        # pre-scale the g-gate columns by 2 so the kernel can use a single sigmoid:
        # tanh(x) = 2*sigmoid(2x) - 1 (exact identity).
        return jnp.concatenate([m[..., :3 * hid], 2.0 * m[..., 3 * hid:]], axis=-1)

    def lstm_layer(p, layer, hid):
        wih = scale_g(ifog(p[f"w_ih_{layer}"].T), hid)
        whh = scale_g(ifog(p[f"w_hh_{layer}"].T), hid)
        b = scale_g(ifog((p[f"b_ih_{layer}"] + p[f"b_hh_{layer}"])[None, :]), hid)
        return wih, whh, b

    e_wih0, e_whh0, e_b0 = lstm_layer(tp["enc"], "l0", H)
    e_wih1, e_whh1, e_b1 = lstm_layer(tp["enc"], "l1", H)
    d_wih0, d_whh0, d_b0 = lstm_layer(tp["dec"], "l0", D)
    d_wih1, d_whh1, d_b1 = lstm_layer(tp["dec"], "l1", D)

    mats = {
        "e_wih0": e_wih0, "e_whh0": e_whh0, "e_b0": e_b0,
        "e_w1": jnp.concatenate([e_wih1, e_whh1], axis=0), "e_b1": e_b1,
        "fe_w": tp["fc_enc_w"].T, "fe_b": tp["fc_enc_b"][None, :],
        "fd_w": tp["fc_dec_w"].T, "fd_b": tp["fc_dec_b"][None, :],
        "d_wih0": d_wih0, "d_whh0": d_whh0, "d_b0": d_b0,
        "d_w1": jnp.concatenate([d_wih1, d_whh1], axis=0), "d_b1": d_b1,
    }

    layout, rows, width = _slab_layout(D, H, L)
    slab = jnp.zeros((_round_up(rows, 8), width), jnp.float32)
    for name, (off, r, c) in layout.items():
        m = mats[name]
        assert m.shape == (r, c), (name, m.shape, (r, c))
        slab = slab.at[off:off + r, :c].set(m)
    return slab


# ----------------------------------------------------------------------------
# Pure-JAX reference (PyTorch nn.LSTM semantics, gate order i,f,g,o).
# ----------------------------------------------------------------------------
def _lstm2_ref(x_tm, p, hid):
    def cell(inp, h, c, w_ih, w_hh, b_ih, b_hh):
        gates = inp @ w_ih.T + h @ w_hh.T + b_ih + b_hh
        i, f, g, o = jnp.split(gates, 4, axis=-1)
        c_new = jax.nn.sigmoid(f) * c + jax.nn.sigmoid(i) * jnp.tanh(g)
        h_new = jax.nn.sigmoid(o) * jnp.tanh(c_new)
        return h_new, c_new

    B = x_tm.shape[1]
    z = jnp.zeros((B, hid), jnp.float32)

    def step(carry, x_t):
        h0, c0, h1, c1 = carry
        h0, c0 = cell(x_t, h0, c0, p["w_ih_l0"], p["w_hh_l0"], p["b_ih_l0"], p["b_hh_l0"])
        h1, c1 = cell(h0, h1, c1, p["w_ih_l1"], p["w_hh_l1"], p["b_ih_l1"], p["b_hh_l1"])
        return (h0, c0, h1, c1), h1

    _, out = jax.lax.scan(step, (z, z, z, z), x_tm)
    return out


def _forward_ref(x, tp, hidden_dim):
    B, T, D = x.shape
    x_tm = jnp.transpose(x, (1, 0, 2))
    enc_out = _lstm2_ref(x_tm, tp["enc"], hidden_dim)
    h_final = enc_out[-1]
    z = h_final @ tp["fc_enc_w"].T + tp["fc_enc_b"]
    h_dec = z @ tp["fc_dec_w"].T + tp["fc_dec_b"]
    h_rep = jnp.broadcast_to(h_dec[None], (T, B, hidden_dim))
    dec_out = _lstm2_ref(h_rep, tp["dec"], D)
    return jnp.transpose(dec_out, (1, 0, 2))


if __name__ == "__main__":
    B, T, D = 2, 8, 10        # batch, seq_length, input_dim (10 CAN payload features)
    H, L = 32, 16             # hidden_dim, latent_dim (scaled down from 128 / 32)

    key = jax.random.PRNGKey(0)
    kx, kparam = jax.random.split(key)
    x = jax.random.normal(kx, (B, T, D), jnp.float32)

    torch_params = init_torch_params(kparam, D, H, L)
    slab = prep_kernel_params(torch_params, D, H, L)

    fwd = jax.jit(lstm_autoencoder_forward, static_argnums=(2, 3))
    out = jax.block_until_ready(fwd(x, slab, H, L))

    ref = jax.block_until_ready(_forward_ref(x, torch_params, H))
    assert out.shape == (B, T, D)
    # tolerance slightly relaxed vs 1e-4: tanh is computed as 2*sigmoid(2x)-1 in-kernel
    assert jnp.allclose(out, ref, atol=2e-4, rtol=2e-4), "mismatch vs pure-JAX reference"

    print("KERNEL_OK")
</pallas_src>

<mosaic_0001>
module attributes {stable_mosaic.version = 11 : i64} {
  func.func @_lstm_ae_kernel(%arg0: memref<8x80xf32, #tpu.memory_space<vmem>>, %arg1: memref<280x128xf32, #tpu.memory_space<vmem>>, %arg2: memref<2x80xf32, #tpu.memory_space<vmem>>) attributes {dimension_semantics = [], scalar_prefetch = 0 : i64, scratch_operands = 0 : i64, tpu.core_type = #tpu.core_type<tc>} {
    %c0 = arith.constant 0 : index
    %c0_0 = arith.constant 0 : index
    %0 = vector.load %arg1[%c0, %c0_0] : memref<280x128xf32, #tpu.memory_space<vmem>>, vector<10x128xf32>
    %c16 = arith.constant 16 : index
    %c0_1 = arith.constant 0 : index
    %1 = vector.load %arg1[%c16, %c0_1] : memref<280x128xf32, #tpu.memory_space<vmem>>, vector<32x128xf32>
    %c48 = arith.constant 48 : index
    %c0_2 = arith.constant 0 : index
    %2 = vector.load %arg1[%c48, %c0_2] : memref<280x128xf32, #tpu.memory_space<vmem>>, vector<1x128xf32>
    %c56 = arith.constant 56 : index
    %c0_3 = arith.constant 0 : index
    %3 = vector.load %arg1[%c56, %c0_3] : memref<280x128xf32, #tpu.memory_space<vmem>>, vector<64x128xf32>
    %c120 = arith.constant 120 : index
    %c0_4 = arith.constant 0 : index
    %4 = vector.load %arg1[%c120, %c0_4] : memref<280x128xf32, #tpu.memory_space<vmem>>, vector<1x128xf32>
    %c128 = arith.constant 128 : index
    %c0_5 = arith.constant 0 : index
    %5 = vector.load %arg1[%c128, %c0_5] : memref<280x128xf32, #tpu.memory_space<vmem>>, vector<32x16xf32>
    %c160 = arith.constant 160 : index
    %c0_6 = arith.constant 0 : index
    %6 = vector.load %arg1[%c160, %c0_6] : memref<280x128xf32, #tpu.memory_space<vmem>>, vector<1x16xf32>
    %c168 = arith.constant 168 : index
    %c0_7 = arith.constant 0 : index
    %7 = vector.load %arg1[%c168, %c0_7] : memref<280x128xf32, #tpu.memory_space<vmem>>, vector<16x32xf32>
    %c184 = arith.constant 184 : index
    %c0_8 = arith.constant 0 : index
    %8 = vector.load %arg1[%c184, %c0_8] : memref<280x128xf32, #tpu.memory_space<vmem>>, vector<1x32xf32>
    %c192 = arith.constant 192 : index
    %c0_9 = arith.constant 0 : index
    %9 = vector.load %arg1[%c192, %c0_9] : memref<280x128xf32, #tpu.memory_space<vmem>>, vector<32x40xf32>
    %c224 = arith.constant 224 : index
    %c0_10 = arith.constant 0 : index
    %10 = vector.load %arg1[%c224, %c0_10] : memref<280x128xf32, #tpu.memory_space<vmem>>, vector<10x40xf32>
    %c240 = arith.constant 240 : index
    %c0_11 = arith.constant 0 : index
    %11 = vector.load %arg1[%c240, %c0_11] : memref<280x128xf32, #tpu.memory_space<vmem>>, vector<1x40xf32>
    %c248 = arith.constant 248 : index
    %c0_12 = arith.constant 0 : index
    %12 = vector.load %arg1[%c248, %c0_12] : memref<280x128xf32, #tpu.memory_space<vmem>>, vector<20x40xf32>
    %c272 = arith.constant 272 : index
    %c0_13 = arith.constant 0 : index
    %13 = vector.load %arg1[%c272, %c0_13] : memref<280x128xf32, #tpu.memory_space<vmem>>, vector<1x40xf32>
    %14 = vector.shape_cast %4 : vector<1x128xf32> to vector<1x128xf32>
    %15 = vector.broadcast %14 : vector<1x128xf32> to vector<8x128xf32>
    %16 = vector.shape_cast %13 : vector<1x40xf32> to vector<1x40xf32>
    %17 = vector.broadcast %16 : vector<1x40xf32> to vector<8x40xf32>
    %c0_14 = arith.constant 0 : index
    %c0_15 = arith.constant 0 : index
    %18 = vector.load %arg0[%c0_14, %c0_15] : memref<8x80xf32, #tpu.memory_space<vmem>>, vector<8x80xf32>
    %19 = vector.extract_strided_slice %18 {offsets = [0, 0], sizes = [8, 10], strides = [1, 1]} : vector<8x80xf32> to vector<8x10xf32>
    %20 = vector.extract_strided_slice %18 {offsets = [0, 10], sizes = [8, 10], strides = [1, 1]} : vector<8x80xf32> to vector<8x10xf32>
    %21 = vector.extract_strided_slice %18 {offsets = [0, 20], sizes = [8, 10], strides = [1, 1]} : vector<8x80xf32> to vector<8x10xf32>
    %22 = vector.extract_strided_slice %18 {offsets = [0, 30], sizes = [8, 10], strides = [1, 1]} : vector<8x80xf32> to vector<8x10xf32>
    %23 = vector.extract_strided_slice %18 {offsets = [0, 40], sizes = [8, 10], strides = [1, 1]} : vector<8x80xf32> to vector<8x10xf32>
    %24 = vector.extract_strided_slice %18 {offsets = [0, 50], sizes = [8, 10], strides = [1, 1]} : vector<8x80xf32> to vector<8x10xf32>
    %25 = vector.extract_strided_slice %18 {offsets = [0, 60], sizes = [8, 10], strides = [1, 1]} : vector<8x80xf32> to vector<8x10xf32>
    %26 = vector.extract_strided_slice %18 {offsets = [0, 70], sizes = [8, 10], strides = [1, 1]} : vector<8x80xf32> to vector<8x10xf32>
    %27 = tpu.concatenate %19, %20, %21, %22, %23, %24, %25, %26 in 0 : vector<8x10xf32>, vector<8x10xf32>, vector<8x10xf32>, vector<8x10xf32>, vector<8x10xf32>, vector<8x10xf32>, vector<8x10xf32>, vector<8x10xf32> -> vector<64x10xf32>
    %cst = arith.constant dense<0.000000e+00> : vector<64x128xf32>
    %28 = tpu.matmul %27, %0, %cst {dimension_numbers = #tpu.dot_dimension_numbers<[1], [0], [0], [1], [0, 0, 1, 1], [], []>} : vector<64x10xf32>, vector<10x128xf32>, vector<64x128xf32> -> vector<64x128xf32>
    %29 = vector.broadcast %2 : vector<1x128xf32> to vector<64x128xf32>
    %30 = arith.addf %28, %29 : vector<64x128xf32>
    %cst_16 = arith.constant 0.000000e+00 : f32
    %31 = vector.broadcast %cst_16 : f32 to vector<8x32xf32>
    %32 = vector.extract_strided_slice %30 {offsets = [0, 0], sizes = [8, 128], strides = [1, 1]} : vector<64x128xf32> to vector<8x128xf32>
    %cst_17 = arith.constant dense<0.000000e+00> : vector<8x128xf32>
    %33 = tpu.matmul %31, %1, %cst_17 {dimension_numbers = #tpu.dot_dimension_numbers<[1], [0], [0], [1], [0, 0, 1, 1], [], []>} : vector<8x32xf32>, vector<32x128xf32>, vector<8x128xf32> -> vector<8x128xf32>
    %34 = arith.addf %32, %33 : vector<8x128xf32>
    %35 = arith.negf %34 : vector<8x128xf32>
    %36 = math.exp %35 : vector<8x128xf32>
    %cst_18 = arith.constant 1.000000e+00 : f32
    %37 = vector.broadcast %cst_18 : f32 to vector<8x128xf32>
    %38 = arith.addf %37, %36 : vector<8x128xf32>
    %39 = arith.divf %37, %38 : vector<8x128xf32>
    %40 = vector.extract_strided_slice %39 {offsets = [0, 0], sizes = [8, 32], strides = [1, 1]} : vector<8x128xf32> to vector<8x32xf32>
    %41 = vector.extract_strided_slice %39 {offsets = [0, 32], sizes = [8, 32], strides = [1, 1]} : vector<8x128xf32> to vector<8x32xf32>
    %42 = vector.extract_strided_slice %39 {offsets = [0, 64], sizes = [8, 32], strides = [1, 1]} : vector<8x128xf32> to vector<8x32xf32>
    %43 = vector.extract_strided_slice %39 {offsets = [0, 96], sizes = [8, 32], strides = [1, 1]} : vector<8x128xf32> to vector<8x32xf32>
    %cst_19 = arith.constant 2.000000e+00 : f32
    %44 = vector.broadcast %cst_19 : f32 to vector<8x32xf32>
    %45 = arith.mulf %44, %43 : vector<8x32xf32>
    %cst_20 = arith.constant 1.000000e+00 : f32
    %46 = vector.broadcast %cst_20 : f32 to vector<8x32xf32>
    %47 = arith.subf %45, %46 : vector<8x32xf32>
    %48 = arith.mulf %41, %31 : vector<8x32xf32>
    %49 = arith.mulf %40, %47 : vector<8x32xf32>
    %50 = arith.addf %48, %49 : vector<8x32xf32>
    %51 = math.tanh %50 : vector<8x32xf32>
    %52 = arith.mulf %42, %51 : vector<8x32xf32>
    %53 = tpu.concatenate %52, %31 in 1 : vector<8x32xf32>, vector<8x32xf32> -> vector<8x64xf32>
    %cst_21 = arith.constant dense<0.000000e+00> : vector<8x128xf32>
    %54 = tpu.matmul %53, %3, %cst_21 {dimension_numbers = #tpu.dot_dimension_numbers<[1], [0], [0], [1], [0, 0, 1, 1], [], []>} : vector<8x64xf32>, vector<64x128xf32>, vector<8x128xf32> -> vector<8x128xf32>
    %55 = arith.addf %54, %15 : vector<8x128xf32>
    %56 = arith.negf %55 : vector<8x128xf32>
    %57 = math.exp %56 : vector<8x128xf32>
    %cst_22 = arith.constant 1.000000e+00 : f32
    %58 = vector.broadcast %cst_22 : f32 to vector<8x128xf32>
    %59 = arith.addf %58, %57 : vector<8x128xf32>
    %60 = arith.divf %58, %59 : vector<8x128xf32>
    %61 = vector.extract_strided_slice %60 {offsets = [0, 0], sizes = [8, 32], strides = [1, 1]} : vector<8x128xf32> to vector<8x32xf32>
    %62 = vector.extract_strided_slice %60 {offsets = [0, 32], sizes = [8, 32], strides = [1, 1]} : vector<8x128xf32> to vector<8x32xf32>
    %63 = vector.extract_strided_slice %60 {offsets = [0, 64], sizes = [8, 32], strides = [1, 1]} : vector<8x128xf32> to vector<8x32xf32>
    %64 = vector.extract_strided_slice %60 {offsets = [0, 96], sizes = [8, 32], strides = [1, 1]} : vector<8x128xf32> to vector<8x32xf32>
    %cst_23 = arith.constant 2.000000e+00 : f32
    %65 = vector.broadcast %cst_23 : f32 to vector<8x32xf32>
    %66 = arith.mulf %65, %64 : vector<8x32xf32>
    %cst_24 = arith.constant 1.000000e+00 : f32
    %67 = vector.broadcast %cst_24 : f32 to vector<8x32xf32>
    %68 = arith.subf %66, %67 : vector<8x32xf32>
    %69 = arith.mulf %62, %31 : vector<8x32xf32>
    %70 = arith.mulf %61, %68 : vector<8x32xf32>
    %71 = arith.addf %69, %70 : vector<8x32xf32>
    %72 = math.tanh %71 : vector<8x32xf32>
    %73 = arith.mulf %63, %72 : vector<8x32xf32>
    %74 = vector.extract_strided_slice %30 {offsets = [8, 0], sizes = [8, 128], strides = [1, 1]} : vector<64x128xf32> to vector<8x128xf32>
    %cst_25 = arith.constant dense<0.000000e+00> : vector<8x128xf32>
    %75 = tpu.matmul %52, %1, %cst_25 {dimension_numbers = #tpu.dot_dimension_numbers<[1], [0], [0], [1], [0, 0, 1, 1], [], []>} : vector<8x32xf32>, vector<32x128xf32>, vector<8x128xf32> -> vector<8x128xf32>
    %76 = arith.addf %74, %75 : vector<8x128xf32>
    %77 = arith.negf %76 : vector<8x128xf32>
    %78 = math.exp %77 : vector<8x128xf32>
    %cst_26 = arith.constant 1.000000e+00 : f32
    %79 = vector.broadcast %cst_26 : f32 to vector<8x128xf32>
    %80 = arith.addf %79, %78 : vector<8x128xf32>
    %81 = arith.divf %79, %80 : vector<8x128xf32>
    %82 = vector.extract_strided_slice %81 {offsets = [0, 0], sizes = [8, 32], strides = [1, 1]} : vector<8x128xf32> to vector<8x32xf32>
    %83 = vector.extract_strided_slice %81 {offsets = [0, 32], sizes = [8, 32], strides = [1, 1]} : vector<8x128xf32> to vector<8x32xf32>
    %84 = vector.extract_strided_slice %81 {offsets = [0, 64], sizes = [8, 32], strides = [1, 1]} : vector<8x128xf32> to vector<8x32xf32>
    %85 = vector.extract_strided_slice %81 {offsets = [0, 96], sizes = [8, 32], strides = [1, 1]} : vector<8x128xf32> to vector<8x32xf32>
    %cst_27 = arith.constant 2.000000e+00 : f32
    %86 = vector.broadcast %cst_27 : f32 to vector<8x32xf32>
    %87 = arith.mulf %86, %85 : vector<8x32xf32>
    %cst_28 = arith.constant 1.000000e+00 : f32
    %88 = vector.broadcast %cst_28 : f32 to vector<8x32xf32>
    %89 = arith.subf %87, %88 : vector<8x32xf32>
    %90 = arith.mulf %83, %50 : vector<8x32xf32>
    %91 = arith.mulf %82, %89 : vector<8x32xf32>
    %92 = arith.addf %90, %91 : vector<8x32xf32>
    %93 = math.tanh %92 : vector<8x32xf32>
    %94 = arith.mulf %84, %93 : vector<8x32xf32>
    %95 = tpu.concatenate %94, %73 in 1 : vector<8x32xf32>, vector<8x32xf32> -> vector<8x64xf32>
    %cst_29 = arith.constant dense<0.000000e+00> : vector<8x128xf32>
    %96 = tpu.matmul %95, %3, %cst_29 {dimension_numbers = #tpu.dot_dimension_numbers<[1], [0], [0], [1], [0, 0, 1, 1], [], []>} : vector<8x64xf32>, vector<64x128xf32>, vector<8x128xf32> -> vector<8x128xf32>
    %97 = arith.addf %96, %15 : vector<8x128xf32>
    %98 = arith.negf %97 : vector<8x128xf32>
    %99 = math.exp %98 : vector<8x128xf32>
    %cst_30 = arith.constant 1.000000e+00 : f32
    %100 = vector.broadcast %cst_30 : f32 to vector<8x128xf32>
    %101 = arith.addf %100, %99 : vector<8x128xf32>
    %102 = arith.divf %100, %101 : vector<8x128xf32>
    %103 = vector.extract_strided_slice %102 {offsets = [0, 0], sizes = [8, 32], strides = [1, 1]} : vector<8x128xf32> to vector<8x32xf32>
    %104 = vector.extract_strided_slice %102 {offsets = [0, 32], sizes = [8, 32], strides = [1, 1]} : vector<8x128xf32> to vector<8x32xf32>
    %105 = vector.extract_strided_slice %102 {offsets = [0, 64], sizes = [8, 32], strides = [1, 1]} : vector<8x128xf32> to vector<8x32xf32>
    %106 = vector.extract_strided_slice %102 {offsets = [0, 96], sizes = [8, 32], strides = [1, 1]} : vector<8x128xf32> to vector<8x32xf32>
    %cst_31 = arith.constant 2.000000e+00 : f32
    %107 = vector.broadcast %cst_31 : f32 to vector<8x32xf32>
    %108 = arith.mulf %107, %106 : vector<8x32xf32>
    %cst_32 = arith.constant 1.000000e+00 : f32
    %109 = vector.broadcast %cst_32 : f32 to vector<8x32xf32>
    %110 = arith.subf %108, %109 : vector<8x32xf32>
    %111 = arith.mulf %104, %71 : vector<8x32xf32>
    %112 = arith.mulf %103, %110 : vector<8x32xf32>
    %113 = arith.addf %111, %112 : vector<8x32xf32>
    %114 = math.tanh %113 : vector<8x32xf32>
    %115 = arith.mulf %105, %114 : vector<8x32xf32>
    %116 = vector.extract_strided_slice %30 {offsets = [16, 0], sizes = [8, 128], strides = [1, 1]} : vector<64x128xf32> to vector<8x128xf32>
    %cst_33 = arith.constant dense<0.000000e+00> : vector<8x128xf32>
    %117 = tpu.matmul %94, %1, %cst_33 {dimension_numbers = #tpu.dot_dimension_numbers<[1], [0], [0], [1], [0, 0, 1, 1], [], []>} : vector<8x32xf32>, vector<32x128xf32>, vector<8x128xf32> -> vector<8x128xf32>
    %118 = arith.addf %116, %117 : vector<8x128xf32>
    %119 = arith.negf %118 : vector<8x128xf32>
    %120 = math.exp %119 : vector<8x128xf32>
    %cst_34 = arith.constant 1.000000e+00 : f32
    %121 = vector.broadcast %cst_34 : f32 to vector<8x128xf32>
    %122 = arith.addf %121, %120 : vector<8x128xf32>
    %123 = arith.divf %121, %122 : vector<8x128xf32>
    %124 = vector.extract_strided_slice %123 {offsets = [0, 0], sizes = [8, 32], strides = [1, 1]} : vector<8x128xf32> to vector<8x32xf32>
    %125 = vector.extract_strided_slice %123 {offsets = [0, 32], sizes = [8, 32], strides = [1, 1]} : vector<8x128xf32> to vector<8x32xf32>
    %126 = vector.extract_strided_slice %123 {offsets = [0, 64], sizes = [8, 32], strides = [1, 1]} : vector<8x128xf32> to vector<8x32xf32>
    %127 = vector.extract_strided_slice %123 {offsets = [0, 96], sizes = [8, 32], strides = [1, 1]} : vector<8x128xf32> to vector<8x32xf32>
    %cst_35 = arith.constant 2.000000e+00 : f32
    %128 = vector.broadcast %cst_35 : f32 to vector<8x32xf32>
    %129 = arith.mulf %128, %127 : vector<8x32xf32>
    %cst_36 = arith.constant 1.000000e+00 : f32
    %130 = vector.broadcast %cst_36 : f32 to vector<8x32xf32>
    %131 = arith.subf %129, %130 : vector<8x32xf32>
    %132 = arith.mulf %125, %92 : vector<8x32xf32>
    %133 = arith.mulf %124, %131 : vector<8x32xf32>
    %134 = arith.addf %132, %133 : vector<8x32xf32>
    %135 = math.tanh %134 : vector<8x32xf32>
    %136 = arith.mulf %126, %135 : vector<8x32xf32>
    %137 = tpu.concatenate %136, %115 in 1 : vector<8x32xf32>, vector<8x32xf32> -> vector<8x64xf32>
    %cst_37 = arith.constant dense<0.000000e+00> : vector<8x128xf32>
    %138 = tpu.matmul %137, %3, %cst_37 {dimension_numbers = #tpu.dot_dimension_numbers<[1], [0], [0], [1], [0, 0, 1, 1], [], []>} : vector<8x64xf32>, vector<64x128xf32>, vector<8x128xf32> -> vector<8x128xf32>
    %139 = arith.addf %138, %15 : vector<8x128xf32>
    %140 = arith.negf %139 : vector<8x128xf32>
    %141 = math.exp %140 : vector<8x128xf32>
    %cst_38 = arith.constant 1.000000e+00 : f32
    %142 = vector.broadcast %cst_38 : f32 to vector<8x128xf32>
    %143 = arith.addf %142, %141 : vector<8x128xf32>
    %144 = arith.divf %142, %143 : vector<8x128xf32>
    %145 = vector.extract_strided_slice %144 {offsets = [0, 0], sizes = [8, 32], strides = [1, 1]} : vector<8x128xf32> to vector<8x32xf32>
    %146 = vector.extract_strided_slice %144 {offsets = [0, 32], sizes = [8, 32], strides = [1, 1]} : vector<8x128xf32> to vector<8x32xf32>
    %147 = vector.extract_strided_slice %144 {offsets = [0, 64], sizes = [8, 32], strides = [1, 1]} : vector<8x128xf32> to vector<8x32xf32>
    %148 = vector.extract_strided_slice %144 {offsets = [0, 96], sizes = [8, 32], strides = [1, 1]} : vector<8x128xf32> to vector<8x32xf32>
    %cst_39 = arith.constant 2.000000e+00 : f32
    %149 = vector.broadcast %cst_39 : f32 to vector<8x32xf32>
    %150 = arith.mulf %149, %148 : vector<8x32xf32>
    %cst_40 = arith.constant 1.000000e+00 : f32
    %151 = vector.broadcast %cst_40 : f32 to vector<8x32xf32>
    %152 = arith.subf %150, %151 : vector<8x32xf32>
    %153 = arith.mulf %146, %113 : vector<8x32xf32>
    %154 = arith.mulf %145, %152 : vector<8x32xf32>
    %155 = arith.addf %153, %154 : vector<8x32xf32>
    %156 = math.tanh %155 : vector<8x32xf32>
    %157 = arith.mulf %147, %156 : vector<8x32xf32>
    %158 = vector.extract_strided_slice %30 {offsets = [24, 0], sizes = [8, 128], strides = [1, 1]} : vector<64x128xf32> to vector<8x128xf32>
    %cst_41 = arith.constant dense<0.000000e+00> : vector<8x128xf32>
    %159 = tpu.matmul %136, %1, %cst_41 {dimension_numbers = #tpu.dot_dimension_numbers<[1], [0], [0], [1], [0, 0, 1, 1], [], []>} : vector<8x32xf32>, vector<32x128xf32>, vector<8x128xf32> -> vector<8x128xf32>
    %160 = arith.addf %158, %159 : vector<8x128xf32>
    %161 = arith.negf %160 : vector<8x128xf32>
    %162 = math.exp %161 : vector<8x128xf32>
    %cst_42 = arith.constant 1.000000e+00 : f32
    %163 = vector.broadcast %cst_42 : f32 to vector<8x128xf32>
    %164 = arith.addf %163, %162 : vector<8x128xf32>
    %165 = arith.divf %163, %164 : vector<8x128xf32>
    %166 = vector.extract_strided_slice %165 {offsets = [0, 0], sizes = [8, 32], strides = [1, 1]} : vector<8x128xf32> to vector<8x32xf32>
    %167 = vector.extract_strided_slice %165 {offsets = [0, 32], sizes = [8, 32], strides = [1, 1]} : vector<8x128xf32> to vector<8x32xf32>
    %168 = vector.extract_strided_slice %165 {offsets = [0, 64], sizes = [8, 32], strides = [1, 1]} : vector<8x128xf32> to vector<8x32xf32>
    %169 = vector.extract_strided_slice %165 {offsets = [0, 96], sizes = [8, 32], strides = [1, 1]} : vector<8x128xf32> to vector<8x32xf32>
    %cst_43 = arith.constant 2.000000e+00 : f32
    %170 = vector.broadcast %cst_43 : f32 to vector<8x32xf32>
    %171 = arith.mulf %170, %169 : vector<8x32xf32>
    %cst_44 = arith.constant 1.000000e+00 : f32
    %172 = vector.broadcast %cst_44 : f32 to vector<8x32xf32>
    %173 = arith.subf %171, %172 : vector<8x32xf32>
    %174 = arith.mulf %167, %134 : vector<8x32xf32>
    %175 = arith.mulf %166, %173 : vector<8x32xf32>
    %176 = arith.addf %174, %175 : vector<8x32xf32>
    %177 = math.tanh %176 : vector<8x32xf32>
    %178 = arith.mulf %168, %177 : vector<8x32xf32>
    %179 = tpu.concatenate %178, %157 in 1 : vector<8x32xf32>, vector<8x32xf32> -> vector<8x64xf32>
    %cst_45 = arith.constant dense<0.000000e+00> : vector<8x128xf32>
    %180 = tpu.matmul %179, %3, %cst_45 {dimension_numbers = #tpu.dot_dimension_numbers<[1], [0], [0], [1], [0, 0, 1, 1], [], []>} : vector<8x64xf32>, vector<64x128xf32>, vector<8x128xf32> -> vector<8x128xf32>
    %181 = arith.addf %180, %15 : vector<8x128xf32>
    %182 = arith.negf %181 : vector<8x128xf32>
    %183 = math.exp %182 : vector<8x128xf32>
    %cst_46 = arith.constant 1.000000e+00 : f32
    %184 = vector.broadcast %cst_46 : f32 to vector<8x128xf32>
    %185 = arith.addf %184, %183 : vector<8x128xf32>
    %186 = arith.divf %184, %185 : vector<8x128xf32>
    %187 = vector.extract_strided_slice %186 {offsets = [0, 0], sizes = [8, 32], strides = [1, 1]} : vector<8x128xf32> to vector<8x32xf32>
    %188 = vector.extract_strided_slice %186 {offsets = [0, 32], sizes = [8, 32], strides = [1, 1]} : vector<8x128xf32> to vector<8x32xf32>
    %189 = vector.extract_strided_slice %186 {offsets = [0, 64], sizes = [8, 32], strides = [1, 1]} : vector<8x128xf32> to vector<8x32xf32>
    %190 = vector.extract_strided_slice %186 {offsets = [0, 96], sizes = [8, 32], strides = [1, 1]} : vector<8x128xf32> to vector<8x32xf32>
    %cst_47 = arith.constant 2.000000e+00 : f32
    %191 = vector.broadcast %cst_47 : f32 to vector<8x32xf32>
    %192 = arith.mulf %191, %190 : vector<8x32xf32>
    %cst_48 = arith.constant 1.000000e+00 : f32
    %193 = vector.broadcast %cst_48 : f32 to vector<8x32xf32>
    %194 = arith.subf %192, %193 : vector<8x32xf32>
    %195 = arith.mulf %188, %155 : vector<8x32xf32>
    %196 = arith.mulf %187, %194 : vector<8x32xf32>
    %197 = arith.addf %195, %196 : vector<8x32xf32>
    %198 = math.tanh %197 : vector<8x32xf32>
    %199 = arith.mulf %189, %198 : vector<8x32xf32>
    %200 = vector.extract_strided_slice %30 {offsets = [32, 0], sizes = [8, 128], strides = [1, 1]} : vector<64x128xf32> to vector<8x128xf32>
    %cst_49 = arith.constant dense<0.000000e+00> : vector<8x128xf32>
    %201 = tpu.matmul %178, %1, %cst_49 {dimension_numbers = #tpu.dot_dimension_numbers<[1], [0], [0], [1], [0, 0, 1, 1], [], []>} : vector<8x32xf32>, vector<32x128xf32>, vector<8x128xf32> -> vector<8x128xf32>
    %202 = arith.addf %200, %201 : vector<8x128xf32>
    %203 = arith.negf %202 : vector<8x128xf32>
    %204 = math.exp %203 : vector<8x128xf32>
    %cst_50 = arith.constant 1.000000e+00 : f32
    %205 = vector.broadcast %cst_50 : f32 to vector<8x128xf32>
    %206 = arith.addf %205, %204 : vector<8x128xf32>
    %207 = arith.divf %205, %206 : vector<8x128xf32>
    %208 = vector.extract_strided_slice %207 {offsets = [0, 0], sizes = [8, 32], strides = [1, 1]} : vector<8x128xf32> to vector<8x32xf32>
    %209 = vector.extract_strided_slice %207 {offsets = [0, 32], sizes = [8, 32], strides = [1, 1]} : vector<8x128xf32> to vector<8x32xf32>
    %210 = vector.extract_strided_slice %207 {offsets = [0, 64], sizes = [8, 32], strides = [1, 1]} : vector<8x128xf32> to vector<8x32xf32>
    %211 = vector.extract_strided_slice %207 {offsets = [0, 96], sizes = [8, 32], strides = [1, 1]} : vector<8x128xf32> to vector<8x32xf32>
    %cst_51 = arith.constant 2.000000e+00 : f32
    %212 = vector.broadcast %cst_51 : f32 to vector<8x32xf32>
    %213 = arith.mulf %212, %211 : vector<8x32xf32>
    %cst_52 = arith.constant 1.000000e+00 : f32
    %214 = vector.broadcast %cst_52 : f32 to vector<8x32xf32>
    %215 = arith.subf %213, %214 : vector<8x32xf32>
    %216 = arith.mulf %209, %176 : vector<8x32xf32>
    %217 = arith.mulf %208, %215 : vector<8x32xf32>
    %218 = arith.addf %216, %217 : vector<8x32xf32>
    %219 = math.tanh %218 : vector<8x32xf32>
    %220 = arith.mulf %210, %219 : vector<8x32xf32>
    %221 = tpu.concatenate %220, %199 in 1 : vector<8x32xf32>, vector<8x32xf32> -> vector<8x64xf32>
    %cst_53 = arith.constant dense<0.000000e+00> : vector<8x128xf32>
    %222 = tpu.matmul %221, %3, %cst_53 {dimension_numbers = #tpu.dot_dimension_numbers<[1], [0], [0], [1], [0, 0, 1, 1], [], []>} : vector<8x64xf32>, vector<64x128xf32>, vector<8x128xf32> -> vector<8x128xf32>
    %223 = arith.addf %222, %15 : vector<8x128xf32>
    %224 = arith.negf %223 : vector<8x128xf32>
    %225 = math.exp %224 : vector<8x128xf32>
    %cst_54 = arith.constant 1.000000e+00 : f32
    %226 = vector.broadcast %cst_54 : f32 to vector<8x128xf32>
    %227 = arith.addf %226, %225 : vector<8x128xf32>
    %228 = arith.divf %226, %227 : vector<8x128xf32>
    %229 = vector.extract_strided_slice %228 {offsets = [0, 0], sizes = [8, 32], strides = [1, 1]} : vector<8x128xf32> to vector<8x32xf32>
    %230 = vector.extract_strided_slice %228 {offsets = [0, 32], sizes = [8, 32], strides = [1, 1]} : vector<8x128xf32> to vector<8x32xf32>
    %231 = vector.extract_strided_slice %228 {offsets = [0, 64], sizes = [8, 32], strides = [1, 1]} : vector<8x128xf32> to vector<8x32xf32>
    %232 = vector.extract_strided_slice %228 {offsets = [0, 96], sizes = [8, 32], strides = [1, 1]} : vector<8x128xf32> to vector<8x32xf32>
    %cst_55 = arith.constant 2.000000e+00 : f32
    %233 = vector.broadcast %cst_55 : f32 to vector<8x32xf32>
    %234 = arith.mulf %233, %232 : vector<8x32xf32>
    %cst_56 = arith.constant 1.000000e+00 : f32
    %235 = vector.broadcast %cst_56 : f32 to vector<8x32xf32>
    %236 = arith.subf %234, %235 : vector<8x32xf32>
    %237 = arith.mulf %230, %197 : vector<8x32xf32>
    %238 = arith.mulf %229, %236 : vector<8x32xf32>
    %239 = arith.addf %237, %238 : vector<8x32xf32>
    %240 = math.tanh %239 : vector<8x32xf32>
    %241 = arith.mulf %231, %240 : vector<8x32xf32>
    %242 = vector.extract_strided_slice %30 {offsets = [40, 0], sizes = [8, 128], strides = [1, 1]} : vector<64x128xf32> to vector<8x128xf32>
    %cst_57 = arith.constant dense<0.000000e+00> : vector<8x128xf32>
    %243 = tpu.matmul %220, %1, %cst_57 {dimension_numbers = #tpu.dot_dimension_numbers<[1], [0], [0], [1], [0, 0, 1, 1], [], []>} : vector<8x32xf32>, vector<32x128xf32>, vector<8x128xf32> -> vector<8x128xf32>
    %244 = arith.addf %242, %243 : vector<8x128xf32>
    %245 = arith.negf %244 : vector<8x128xf32>
    %246 = math.exp %245 : vector<8x128xf32>
    %cst_58 = arith.constant 1.000000e+00 : f32
    %247 = vector.broadcast %cst_58 : f32 to vector<8x128xf32>
    %248 = arith.addf %247, %246 : vector<8x128xf32>
    %249 = arith.divf %247, %248 : vector<8x128xf32>
    %250 = vector.extract_strided_slice %249 {offsets = [0, 0], sizes = [8, 32], strides = [1, 1]} : vector<8x128xf32> to vector<8x32xf32>
    %251 = vector.extract_strided_slice %249 {offsets = [0, 32], sizes = [8, 32], strides = [1, 1]} : vector<8x128xf32> to vector<8x32xf32>
    %252 = vector.extract_strided_slice %249 {offsets = [0, 64], sizes = [8, 32], strides = [1, 1]} : vector<8x128xf32> to vector<8x32xf32>
    %253 = vector.extract_strided_slice %249 {offsets = [0, 96], sizes = [8, 32], strides = [1, 1]} : vector<8x128xf32> to vector<8x32xf32>
    %cst_59 = arith.constant 2.000000e+00 : f32
    %254 = vector.broadcast %cst_59 : f32 to vector<8x32xf32>
    %255 = arith.mulf %254, %253 : vector<8x32xf32>
    %cst_60 = arith.constant 1.000000e+00 : f32
    %256 = vector.broadcast %cst_60 : f32 to vector<8x32xf32>
    %257 = arith.subf %255, %256 : vector<8x32xf32>
    %258 = arith.mulf %251, %218 : vector<8x32xf32>
    %259 = arith.mulf %250, %257 : vector<8x32xf32>
    %260 = arith.addf %258, %259 : vector<8x32xf32>
    %261 = math.tanh %260 : vector<8x32xf32>
    %262 = arith.mulf %252, %261 : vector<8x32xf32>
    %263 = tpu.concatenate %262, %241 in 1 : vector<8x32xf32>, vector<8x32xf32> -> vector<8x64xf32>
    %cst_61 = arith.constant dense<0.000000e+00> : vector<8x128xf32>
    %264 = tpu.matmul %263, %3, %cst_61 {dimension_numbers = #tpu.dot_dimension_numbers<[1], [0], [0], [1], [0, 0, 1, 1], [], []>} : vector<8x64xf32>, vector<64x128xf32>, vector<8x128xf32> -> vector<8x128xf32>
    %265 = arith.addf %264, %15 : vector<8x128xf32>
    %266 = arith.negf %265 : vector<8x128xf32>
    %267 = math.exp %266 : vector<8x128xf32>
    %cst_62 = arith.constant 1.000000e+00 : f32
    %268 = vector.broadcast %cst_62 : f32 to vector<8x128xf32>
    %269 = arith.addf %268, %267 : vector<8x128xf32>
    %270 = arith.divf %268, %269 : vector<8x128xf32>
    %271 = vector.extract_strided_slice %270 {offsets = [0, 0], sizes = [8, 32], strides = [1, 1]} : vector<8x128xf32> to vector<8x32xf32>
    %272 = vector.extract_strided_slice %270 {offsets = [0, 32], sizes = [8, 32], strides = [1, 1]} : vector<8x128xf32> to vector<8x32xf32>
    %273 = vector.extract_strided_slice %270 {offsets = [0, 64], sizes = [8, 32], strides = [1, 1]} : vector<8x128xf32> to vector<8x32xf32>
    %274 = vector.extract_strided_slice %270 {offsets = [0, 96], sizes = [8, 32], strides = [1, 1]} : vector<8x128xf32> to vector<8x32xf32>
    %cst_63 = arith.constant 2.000000e+00 : f32
    %275 = vector.broadcast %cst_63 : f32 to vector<8x32xf32>
    %276 = arith.mulf %275, %274 : vector<8x32xf32>
    %cst_64 = arith.constant 1.000000e+00 : f32
    %277 = vector.broadcast %cst_64 : f32 to vector<8x32xf32>
    %278 = arith.subf %276, %277 : vector<8x32xf32>
    %279 = arith.mulf %272, %239 : vector<8x32xf32>
    %280 = arith.mulf %271, %278 : vector<8x32xf32>
    %281 = arith.addf %279, %280 : vector<8x32xf32>
    %282 = math.tanh %281 : vector<8x32xf32>
    %283 = arith.mulf %273, %282 : vector<8x32xf32>
    %284 = vector.extract_strided_slice %30 {offsets = [48, 0], sizes = [8, 128], strides = [1, 1]} : vector<64x128xf32> to vector<8x128xf32>
    %cst_65 = arith.constant dense<0.000000e+00> : vector<8x128xf32>
    %285 = tpu.matmul %262, %1, %cst_65 {dimension_numbers = #tpu.dot_dimension_numbers<[1], [0], [0], [1], [0, 0, 1, 1], [], []>} : vector<8x32xf32>, vector<32x128xf32>, vector<8x128xf32> -> vector<8x128xf32>
    %286 = arith.addf %284, %285 : vector<8x128xf32>
    %287 = arith.negf %286 : vector<8x128xf32>
    %288 = math.exp %287 : vector<8x128xf32>
    %cst_66 = arith.constant 1.000000e+00 : f32
    %289 = vector.broadcast %cst_66 : f32 to vector<8x128xf32>
    %290 = arith.addf %289, %288 : vector<8x128xf32>
    %291 = arith.divf %289, %290 : vector<8x128xf32>
    %292 = vector.extract_strided_slice %291 {offsets = [0, 0], sizes = [8, 32], strides = [1, 1]} : vector<8x128xf32> to vector<8x32xf32>
    %293 = vector.extract_strided_slice %291 {offsets = [0, 32], sizes = [8, 32], strides = [1, 1]} : vector<8x128xf32> to vector<8x32xf32>
    %294 = vector.extract_strided_slice %291 {offsets = [0, 64], sizes = [8, 32], strides = [1, 1]} : vector<8x128xf32> to vector<8x32xf32>
    %295 = vector.extract_strided_slice %291 {offsets = [0, 96], sizes = [8, 32], strides = [1, 1]} : vector<8x128xf32> to vector<8x32xf32>
    %cst_67 = arith.constant 2.000000e+00 : f32
    %296 = vector.broadcast %cst_67 : f32 to vector<8x32xf32>
    %297 = arith.mulf %296, %295 : vector<8x32xf32>
    %cst_68 = arith.constant 1.000000e+00 : f32
    %298 = vector.broadcast %cst_68 : f32 to vector<8x32xf32>
    %299 = arith.subf %297, %298 : vector<8x32xf32>
    %300 = arith.mulf %293, %260 : vector<8x32xf32>
    %301 = arith.mulf %292, %299 : vector<8x32xf32>
    %302 = arith.addf %300, %301 : vector<8x32xf32>
    %303 = math.tanh %302 : vector<8x32xf32>
    %304 = arith.mulf %294, %303 : vector<8x32xf32>
    %305 = tpu.concatenate %304, %283 in 1 : vector<8x32xf32>, vector<8x32xf32> -> vector<8x64xf32>
    %cst_69 = arith.constant dense<0.000000e+00> : vector<8x128xf32>
    %306 = tpu.matmul %305, %3, %cst_69 {dimension_numbers = #tpu.dot_dimension_numbers<[1], [0], [0], [1], [0, 0, 1, 1], [], []>} : vector<8x64xf32>, vector<64x128xf32>, vector<8x128xf32> -> vector<8x128xf32>
    %307 = arith.addf %306, %15 : vector<8x128xf32>
    %308 = arith.negf %307 : vector<8x128xf32>
    %309 = math.exp %308 : vector<8x128xf32>
    %cst_70 = arith.constant 1.000000e+00 : f32
    %310 = vector.broadcast %cst_70 : f32 to vector<8x128xf32>
    %311 = arith.addf %310, %309 : vector<8x128xf32>
    %312 = arith.divf %310, %311 : vector<8x128xf32>
    %313 = vector.extract_strided_slice %312 {offsets = [0, 0], sizes = [8, 32], strides = [1, 1]} : vector<8x128xf32> to vector<8x32xf32>
    %314 = vector.extract_strided_slice %312 {offsets = [0, 32], sizes = [8, 32], strides = [1, 1]} : vector<8x128xf32> to vector<8x32xf32>
    %315 = vector.extract_strided_slice %312 {offsets = [0, 64], sizes = [8, 32], strides = [1, 1]} : vector<8x128xf32> to vector<8x32xf32>
    %316 = vector.extract_strided_slice %312 {offsets = [0, 96], sizes = [8, 32], strides = [1, 1]} : vector<8x128xf32> to vector<8x32xf32>
    %cst_71 = arith.constant 2.000000e+00 : f32
    %317 = vector.broadcast %cst_71 : f32 to vector<8x32xf32>
    %318 = arith.mulf %317, %316 : vector<8x32xf32>
    %cst_72 = arith.constant 1.000000e+00 : f32
    %319 = vector.broadcast %cst_72 : f32 to vector<8x32xf32>
    %320 = arith.subf %318, %319 : vector<8x32xf32>
    %321 = arith.mulf %314, %281 : vector<8x32xf32>
    %322 = arith.mulf %313, %320 : vector<8x32xf32>
    %323 = arith.addf %321, %322 : vector<8x32xf32>
    %324 = math.tanh %323 : vector<8x32xf32>
    %325 = arith.mulf %315, %324 : vector<8x32xf32>
    %326 = vector.extract_strided_slice %30 {offsets = [56, 0], sizes = [8, 128], strides = [1, 1]} : vector<64x128xf32> to vector<8x128xf32>
    %cst_73 = arith.constant dense<0.000000e+00> : vector<8x128xf32>
    %327 = tpu.matmul %304, %1, %cst_73 {dimension_numbers = #tpu.dot_dimension_numbers<[1], [0], [0], [1], [0, 0, 1, 1], [], []>} : vector<8x32xf32>, vector<32x128xf32>, vector<8x128xf32> -> vector<8x128xf32>
    %328 = arith.addf %326, %327 : vector<8x128xf32>
    %329 = arith.negf %328 : vector<8x128xf32>
    %330 = math.exp %329 : vector<8x128xf32>
    %cst_74 = arith.constant 1.000000e+00 : f32
    %331 = vector.broadcast %cst_74 : f32 to vector<8x128xf32>
    %332 = arith.addf %331, %330 : vector<8x128xf32>
    %333 = arith.divf %331, %332 : vector<8x128xf32>
    %334 = vector.extract_strided_slice %333 {offsets = [0, 0], sizes = [8, 32], strides = [1, 1]} : vector<8x128xf32> to vector<8x32xf32>
    %335 = vector.extract_strided_slice %333 {offsets = [0, 32], sizes = [8, 32], strides = [1, 1]} : vector<8x128xf32> to vector<8x32xf32>
    %336 = vector.extract_strided_slice %333 {offsets = [0, 64], sizes = [8, 32], strides = [1, 1]} : vector<8x128xf32> to vector<8x32xf32>
    %337 = vector.extract_strided_slice %333 {offsets = [0, 96], sizes = [8, 32], strides = [1, 1]} : vector<8x128xf32> to vector<8x32xf32>
    %cst_75 = arith.constant 2.000000e+00 : f32
    %338 = vector.broadcast %cst_75 : f32 to vector<8x32xf32>
    %339 = arith.mulf %338, %337 : vector<8x32xf32>
    %cst_76 = arith.constant 1.000000e+00 : f32
    %340 = vector.broadcast %cst_76 : f32 to vector<8x32xf32>
    %341 = arith.subf %339, %340 : vector<8x32xf32>
    %342 = arith.mulf %335, %302 : vector<8x32xf32>
    %343 = arith.mulf %334, %341 : vector<8x32xf32>
    %344 = arith.addf %342, %343 : vector<8x32xf32>
    %345 = math.tanh %344 : vector<8x32xf32>
    %346 = arith.mulf %336, %345 : vector<8x32xf32>
    %347 = tpu.concatenate %346, %325 in 1 : vector<8x32xf32>, vector<8x32xf32> -> vector<8x64xf32>
    %cst_77 = arith.constant dense<0.000000e+00> : vector<8x128xf32>
    %348 = tpu.matmul %347, %3, %cst_77 {dimension_numbers = #tpu.dot_dimension_numbers<[1], [0], [0], [1], [0, 0, 1, 1], [], []>} : vector<8x64xf32>, vector<64x128xf32>, vector<8x128xf32> -> vector<8x128xf32>
    %349 = arith.addf %348, %15 : vector<8x128xf32>
    %350 = arith.negf %349 : vector<8x128xf32>
    %351 = math.exp %350 : vector<8x128xf32>
    %cst_78 = arith.constant 1.000000e+00 : f32
    %352 = vector.broadcast %cst_78 : f32 to vector<8x128xf32>
    %353 = arith.addf %352, %351 : vector<8x128xf32>
    %354 = arith.divf %352, %353 : vector<8x128xf32>
    %355 = vector.extract_strided_slice %354 {offsets = [0, 0], sizes = [8, 32], strides = [1, 1]} : vector<8x128xf32> to vector<8x32xf32>
    %356 = vector.extract_strided_slice %354 {offsets = [0, 32], sizes = [8, 32], strides = [1, 1]} : vector<8x128xf32> to vector<8x32xf32>
    %357 = vector.extract_strided_slice %354 {offsets = [0, 64], sizes = [8, 32], strides = [1, 1]} : vector<8x128xf32> to vector<8x32xf32>
    %358 = vector.extract_strided_slice %354 {offsets = [0, 96], sizes = [8, 32], strides = [1, 1]} : vector<8x128xf32> to vector<8x32xf32>
    %cst_79 = arith.constant 2.000000e+00 : f32
    %359 = vector.broadcast %cst_79 : f32 to vector<8x32xf32>
    %360 = arith.mulf %359, %358 : vector<8x32xf32>
    %cst_80 = arith.constant 1.000000e+00 : f32
    %361 = vector.broadcast %cst_80 : f32 to vector<8x32xf32>
    %362 = arith.subf %360, %361 : vector<8x32xf32>
    %363 = arith.mulf %356, %323 : vector<8x32xf32>
    %364 = arith.mulf %355, %362 : vector<8x32xf32>
    %365 = arith.addf %363, %364 : vector<8x32xf32>
    %366 = math.tanh %365 : vector<8x32xf32>
    %367 = arith.mulf %357, %366 : vector<8x32xf32>
    %cst_81 = arith.constant dense<0.000000e+00> : vector<8x16xf32>
    %368 = tpu.matmul %367, %5, %cst_81 {dimension_numbers = #tpu.dot_dimension_numbers<[1], [0], [0], [1], [0, 0, 1, 1], [], []>} : vector<8x32xf32>, vector<32x16xf32>, vector<8x16xf32> -> vector<8x16xf32>
    %369 = vector.broadcast %6 : vector<1x16xf32> to vector<8x16xf32>
    %370 = arith.addf %368, %369 : vector<8x16xf32>
    %cst_82 = arith.constant dense<0.000000e+00> : vector<8x32xf32>
    %371 = tpu.matmul %370, %7, %cst_82 {dimension_numbers = #tpu.dot_dimension_numbers<[1], [0], [0], [1], [0, 0, 1, 1], [], []>} : vector<8x16xf32>, vector<16x32xf32>, vector<8x32xf32> -> vector<8x32xf32>
    %372 = vector.broadcast %8 : vector<1x32xf32> to vector<8x32xf32>
    %373 = arith.addf %371, %372 : vector<8x32xf32>
    %cst_83 = arith.constant dense<0.000000e+00> : vector<8x40xf32>
    %374 = tpu.matmul %373, %9, %cst_83 {dimension_numbers = #tpu.dot_dimension_numbers<[1], [0], [0], [1], [0, 0, 1, 1], [], []>} : vector<8x32xf32>, vector<32x40xf32>, vector<8x40xf32> -> vector<8x40xf32>
    %375 = vector.broadcast %11 : vector<1x40xf32> to vector<8x40xf32>
    %376 = arith.addf %374, %375 : vector<8x40xf32>
    %cst_84 = arith.constant 0.000000e+00 : f32
    %377 = vector.broadcast %cst_84 : f32 to vector<8x10xf32>
    %cst_85 = arith.constant dense<0.000000e+00> : vector<8x40xf32>
    %378 = tpu.matmul %377, %10, %cst_85 {dimension_numbers = #tpu.dot_dimension_numbers<[1], [0], [0], [1], [0, 0, 1, 1], [], []>} : vector<8x10xf32>, vector<10x40xf32>, vector<8x40xf32> -> vector<8x40xf32>
    %379 = arith.addf %376, %378 : vector<8x40xf32>
    %380 = arith.negf %379 : vector<8x40xf32>
    %381 = math.exp %380 : vector<8x40xf32>
    %cst_86 = arith.constant 1.000000e+00 : f32
    %382 = vector.broadcast %cst_86 : f32 to vector<8x40xf32>
    %383 = arith.addf %382, %381 : vector<8x40xf32>
    %384 = arith.divf %382, %383 : vector<8x40xf32>
    %385 = vector.extract_strided_slice %384 {offsets = [0, 0], sizes = [8, 10], strides = [1, 1]} : vector<8x40xf32> to vector<8x10xf32>
    %386 = vector.extract_strided_slice %384 {offsets = [0, 10], sizes = [8, 10], strides = [1, 1]} : vector<8x40xf32> to vector<8x10xf32>
    %387 = vector.extract_strided_slice %384 {offsets = [0, 20], sizes = [8, 10], strides = [1, 1]} : vector<8x40xf32> to vector<8x10xf32>
    %388 = vector.extract_strided_slice %384 {offsets = [0, 30], sizes = [8, 10], strides = [1, 1]} : vector<8x40xf32> to vector<8x10xf32>
    %cst_87 = arith.constant 2.000000e+00 : f32
    %389 = vector.broadcast %cst_87 : f32 to vector<8x10xf32>
    %390 = arith.mulf %389, %388 : vector<8x10xf32>
    %cst_88 = arith.constant 1.000000e+00 : f32
    %391 = vector.broadcast %cst_88 : f32 to vector<8x10xf32>
    %392 = arith.subf %390, %391 : vector<8x10xf32>
    %393 = arith.mulf %386, %377 : vector<8x10xf32>
    %394 = arith.mulf %385, %392 : vector<8x10xf32>
    %395 = arith.addf %393, %394 : vector<8x10xf32>
    %396 = math.tanh %395 : vector<8x10xf32>
    %397 = arith.mulf %387, %396 : vector<8x10xf32>
    %398 = tpu.concatenate %397, %377 in 1 : vector<8x10xf32>, vector<8x10xf32> -> vector<8x20xf32>
    %cst_89 = arith.constant dense<0.000000e+00> : vector<8x40xf32>
    %399 = tpu.matmul %398, %12, %cst_89 {dimension_numbers = #tpu.dot_dimension_numbers<[1], [0], [0], [1], [0, 0, 1, 1], [], []>} : vector<8x20xf32>, vector<20x40xf32>, vector<8x40xf32> -> vector<8x40xf32>
    %400 = arith.addf %399, %17 : vector<8x40xf32>
    %401 = arith.negf %400 : vector<8x40xf32>
    %402 = math.exp %401 : vector<8x40xf32>
    %cst_90 = arith.constant 1.000000e+00 : f32
    %403 = vector.broadcast %cst_90 : f32 to vector<8x40xf32>
    %404 = arith.addf %403, %402 : vector<8x40xf32>
    %405 = arith.divf %403, %404 : vector<8x40xf32>
    %406 = vector.extract_strided_slice %405 {offsets = [0, 0], sizes = [8, 10], strides = [1, 1]} : vector<8x40xf32> to vector<8x10xf32>
    %407 = vector.extract_strided_slice %405 {offsets = [0, 10], sizes = [8, 10], strides = [1, 1]} : vector<8x40xf32> to vector<8x10xf32>
    %408 = vector.extract_strided_slice %405 {offsets = [0, 20], sizes = [8, 10], strides = [1, 1]} : vector<8x40xf32> to vector<8x10xf32>
    %409 = vector.extract_strided_slice %405 {offsets = [0, 30], sizes = [8, 10], strides = [1, 1]} : vector<8x40xf32> to vector<8x10xf32>
    %cst_91 = arith.constant 2.000000e+00 : f32
    %410 = vector.broadcast %cst_91 : f32 to vector<8x10xf32>
    %411 = arith.mulf %410, %409 : vector<8x10xf32>
    %cst_92 = arith.constant 1.000000e+00 : f32
    %412 = vector.broadcast %cst_92 : f32 to vector<8x10xf32>
    %413 = arith.subf %411, %412 : vector<8x10xf32>
    %414 = arith.mulf %407, %377 : vector<8x10xf32>
    %415 = arith.mulf %406, %413 : vector<8x10xf32>
    %416 = arith.addf %414, %415 : vector<8x10xf32>
    %417 = math.tanh %416 : vector<8x10xf32>
    %418 = arith.mulf %408, %417 : vector<8x10xf32>
    %cst_93 = arith.constant dense<0.000000e+00> : vector<8x40xf32>
    %419 = tpu.matmul %397, %10, %cst_93 {dimension_numbers = #tpu.dot_dimension_numbers<[1], [0], [0], [1], [0, 0, 1, 1], [], []>} : vector<8x10xf32>, vector<10x40xf32>, vector<8x40xf32> -> vector<8x40xf32>
    %420 = arith.addf %376, %419 : vector<8x40xf32>
    %421 = arith.negf %420 : vector<8x40xf32>
    %422 = math.exp %421 : vector<8x40xf32>
    %cst_94 = arith.constant 1.000000e+00 : f32
    %423 = vector.broadcast %cst_94 : f32 to vector<8x40xf32>
    %424 = arith.addf %423, %422 : vector<8x40xf32>
    %425 = arith.divf %423, %424 : vector<8x40xf32>
    %426 = vector.extract_strided_slice %425 {offsets = [0, 0], sizes = [8, 10], strides = [1, 1]} : vector<8x40xf32> to vector<8x10xf32>
    %427 = vector.extract_strided_slice %425 {offsets = [0, 10], sizes = [8, 10], strides = [1, 1]} : vector<8x40xf32> to vector<8x10xf32>
    %428 = vector.extract_strided_slice %425 {offsets = [0, 20], sizes = [8, 10], strides = [1, 1]} : vector<8x40xf32> to vector<8x10xf32>
    %429 = vector.extract_strided_slice %425 {offsets = [0, 30], sizes = [8, 10], strides = [1, 1]} : vector<8x40xf32> to vector<8x10xf32>
    %cst_95 = arith.constant 2.000000e+00 : f32
    %430 = vector.broadcast %cst_95 : f32 to vector<8x10xf32>
    %431 = arith.mulf %430, %429 : vector<8x10xf32>
    %cst_96 = arith.constant 1.000000e+00 : f32
    %432 = vector.broadcast %cst_96 : f32 to vector<8x10xf32>
    %433 = arith.subf %431, %432 : vector<8x10xf32>
    %434 = arith.mulf %427, %395 : vector<8x10xf32>
    %435 = arith.mulf %426, %433 : vector<8x10xf32>
    %436 = arith.addf %434, %435 : vector<8x10xf32>
    %437 = math.tanh %436 : vector<8x10xf32>
    %438 = arith.mulf %428, %437 : vector<8x10xf32>
    %439 = tpu.concatenate %438, %418 in 1 : vector<8x10xf32>, vector<8x10xf32> -> vector<8x20xf32>
    %cst_97 = arith.constant dense<0.000000e+00> : vector<8x40xf32>
    %440 = tpu.matmul %439, %12, %cst_97 {dimension_numbers = #tpu.dot_dimension_numbers<[1], [0], [0], [1], [0, 0, 1, 1], [], []>} : vector<8x20xf32>, vector<20x40xf32>, vector<8x40xf32> -> vector<8x40xf32>
    %441 = arith.addf %440, %17 : vector<8x40xf32>
    %442 = arith.negf %441 : vector<8x40xf32>
    %443 = math.exp %442 : vector<8x40xf32>
    %cst_98 = arith.constant 1.000000e+00 : f32
    %444 = vector.broadcast %cst_98 : f32 to vector<8x40xf32>
    %445 = arith.addf %444, %443 : vector<8x40xf32>
    %446 = arith.divf %444, %445 : vector<8x40xf32>
    %447 = vector.extract_strided_slice %446 {offsets = [0, 0], sizes = [8, 10], strides = [1, 1]} : vector<8x40xf32> to vector<8x10xf32>
    %448 = vector.extract_strided_slice %446 {offsets = [0, 10], sizes = [8, 10], strides = [1, 1]} : vector<8x40xf32> to vector<8x10xf32>
    %449 = vector.extract_strided_slice %446 {offsets = [0, 20], sizes = [8, 10], strides = [1, 1]} : vector<8x40xf32> to vector<8x10xf32>
    %450 = vector.extract_strided_slice %446 {offsets = [0, 30], sizes = [8, 10], strides = [1, 1]} : vector<8x40xf32> to vector<8x10xf32>
    %cst_99 = arith.constant 2.000000e+00 : f32
    %451 = vector.broadcast %cst_99 : f32 to vector<8x10xf32>
    %452 = arith.mulf %451, %450 : vector<8x10xf32>
    %cst_100 = arith.constant 1.000000e+00 : f32
    %453 = vector.broadcast %cst_100 : f32 to vector<8x10xf32>
    %454 = arith.subf %452, %453 : vector<8x10xf32>
    %455 = arith.mulf %448, %416 : vector<8x10xf32>
    %456 = arith.mulf %447, %454 : vector<8x10xf32>
    %457 = arith.addf %455, %456 : vector<8x10xf32>
    %458 = math.tanh %457 : vector<8x10xf32>
    %459 = arith.mulf %449, %458 : vector<8x10xf32>
    %cst_101 = arith.constant dense<0.000000e+00> : vector<8x40xf32>
    %460 = tpu.matmul %438, %10, %cst_101 {dimension_numbers = #tpu.dot_dimension_numbers<[1], [0], [0], [1], [0, 0, 1, 1], [], []>} : vector<8x10xf32>, vector<10x40xf32>, vector<8x40xf32> -> vector<8x40xf32>
    %461 = arith.addf %376, %460 : vector<8x40xf32>
    %462 = arith.negf %461 : vector<8x40xf32>
    %463 = math.exp %462 : vector<8x40xf32>
    %cst_102 = arith.constant 1.000000e+00 : f32
    %464 = vector.broadcast %cst_102 : f32 to vector<8x40xf32>
    %465 = arith.addf %464, %463 : vector<8x40xf32>
    %466 = arith.divf %464, %465 : vector<8x40xf32>
    %467 = vector.extract_strided_slice %466 {offsets = [0, 0], sizes = [8, 10], strides = [1, 1]} : vector<8x40xf32> to vector<8x10xf32>
    %468 = vector.extract_strided_slice %466 {offsets = [0, 10], sizes = [8, 10], strides = [1, 1]} : vector<8x40xf32> to vector<8x10xf32>
    %469 = vector.extract_strided_slice %466 {offsets = [0, 20], sizes = [8, 10], strides = [1, 1]} : vector<8x40xf32> to vector<8x10xf32>
    %470 = vector.extract_strided_slice %466 {offsets = [0, 30], sizes = [8, 10], strides = [1, 1]} : vector<8x40xf32> to vector<8x10xf32>
    %cst_103 = arith.constant 2.000000e+00 : f32
    %471 = vector.broadcast %cst_103 : f32 to vector<8x10xf32>
    %472 = arith.mulf %471, %470 : vector<8x10xf32>
    %cst_104 = arith.constant 1.000000e+00 : f32
    %473 = vector.broadcast %cst_104 : f32 to vector<8x10xf32>
    %474 = arith.subf %472, %473 : vector<8x10xf32>
    %475 = arith.mulf %468, %436 : vector<8x10xf32>
    %476 = arith.mulf %467, %474 : vector<8x10xf32>
    %477 = arith.addf %475, %476 : vector<8x10xf32>
    %478 = math.tanh %477 : vector<8x10xf32>
    %479 = arith.mulf %469, %478 : vector<8x10xf32>
    %480 = tpu.concatenate %479, %459 in 1 : vector<8x10xf32>, vector<8x10xf32> -> vector<8x20xf32>
    %cst_105 = arith.constant dense<0.000000e+00> : vector<8x40xf32>
    %481 = tpu.matmul %480, %12, %cst_105 {dimension_numbers = #tpu.dot_dimension_numbers<[1], [0], [0], [1], [0, 0, 1, 1], [], []>} : vector<8x20xf32>, vector<20x40xf32>, vector<8x40xf32> -> vector<8x40xf32>
    %482 = arith.addf %481, %17 : vector<8x40xf32>
    %483 = arith.negf %482 : vector<8x40xf32>
    %484 = math.exp %483 : vector<8x40xf32>
    %cst_106 = arith.constant 1.000000e+00 : f32
    %485 = vector.broadcast %cst_106 : f32 to vector<8x40xf32>
    %486 = arith.addf %485, %484 : vector<8x40xf32>
    %487 = arith.divf %485, %486 : vector<8x40xf32>
    %488 = vector.extract_strided_slice %487 {offsets = [0, 0], sizes = [8, 10], strides = [1, 1]} : vector<8x40xf32> to vector<8x10xf32>
    %489 = vector.extract_strided_slice %487 {offsets = [0, 10], sizes = [8, 10], strides = [1, 1]} : vector<8x40xf32> to vector<8x10xf32>
    %490 = vector.extract_strided_slice %487 {offsets = [0, 20], sizes = [8, 10], strides = [1, 1]} : vector<8x40xf32> to vector<8x10xf32>
    %491 = vector.extract_strided_slice %487 {offsets = [0, 30], sizes = [8, 10], strides = [1, 1]} : vector<8x40xf32> to vector<8x10xf32>
    %cst_107 = arith.constant 2.000000e+00 : f32
    %492 = vector.broadcast %cst_107 : f32 to vector<8x10xf32>
    %493 = arith.mulf %492, %491 : vector<8x10xf32>
    %cst_108 = arith.constant 1.000000e+00 : f32
    %494 = vector.broadcast %cst_108 : f32 to vector<8x10xf32>
    %495 = arith.subf %493, %494 : vector<8x10xf32>
    %496 = arith.mulf %489, %457 : vector<8x10xf32>
    %497 = arith.mulf %488, %495 : vector<8x10xf32>
    %498 = arith.addf %496, %497 : vector<8x10xf32>
    %499 = math.tanh %498 : vector<8x10xf32>
    %500 = arith.mulf %490, %499 : vector<8x10xf32>
    %cst_109 = arith.constant dense<0.000000e+00> : vector<8x40xf32>
    %501 = tpu.matmul %479, %10, %cst_109 {dimension_numbers = #tpu.dot_dimension_numbers<[1], [0], [0], [1], [0, 0, 1, 1], [], []>} : vector<8x10xf32>, vector<10x40xf32>, vector<8x40xf32> -> vector<8x40xf32>
    %502 = arith.addf %376, %501 : vector<8x40xf32>
    %503 = arith.negf %502 : vector<8x40xf32>
    %504 = math.exp %503 : vector<8x40xf32>
    %cst_110 = arith.constant 1.000000e+00 : f32
    %505 = vector.broadcast %cst_110 : f32 to vector<8x40xf32>
    %506 = arith.addf %505, %504 : vector<8x40xf32>
    %507 = arith.divf %505, %506 : vector<8x40xf32>
    %508 = vector.extract_strided_slice %507 {offsets = [0, 0], sizes = [8, 10], strides = [1, 1]} : vector<8x40xf32> to vector<8x10xf32>
    %509 = vector.extract_strided_slice %507 {offsets = [0, 10], sizes = [8, 10], strides = [1, 1]} : vector<8x40xf32> to vector<8x10xf32>
    %510 = vector.extract_strided_slice %507 {offsets = [0, 20], sizes = [8, 10], strides = [1, 1]} : vector<8x40xf32> to vector<8x10xf32>
    %511 = vector.extract_strided_slice %507 {offsets = [0, 30], sizes = [8, 10], strides = [1, 1]} : vector<8x40xf32> to vector<8x10xf32>
    %cst_111 = arith.constant 2.000000e+00 : f32
    %512 = vector.broadcast %cst_111 : f32 to vector<8x10xf32>
    %513 = arith.mulf %512, %511 : vector<8x10xf32>
    %cst_112 = arith.constant 1.000000e+00 : f32
    %514 = vector.broadcast %cst_112 : f32 to vector<8x10xf32>
    %515 = arith.subf %513, %514 : vector<8x10xf32>
    %516 = arith.mulf %509, %477 : vector<8x10xf32>
    %517 = arith.mulf %508, %515 : vector<8x10xf32>
    %518 = arith.addf %516, %517 : vector<8x10xf32>
    %519 = math.tanh %518 : vector<8x10xf32>
    %520 = arith.mulf %510, %519 : vector<8x10xf32>
    %521 = tpu.concatenate %520, %500 in 1 : vector<8x10xf32>, vector<8x10xf32> -> vector<8x20xf32>
    %cst_113 = arith.constant dense<0.000000e+00> : vector<8x40xf32>
    %522 = tpu.matmul %521, %12, %cst_113 {dimension_numbers = #tpu.dot_dimension_numbers<[1], [0], [0], [1], [0, 0, 1, 1], [], []>} : vector<8x20xf32>, vector<20x40xf32>, vector<8x40xf32> -> vector<8x40xf32>
    %523 = arith.addf %522, %17 : vector<8x40xf32>
    %524 = arith.negf %523 : vector<8x40xf32>
    %525 = math.exp %524 : vector<8x40xf32>
    %cst_114 = arith.constant 1.000000e+00 : f32
    %526 = vector.broadcast %cst_114 : f32 to vector<8x40xf32>
    %527 = arith.addf %526, %525 : vector<8x40xf32>
    %528 = arith.divf %526, %527 : vector<8x40xf32>
    %529 = vector.extract_strided_slice %528 {offsets = [0, 0], sizes = [8, 10], strides = [1, 1]} : vector<8x40xf32> to vector<8x10xf32>
    %530 = vector.extract_strided_slice %528 {offsets = [0, 10], sizes = [8, 10], strides = [1, 1]} : vector<8x40xf32> to vector<8x10xf32>
    %531 = vector.extract_strided_slice %528 {offsets = [0, 20], sizes = [8, 10], strides = [1, 1]} : vector<8x40xf32> to vector<8x10xf32>
    %532 = vector.extract_strided_slice %528 {offsets = [0, 30], sizes = [8, 10], strides = [1, 1]} : vector<8x40xf32> to vector<8x10xf32>
    %cst_115 = arith.constant 2.000000e+00 : f32
    %533 = vector.broadcast %cst_115 : f32 to vector<8x10xf32>
    %534 = arith.mulf %533, %532 : vector<8x10xf32>
    %cst_116 = arith.constant 1.000000e+00 : f32
    %535 = vector.broadcast %cst_116 : f32 to vector<8x10xf32>
    %536 = arith.subf %534, %535 : vector<8x10xf32>
    %537 = arith.mulf %530, %498 : vector<8x10xf32>
    %538 = arith.mulf %529, %536 : vector<8x10xf32>
    %539 = arith.addf %537, %538 : vector<8x10xf32>
    %540 = math.tanh %539 : vector<8x10xf32>
    %541 = arith.mulf %531, %540 : vector<8x10xf32>
    %cst_117 = arith.constant dense<0.000000e+00> : vector<8x40xf32>
    %542 = tpu.matmul %520, %10, %cst_117 {dimension_numbers = #tpu.dot_dimension_numbers<[1], [0], [0], [1], [0, 0, 1, 1], [], []>} : vector<8x10xf32>, vector<10x40xf32>, vector<8x40xf32> -> vector<8x40xf32>
    %543 = arith.addf %376, %542 : vector<8x40xf32>
    %544 = arith.negf %543 : vector<8x40xf32>
    %545 = math.exp %544 : vector<8x40xf32>
    %cst_118 = arith.constant 1.000000e+00 : f32
    %546 = vector.broadcast %cst_118 : f32 to vector<8x40xf32>
    %547 = arith.addf %546, %545 : vector<8x40xf32>
    %548 = arith.divf %546, %547 : vector<8x40xf32>
    %549 = vector.extract_strided_slice %548 {offsets = [0, 0], sizes = [8, 10], strides = [1, 1]} : vector<8x40xf32> to vector<8x10xf32>
    %550 = vector.extract_strided_slice %548 {offsets = [0, 10], sizes = [8, 10], strides = [1, 1]} : vector<8x40xf32> to vector<8x10xf32>
    %551 = vector.extract_strided_slice %548 {offsets = [0, 20], sizes = [8, 10], strides = [1, 1]} : vector<8x40xf32> to vector<8x10xf32>
    %552 = vector.extract_strided_slice %548 {offsets = [0, 30], sizes = [8, 10], strides = [1, 1]} : vector<8x40xf32> to vector<8x10xf32>
    %cst_119 = arith.constant 2.000000e+00 : f32
    %553 = vector.broadcast %cst_119 : f32 to vector<8x10xf32>
    %554 = arith.mulf %553, %552 : vector<8x10xf32>
    %cst_120 = arith.constant 1.000000e+00 : f32
    %555 = vector.broadcast %cst_120 : f32 to vector<8x10xf32>
    %556 = arith.subf %554, %555 : vector<8x10xf32>
    %557 = arith.mulf %550, %518 : vector<8x10xf32>
    %558 = arith.mulf %549, %556 : vector<8x10xf32>
    %559 = arith.addf %557, %558 : vector<8x10xf32>
    %560 = math.tanh %559 : vector<8x10xf32>
    %561 = arith.mulf %551, %560 : vector<8x10xf32>
    %562 = tpu.concatenate %561, %541 in 1 : vector<8x10xf32>, vector<8x10xf32> -> vector<8x20xf32>
    %cst_121 = arith.constant dense<0.000000e+00> : vector<8x40xf32>
    %563 = tpu.matmul %562, %12, %cst_121 {dimension_numbers = #tpu.dot_dimension_numbers<[1], [0], [0], [1], [0, 0, 1, 1], [], []>} : vector<8x20xf32>, vector<20x40xf32>, vector<8x40xf32> -> vector<8x40xf32>
    %564 = arith.addf %563, %17 : vector<8x40xf32>
    %565 = arith.negf %564 : vector<8x40xf32>
    %566 = math.exp %565 : vector<8x40xf32>
    %cst_122 = arith.constant 1.000000e+00 : f32
    %567 = vector.broadcast %cst_122 : f32 to vector<8x40xf32>
    %568 = arith.addf %567, %566 : vector<8x40xf32>
    %569 = arith.divf %567, %568 : vector<8x40xf32>
    %570 = vector.extract_strided_slice %569 {offsets = [0, 0], sizes = [8, 10], strides = [1, 1]} : vector<8x40xf32> to vector<8x10xf32>
    %571 = vector.extract_strided_slice %569 {offsets = [0, 10], sizes = [8, 10], strides = [1, 1]} : vector<8x40xf32> to vector<8x10xf32>
    %572 = vector.extract_strided_slice %569 {offsets = [0, 20], sizes = [8, 10], strides = [1, 1]} : vector<8x40xf32> to vector<8x10xf32>
    %573 = vector.extract_strided_slice %569 {offsets = [0, 30], sizes = [8, 10], strides = [1, 1]} : vector<8x40xf32> to vector<8x10xf32>
    %cst_123 = arith.constant 2.000000e+00 : f32
    %574 = vector.broadcast %cst_123 : f32 to vector<8x10xf32>
    %575 = arith.mulf %574, %573 : vector<8x10xf32>
    %cst_124 = arith.constant 1.000000e+00 : f32
    %576 = vector.broadcast %cst_124 : f32 to vector<8x10xf32>
    %577 = arith.subf %575, %576 : vector<8x10xf32>
    %578 = arith.mulf %571, %539 : vector<8x10xf32>
    %579 = arith.mulf %570, %577 : vector<8x10xf32>
    %580 = arith.addf %578, %579 : vector<8x10xf32>
    %581 = math.tanh %580 : vector<8x10xf32>
    %582 = arith.mulf %572, %581 : vector<8x10xf32>
    %cst_125 = arith.constant dense<0.000000e+00> : vector<8x40xf32>
    %583 = tpu.matmul %561, %10, %cst_125 {dimension_numbers = #tpu.dot_dimension_numbers<[1], [0], [0], [1], [0, 0, 1, 1], [], []>} : vector<8x10xf32>, vector<10x40xf32>, vector<8x40xf32> -> vector<8x40xf32>
    %584 = arith.addf %376, %583 : vector<8x40xf32>
    %585 = arith.negf %584 : vector<8x40xf32>
    %586 = math.exp %585 : vector<8x40xf32>
    %cst_126 = arith.constant 1.000000e+00 : f32
    %587 = vector.broadcast %cst_126 : f32 to vector<8x40xf32>
    %588 = arith.addf %587, %586 : vector<8x40xf32>
    %589 = arith.divf %587, %588 : vector<8x40xf32>
    %590 = vector.extract_strided_slice %589 {offsets = [0, 0], sizes = [8, 10], strides = [1, 1]} : vector<8x40xf32> to vector<8x10xf32>
    %591 = vector.extract_strided_slice %589 {offsets = [0, 10], sizes = [8, 10], strides = [1, 1]} : vector<8x40xf32> to vector<8x10xf32>
    %592 = vector.extract_strided_slice %589 {offsets = [0, 20], sizes = [8, 10], strides = [1, 1]} : vector<8x40xf32> to vector<8x10xf32>
    %593 = vector.extract_strided_slice %589 {offsets = [0, 30], sizes = [8, 10], strides = [1, 1]} : vector<8x40xf32> to vector<8x10xf32>
    %cst_127 = arith.constant 2.000000e+00 : f32
    %594 = vector.broadcast %cst_127 : f32 to vector<8x10xf32>
    %595 = arith.mulf %594, %593 : vector<8x10xf32>
    %cst_128 = arith.constant 1.000000e+00 : f32
    %596 = vector.broadcast %cst_128 : f32 to vector<8x10xf32>
    %597 = arith.subf %595, %596 : vector<8x10xf32>
    %598 = arith.mulf %591, %559 : vector<8x10xf32>
    %599 = arith.mulf %590, %597 : vector<8x10xf32>
    %600 = arith.addf %598, %599 : vector<8x10xf32>
    %601 = math.tanh %600 : vector<8x10xf32>
    %602 = arith.mulf %592, %601 : vector<8x10xf32>
    %603 = tpu.concatenate %602, %582 in 1 : vector<8x10xf32>, vector<8x10xf32> -> vector<8x20xf32>
    %cst_129 = arith.constant dense<0.000000e+00> : vector<8x40xf32>
    %604 = tpu.matmul %603, %12, %cst_129 {dimension_numbers = #tpu.dot_dimension_numbers<[1], [0], [0], [1], [0, 0, 1, 1], [], []>} : vector<8x20xf32>, vector<20x40xf32>, vector<8x40xf32> -> vector<8x40xf32>
    %605 = arith.addf %604, %17 : vector<8x40xf32>
    %606 = arith.negf %605 : vector<8x40xf32>
    %607 = math.exp %606 : vector<8x40xf32>
    %cst_130 = arith.constant 1.000000e+00 : f32
    %608 = vector.broadcast %cst_130 : f32 to vector<8x40xf32>
    %609 = arith.addf %608, %607 : vector<8x40xf32>
    %610 = arith.divf %608, %609 : vector<8x40xf32>
    %611 = vector.extract_strided_slice %610 {offsets = [0, 0], sizes = [8, 10], strides = [1, 1]} : vector<8x40xf32> to vector<8x10xf32>
    %612 = vector.extract_strided_slice %610 {offsets = [0, 10], sizes = [8, 10], strides = [1, 1]} : vector<8x40xf32> to vector<8x10xf32>
    %613 = vector.extract_strided_slice %610 {offsets = [0, 20], sizes = [8, 10], strides = [1, 1]} : vector<8x40xf32> to vector<8x10xf32>
    %614 = vector.extract_strided_slice %610 {offsets = [0, 30], sizes = [8, 10], strides = [1, 1]} : vector<8x40xf32> to vector<8x10xf32>
    %cst_131 = arith.constant 2.000000e+00 : f32
    %615 = vector.broadcast %cst_131 : f32 to vector<8x10xf32>
    %616 = arith.mulf %615, %614 : vector<8x10xf32>
    %cst_132 = arith.constant 1.000000e+00 : f32
    %617 = vector.broadcast %cst_132 : f32 to vector<8x10xf32>
    %618 = arith.subf %616, %617 : vector<8x10xf32>
    %619 = arith.mulf %612, %580 : vector<8x10xf32>
    %620 = arith.mulf %611, %618 : vector<8x10xf32>
    %621 = arith.addf %619, %620 : vector<8x10xf32>
    %622 = math.tanh %621 : vector<8x10xf32>
    %623 = arith.mulf %613, %622 : vector<8x10xf32>
    %cst_133 = arith.constant dense<0.000000e+00> : vector<8x40xf32>
    %624 = tpu.matmul %602, %10, %cst_133 {dimension_numbers = #tpu.dot_dimension_numbers<[1], [0], [0], [1], [0, 0, 1, 1], [], []>} : vector<8x10xf32>, vector<10x40xf32>, vector<8x40xf32> -> vector<8x40xf32>
    %625 = arith.addf %376, %624 : vector<8x40xf32>
    %626 = arith.negf %625 : vector<8x40xf32>
    %627 = math.exp %626 : vector<8x40xf32>
    %cst_134 = arith.constant 1.000000e+00 : f32
    %628 = vector.broadcast %cst_134 : f32 to vector<8x40xf32>
    %629 = arith.addf %628, %627 : vector<8x40xf32>
    %630 = arith.divf %628, %629 : vector<8x40xf32>
    %631 = vector.extract_strided_slice %630 {offsets = [0, 0], sizes = [8, 10], strides = [1, 1]} : vector<8x40xf32> to vector<8x10xf32>
    %632 = vector.extract_strided_slice %630 {offsets = [0, 10], sizes = [8, 10], strides = [1, 1]} : vector<8x40xf32> to vector<8x10xf32>
    %633 = vector.extract_strided_slice %630 {offsets = [0, 20], sizes = [8, 10], strides = [1, 1]} : vector<8x40xf32> to vector<8x10xf32>
    %634 = vector.extract_strided_slice %630 {offsets = [0, 30], sizes = [8, 10], strides = [1, 1]} : vector<8x40xf32> to vector<8x10xf32>
    %cst_135 = arith.constant 2.000000e+00 : f32
    %635 = vector.broadcast %cst_135 : f32 to vector<8x10xf32>
    %636 = arith.mulf %635, %634 : vector<8x10xf32>
    %cst_136 = arith.constant 1.000000e+00 : f32
    %637 = vector.broadcast %cst_136 : f32 to vector<8x10xf32>
    %638 = arith.subf %636, %637 : vector<8x10xf32>
    %639 = arith.mulf %632, %600 : vector<8x10xf32>
    %640 = arith.mulf %631, %638 : vector<8x10xf32>
    %641 = arith.addf %639, %640 : vector<8x10xf32>
    %642 = math.tanh %641 : vector<8x10xf32>
    %643 = arith.mulf %633, %642 : vector<8x10xf32>
    %644 = tpu.concatenate %643, %623 in 1 : vector<8x10xf32>, vector<8x10xf32> -> vector<8x20xf32>
    %cst_137 = arith.constant dense<0.000000e+00> : vector<8x40xf32>
    %645 = tpu.matmul %644, %12, %cst_137 {dimension_numbers = #tpu.dot_dimension_numbers<[1], [0], [0], [1], [0, 0, 1, 1], [], []>} : vector<8x20xf32>, vector<20x40xf32>, vector<8x40xf32> -> vector<8x40xf32>
    %646 = arith.addf %645, %17 : vector<8x40xf32>
    %647 = arith.negf %646 : vector<8x40xf32>
    %648 = math.exp %647 : vector<8x40xf32>
    %cst_138 = arith.constant 1.000000e+00 : f32
    %649 = vector.broadcast %cst_138 : f32 to vector<8x40xf32>
    %650 = arith.addf %649, %648 : vector<8x40xf32>
    %651 = arith.divf %649, %650 : vector<8x40xf32>
    %652 = vector.extract_strided_slice %651 {offsets = [0, 0], sizes = [8, 10], strides = [1, 1]} : vector<8x40xf32> to vector<8x10xf32>
    %653 = vector.extract_strided_slice %651 {offsets = [0, 10], sizes = [8, 10], strides = [1, 1]} : vector<8x40xf32> to vector<8x10xf32>
    %654 = vector.extract_strided_slice %651 {offsets = [0, 20], sizes = [8, 10], strides = [1, 1]} : vector<8x40xf32> to vector<8x10xf32>
    %655 = vector.extract_strided_slice %651 {offsets = [0, 30], sizes = [8, 10], strides = [1, 1]} : vector<8x40xf32> to vector<8x10xf32>
    %cst_139 = arith.constant 2.000000e+00 : f32
    %656 = vector.broadcast %cst_139 : f32 to vector<8x10xf32>
    %657 = arith.mulf %656, %655 : vector<8x10xf32>
    %cst_140 = arith.constant 1.000000e+00 : f32
    %658 = vector.broadcast %cst_140 : f32 to vector<8x10xf32>
    %659 = arith.subf %657, %658 : vector<8x10xf32>
    %660 = arith.mulf %653, %621 : vector<8x10xf32>
    %661 = arith.mulf %652, %659 : vector<8x10xf32>
    %662 = arith.addf %660, %661 : vector<8x10xf32>
    %663 = math.tanh %662 : vector<8x10xf32>
    %664 = arith.mulf %654, %663 : vector<8x10xf32>
    %cst_141 = arith.constant dense<0.000000e+00> : vector<8x40xf32>
    %665 = tpu.matmul %643, %10, %cst_141 {dimension_numbers = #tpu.dot_dimension_numbers<[1], [0], [0], [1], [0, 0, 1, 1], [], []>} : vector<8x10xf32>, vector<10x40xf32>, vector<8x40xf32> -> vector<8x40xf32>
    %666 = arith.addf %376, %665 : vector<8x40xf32>
    %667 = arith.negf %666 : vector<8x40xf32>
    %668 = math.exp %667 : vector<8x40xf32>
    %cst_142 = arith.constant 1.000000e+00 : f32
    %669 = vector.broadcast %cst_142 : f32 to vector<8x40xf32>
    %670 = arith.addf %669, %668 : vector<8x40xf32>
    %671 = arith.divf %669, %670 : vector<8x40xf32>
    %672 = vector.extract_strided_slice %671 {offsets = [0, 0], sizes = [8, 10], strides = [1, 1]} : vector<8x40xf32> to vector<8x10xf32>
    %673 = vector.extract_strided_slice %671 {offsets = [0, 10], sizes = [8, 10], strides = [1, 1]} : vector<8x40xf32> to vector<8x10xf32>
    %674 = vector.extract_strided_slice %671 {offsets = [0, 20], sizes = [8, 10], strides = [1, 1]} : vector<8x40xf32> to vector<8x10xf32>
    %675 = vector.extract_strided_slice %671 {offsets = [0, 30], sizes = [8, 10], strides = [1, 1]} : vector<8x40xf32> to vector<8x10xf32>
    %cst_143 = arith.constant 2.000000e+00 : f32
    %676 = vector.broadcast %cst_143 : f32 to vector<8x10xf32>
    %677 = arith.mulf %676, %675 : vector<8x10xf32>
    %cst_144 = arith.constant 1.000000e+00 : f32
    %678 = vector.broadcast %cst_144 : f32 to vector<8x10xf32>
    %679 = arith.subf %677, %678 : vector<8x10xf32>
    %680 = arith.mulf %673, %641 : vector<8x10xf32>
    %681 = arith.mulf %672, %679 : vector<8x10xf32>
    %682 = arith.addf %680, %681 : vector<8x10xf32>
    %683 = math.tanh %682 : vector<8x10xf32>
    %684 = arith.mulf %674, %683 : vector<8x10xf32>
    %685 = tpu.concatenate %684, %664 in 1 : vector<8x10xf32>, vector<8x10xf32> -> vector<8x20xf32>
    %cst_145 = arith.constant dense<0.000000e+00> : vector<8x40xf32>
    %686 = tpu.matmul %685, %12, %cst_145 {dimension_numbers = #tpu.dot_dimension_numbers<[1], [0], [0], [1], [0, 0, 1, 1], [], []>} : vector<8x20xf32>, vector<20x40xf32>, vector<8x40xf32> -> vector<8x40xf32>
    %687 = arith.addf %686, %17 : vector<8x40xf32>
    %688 = arith.negf %687 : vector<8x40xf32>
    %689 = math.exp %688 : vector<8x40xf32>
    %cst_146 = arith.constant 1.000000e+00 : f32
    %690 = vector.broadcast %cst_146 : f32 to vector<8x40xf32>
    %691 = arith.addf %690, %689 : vector<8x40xf32>
    %692 = arith.divf %690, %691 : vector<8x40xf32>
    %693 = vector.extract_strided_slice %692 {offsets = [0, 0], sizes = [8, 10], strides = [1, 1]} : vector<8x40xf32> to vector<8x10xf32>
    %694 = vector.extract_strided_slice %692 {offsets = [0, 10], sizes = [8, 10], strides = [1, 1]} : vector<8x40xf32> to vector<8x10xf32>
    %695 = vector.extract_strided_slice %692 {offsets = [0, 20], sizes = [8, 10], strides = [1, 1]} : vector<8x40xf32> to vector<8x10xf32>
    %696 = vector.extract_strided_slice %692 {offsets = [0, 30], sizes = [8, 10], strides = [1, 1]} : vector<8x40xf32> to vector<8x10xf32>
    %cst_147 = arith.constant 2.000000e+00 : f32
    %697 = vector.broadcast %cst_147 : f32 to vector<8x10xf32>
    %698 = arith.mulf %697, %696 : vector<8x10xf32>
    %cst_148 = arith.constant 1.000000e+00 : f32
    %699 = vector.broadcast %cst_148 : f32 to vector<8x10xf32>
    %700 = arith.subf %698, %699 : vector<8x10xf32>
    %701 = arith.mulf %694, %662 : vector<8x10xf32>
    %702 = arith.mulf %693, %700 : vector<8x10xf32>
    %703 = arith.addf %701, %702 : vector<8x10xf32>
    %704 = math.tanh %703 : vector<8x10xf32>
    %705 = arith.mulf %695, %704 : vector<8x10xf32>
    %706 = tpu.concatenate %418, %459, %500, %541, %582, %623, %664, %705 in 1 : vector<8x10xf32>, vector<8x10xf32>, vector<8x10xf32>, vector<8x10xf32>, vector<8x10xf32>, vector<8x10xf32>, vector<8x10xf32>, vector<8x10xf32> -> vector<8x80xf32>
    %707 = vector.extract_strided_slice %706 {offsets = [0, 0], sizes = [2, 80], strides = [1, 1]} : vector<8x80xf32> to vector<2x80xf32>
    %c0_149 = arith.constant 0 : index
    %c0_150 = arith.constant 0 : index
    %708 = vector.load %arg2[%c0_149, %c0_150] : memref<2x80xf32, #tpu.memory_space<vmem>>, vector<2x80xf32>
    tpu.vector_store %arg2[%c0_149, %c0_150], %707 {strides = array<i32>} : memref<2x80xf32, #tpu.memory_space<vmem>>, vector<2x80xf32>,
    return
  }
}

</mosaic_0001>

<llo_original>
// kernel: lstm_autoencoder_forward.1
$region0: #{lstm_autoencoder_forward.1}
  #allocation0 [shape = 'u32[]', space=smem, size = 0x4, offset = 0x4, fixed_abs, tag = 'smem constant byte address 0x4 - core index']
  #allocation1 [shape = 'u32[72,128]{1,0:T(1,128)}', space=vmem, size = 0x9000, scoped, tag = 'internal scratch']
  %s0 = inlined_call_operand.vmem [shape: f32[8,80], index: 0, kind: input, shape index: {}]
  %s1 = inlined_call_operand.hbm [shape: f32[280,128], index: 1, kind: input, shape index: {}]
  %s2 = inlined_call_operand.vmem [shape: f32[2,80], index: 2, kind: output, shape index: {}]
  %s3 = sld [smem:[#allocation0]]
  $region22: #{lstm_autoencoder_forward.1} parent=0
    _
  %s5 = ssub.s32 1, %s3
  %s6 = scalar_select 0, %s5, %s3
  $region1: #{lstm_autoencoder_forward.1} parent=0
    #allocation2 [shape = 'u8[143360]{0}', space=vmem, size = 0x23000, scoped, tag = 'input window, operand 1, single buffered']
    #allocation3 [shape = 's32[1]{0}', space=sflag, size = 0x4, scoped, tag = 'scoped memory for lstm_autoencoder_forward.1']
    %7 = vsyncpa [#allocation3], 0
    // Predicated region
    $region2: #{lstm_autoencoder_forward.1} parent=1 // pred_check
      _
    $region3: #{lstm_autoencoder_forward.1} parent=1 // pred_check_branch
      %9 = sbr.rel (0) target = $region5
    $region4: #{lstm_autoencoder_forward.1} parent=1 // pred_region
      _
    $region5: #{lstm_autoencoder_forward.1} parent=1 // pred_fallthru
      _
    // Predicated region
    $region6: #{lstm_autoencoder_forward.1} parent=1 // pred_check
      _
    $region7: #{lstm_autoencoder_forward.1} parent=1 // pred_check_branch
      %11 = sbr.rel (0) target = $region9
    $region8: #{lstm_autoencoder_forward.1} parent=1 // pred_region
      %13 = vsyncadd [#allocation3], 0
      %s14 = sshll.u32 %s1, 4
      %s15 = int_to_ptr.hbm [resolvable:$true] %s14
      %s16 = sshll.u32 [#allocation2], 4
      %s17 = int_to_ptr.vmem [resolvable:$true] %s16
      %22 = dma.hbm_to_vmem [thread:$0]  %s15, 4480, %s17, [#allocation3], 128, 128, 8
    $region9: #{lstm_autoencoder_forward.1} parent=1 // pred_fallthru
      _
    // Predicated region
    $region10: #{lstm_autoencoder_forward.1} parent=1 // pred_check
      _
    $region11: #{lstm_autoencoder_forward.1} parent=1 // pred_check_branch
      %24 = sbr.rel (0) target = $region13
    $region12: #{lstm_autoencoder_forward.1} parent=1 // pred_region
      %26 = dma.done [#allocation3], 4480
    $region13: #{lstm_autoencoder_forward.1} parent=1 // pred_fallthru
      _
    %v27 = vld [vmem:[#allocation2] sm:$0xff]
    %v28 = vld [vmem:[#allocation2 + $0x8] sm:$0x3]
    %v29 = vld [vmem:[#allocation2 + $0x10] sm:$0xff]
    %v30 = vld [vmem:[#allocation2 + $0x18] sm:$0xff]
    %v31 = vld [vmem:[#allocation2 + $0x20] sm:$0xff]
    %v32 = vld [vmem:[#allocation2 + $0x28] sm:$0xff]
    %v33 = vld [vmem:[#allocation2 + $0x30] sm:$0x1]
    %v34 = vld [vmem:[#allocation2 + $0x38] sm:$0xff]
    %v35 = vld [vmem:[#allocation2 + $0x40] sm:$0xff]
    %v36 = vld [vmem:[#allocation2 + $0x48] sm:$0xff]
    %v37 = vld [vmem:[#allocation2 + $0x50] sm:$0xff]
    %v38 = vld [vmem:[#allocation2 + $0x58] sm:$0xff]
    %v39 = vld [vmem:[#allocation2 + $0x60] sm:$0xff]
    %v40 = vld [vmem:[#allocation2 + $0x68] sm:$0xff]
    %v41 = vld [vmem:[#allocation2 + $0x70] sm:$0xff]
    %v42 = vld [vmem:[#allocation2 + $0x78] sm:$0x1]
    %v43 = vld [vmem:[#allocation2 + $0x80] sm:$0xff]
    %v44 = vld [vmem:[#allocation2 + $0x88] sm:$0xff]
    %v45 = vld [vmem:[#allocation2 + $0x90] sm:$0xff]
    %v46 = vld [vmem:[#allocation2 + $0x98] sm:$0xff]
    %v47 = vld [vmem:[#allocation2 + $0xa0] sm:$0x1]
    %v48 = vld [vmem:[#allocation2 + $0xa8] sm:$0xff]
    %v49 = vld [vmem:[#allocation2 + $0xb0] sm:$0xff]
    %v50 = vld [vmem:[#allocation2 + $0xb8] sm:$0x1]
    %v51 = vld [vmem:[#allocation2 + $0xc0] sm:$0xff]
    %v52 = vld [vmem:[#allocation2 + $0xc8] sm:$0xff]
    %v53 = vld [vmem:[#allocation2 + $0xd0] sm:$0xff]
    %v54 = vld [vmem:[#allocation2 + $0xd8] sm:$0xff]
    %v55 = vld [vmem:[#allocation2 + $0xe0] sm:$0xff]
    %v56 = vld [vmem:[#allocation2 + $0xe8] sm:$0x3]
    %v57 = vld [vmem:[#allocation2 + $0xf0] sm:$0x1]
    %v58 = vld [vmem:[#allocation2 + $0xf8] sm:$0xff]
    %v59 = vld [vmem:[#allocation2 + $0x100] sm:$0xff]
    %v60 = vld [vmem:[#allocation2 + $0x108] sm:$0xf]
    %v61 = vld [vmem:[#allocation2 + $0x110] sm:$0x1]
    %v62 = vperm.slane %v42, 0
    %v63 = vperm.slane %v61, 0
    %v64 = vld [vmem:[%s0] sm:$0xff]
    %66 = vrot.lane.b32.xlu0 %v64, 118
    %v67 = vpop.permute.xlu0 %66
    %68 = vrot.lane.b32.xlu0 %v64, 108
    %v69 = vpop.permute.xlu0 %68
    %70 = vrot.lane.b32.xlu0 %v64, 98
    %v71 = vpop.permute.xlu0 %70
    %72 = vrot.lane.b32.xlu0 %v64, 88
    %v73 = vpop.permute.xlu0 %72
    %74 = vrot.lane.b32.xlu0 %v64, 78
    %v75 = vpop.permute.xlu0 %74
    %76 = vrot.lane.b32.xlu0 %v64, 68
    %v77 = vpop.permute.xlu0 %76
    %78 = vrot.lane.b32.xlu0 %v64, 58
    %v79 = vpop.permute.xlu0 %78
    %v80 = vperm.slane %v33, 0
    %vm81 = vcmask 80896
    %v82 = vsel %vm81, %v64, 0
    %v84 = vsel %vm81, %v67, 0
    %v86 = vsel %vm81, %v69, 0
    %v88 = vsel %vm81, %v71, 0
    %v90 = vsel %vm81, %v73, 0
    %v92 = vsel %vm81, %v75, 0
    %v94 = vsel %vm81, %v77, 0
    %v96 = vsel %vm81, %v79, 0
    %vm98 = vcmask 1041408
    %v100 = vsel %vm98, %v28, 0
    %102 = vmatpush.msra.mxu0 0.0
    %103 = vmatpush.msra.mxu0 0.0
    %104 = vmatpush.msra.mxu0 0.0
    %105 = vmatpush.msra.mxu0 0.0
    %106 = vmatpush.msra.mxu0 0.0
    %107 = vmatpush.msra.mxu0 0.0
    %108 = vmatpush.msra.mxu0 0.0
    %109 = vmatpush.msra.mxu0 0.0
    %110 = vmatpush.msra.mxu0 0.0
    %111 = vmatpush.msra.mxu0 0.0
    %112 = vmatpush.msra.mxu0 0.0
    %113 = vmatpush.msra.mxu0 0.0
    %114 = vmatpush.msra.mxu0 0.0
    %115 = vmatpush.msra.mxu0 0.0
    %116 = vmatpush.msra.mxu0 %v100
    %117 = vmatpush.msra.mxu0 %v27
    %118 = vmatmul.f32.gmra.mxu0 %v82
    %v119 = vpop.f32.mrf.mxu0
    %v120 = vadd.f32 %v80, %v119
    %121 = vmatmul.f32.gmra.mxu0 %v84
    %v122 = vpop.f32.mrf.mxu0
    %v123 = vadd.f32 %v80, %v122
    %124 = vmatmul.f32.gmra.mxu0 %v86
    %v125 = vpop.f32.mrf.mxu0
    %v126 = vadd.f32 %v80, %v125
    %127 = vmatmul.f32.gmra.mxu0 %v88
    %v128 = vpop.f32.mrf.mxu0
    %v129 = vadd.f32 %v80, %v128
    %130 = vmatmul.f32.gmra.mxu0 %v90
    %v131 = vpop.f32.mrf.mxu0
    %v132 = vadd.f32 %v80, %v131
    %133 = vmatmul.f32.gmra.mxu0 %v92
    %v134 = vpop.f32.mrf.mxu0
    %v135 = vadd.f32 %v80, %v134
    %136 = vmatmul.f32.gmra.mxu0 %v94
    %v137 = vpop.f32.mrf.mxu0
    %v138 = vadd.f32 %v80, %v137
    %139 = vmatmul.f32.gmra.mxu0 %v96
    %v140 = vpop.f32.mrf.mxu0
    %v141 = vadd.f32 %v80, %v140
    %142 = vdwg.mxu0
    %vm143 = vcmask 261120
    %v145 = vsel %vm143, 0.0, 0
    %147 = vmatpush.msra.mxu0 0.0
    %148 = vmatpush.msra.mxu0 0.0
    %149 = vmatpush.msra.mxu0 0.0
    %150 = vmatpush.msra.mxu0 0.0
    %151 = vmatpush.msra.mxu0 0.0
    %152 = vmatpush.msra.mxu0 0.0
    %153 = vmatpush.msra.mxu0 0.0
    %154 = vmatpush.msra.mxu0 0.0
    %155 = vmatpush.msra.mxu0 0.0
    %156 = vmatpush.msra.mxu0 0.0
    %157 = vmatpush.msra.mxu0 0.0
    %158 = vmatpush.msra.mxu0 0.0
    %159 = vmatpush.msra.mxu0 %v32
    %160 = vmatpush.msra.mxu0 %v31
    %161 = vmatpush.msra.mxu0 %v30
    %162 = vmatpush.msra.mxu0 %v29
    %163 = vmatmul.f32.gmra.mxu0 %v145
    %v164 = vpop.f32.mrf.mxu0
    %v165 = vadd.f32 0.0, %v164
    %166 = vdwg.mxu0
    %v167 = vadd.f32 %v120, %v165
    %v168 = vxor.u32 %v167, 2147483648
    %v169 = vmul.f32 %v168, 1.442695
    %v170 = vpow.pop %v169
    %v171 = vadd.f32 %v170, 1.0
    %v172 = vrcp.pop %v171
    %v173 = vmul.f32 %v171, %v172
    %v174 = vsub.f32 1.0, %v173
    %v175 = vmul.f32 %v172, %v174
    %v176 = vadd.f32 %v172, %v175
    %vm177 = vweird.f32 %v171
    %vm178 = vweird.f32 %v172
    %vm179 = vmor %vm177, %vm178
    %v180 = vsel %vm179, %v172, %v176
    %v181 = vand.u32 2147483647, %v171
    %vm182 = vcmp.eq.f32.partialorder %v181, 8.507059e+37
    %v183 = vand.u32 %v171, 2147483648
    %v184 = vor.u32 1.1754944e-38, %v183
    %v185 = vsel %vm182, %v184, %v180
    %v186 = vmul.f32 1.0, %v185
    %v187 = vmul.f32 %v186, 2.0
    %v188 = vsub.f32 %v187, 1.0
    %v189 = vmul.f32 %v186, 0.0
    %191 = vrot.lane.b32.xlu0 %v188, 32
    %v192 = vpop.permute.xlu0 %191
    %v194 = vmul.f32 %v186, %v192
    %196 = vrot.lane.b32.xlu0 %v194, 32
    %v197 = vpop.permute.xlu0 %196
    %v199 = vadd.f32 %v189, %v197
    %v200 = vtanh.pop %v199
    %202 = vrot.lane.b32.xlu0 %v200, 32
    %v203 = vpop.permute.xlu0 %202
    %v205 = vmul.f32 %v186, %v203
    %207 = vrot.lane.b32.xlu0 %v205, 64
    %v208 = vpop.permute.xlu0 %207
    %v210 = vsel %vm143, %v208, 0.0
    %vm211 = vcmask 523264
    %v213 = vsel %vm211, %v210, 0
    %215 = vmatpush.msra.mxu0 0.0
    %216 = vmatpush.msra.mxu0 0.0
    %217 = vmatpush.msra.mxu0 0.0
    %218 = vmatpush.msra.mxu0 0.0
    %219 = vmatpush.msra.mxu0 0.0
    %220 = vmatpush.msra.mxu0 0.0
    %221 = vmatpush.msra.mxu0 0.0
    %222 = vmatpush.msra.mxu0 0.0
    %223 = vmatpush.msra.mxu0 %v41
    %224 = vmatpush.msra.mxu0 %v40
    %225 = vmatpush.msra.mxu0 %v39
    %226 = vmatpush.msra.mxu0 %v38
    %227 = vmatpush.msra.mxu0 %v37
    %228 = vmatpush.msra.mxu0 %v36
    %229 = vmatpush.msra.mxu0 %v35
    %230 = vmatpush.msra.mxu0 %v34
    %231 = vmatmul.f32.gmra.mxu0 %v213
    %v232 = vpop.f32.mrf.mxu0
    %v233 = vadd.f32 %v62, %v232
    %234 = vdwg.mxu0
    %v235 = vxor.u32 %v233, 2147483648
    %v236 = vmul.f32 %v235, 1.442695
    %v237 = vpow.pop %v236
    %v238 = vadd.f32 %v237, 1.0
    %v239 = vrcp.pop %v238
    %v240 = vmul.f32 %v238, %v239
    %v241 = vsub.f32 1.0, %v240
    %v242 = vmul.f32 %v239, %v241
    %v243 = vadd.f32 %v239, %v242
    %vm244 = vweird.f32 %v238
    %vm245 = vweird.f32 %v239
    %vm246 = vmor %vm244, %vm245
    %v247 = vsel %vm246, %v239, %v243
    %v248 = vand.u32 2147483647, %v238
    %vm249 = vcmp.eq.f32.partialorder %v248, 8.507059e+37
    %v250 = vand.u32 %v238, 2147483648
    %v251 = vor.u32 1.1754944e-38, %v250
    %v252 = vsel %vm249, %v251, %v247
    %v253 = vmul.f32 1.0, %v252
    %v254 = vmul.f32 %v253, 2.0
    %v255 = vsub.f32 %v254, 1.0
    %v256 = vmul.f32 %v253, 0.0
    %258 = vrot.lane.b32.xlu0 %v255, 32
    %v259 = vpop.permute.xlu0 %258
    %v261 = vmul.f32 %v253, %v259
    %263 = vrot.lane.b32.xlu0 %v261, 32
    %v264 = vpop.permute.xlu0 %263
    %v266 = vadd.f32 %v256, %v264
    %v267 = vtanh.pop %v266
    %269 = vrot.lane.b32.xlu0 %v267, 32
    %v270 = vpop.permute.xlu0 %269
    %v272 = vmul.f32 %v253, %v270
    %v273 = vsel %vm143, %v208, 0
    %275 = vmatpush.msra.mxu0 0.0
    %276 = vmatpush.msra.mxu0 0.0
    %277 = vmatpush.msra.mxu0 0.0
    %278 = vmatpush.msra.mxu0 0.0
    %279 = vmatpush.msra.mxu0 0.0
    %280 = vmatpush.msra.mxu0 0.0
    %281 = vmatpush.msra.mxu0 0.0
    %282 = vmatpush.msra.mxu0 0.0
    %283 = vmatpush.msra.mxu0 0.0
    %284 = vmatpush.msra.mxu0 0.0
    %285 = vmatpush.msra.mxu0 0.0
    %286 = vmatpush.msra.mxu0 0.0
    %287 = vmatpush.msra.mxu0 %v32
    %288 = vmatpush.msra.mxu0 %v31
    %289 = vmatpush.msra.mxu0 %v30
    %290 = vmatpush.msra.mxu0 %v29
    %291 = vmatmul.f32.gmra.mxu0 %v273
    %v292 = vpop.f32.mrf.mxu0
    %v293 = vadd.f32 0.0, %v292
    %294 = vdwg.mxu0
    %v295 = vadd.f32 %v123, %v293
    %v296 = vxor.u32 %v295, 2147483648
    %v297 = vmul.f32 %v296, 1.442695
    %v298 = vpow.pop %v297
    %v299 = vadd.f32 %v298, 1.0
    %v300 = vrcp.pop %v299
    %v301 = vmul.f32 %v299, %v300
    %v302 = vsub.f32 1.0, %v301
    %v303 = vmul.f32 %v300, %v302
    %v304 = vadd.f32 %v300, %v303
    %vm305 = vweird.f32 %v299
    %vm306 = vweird.f32 %v300
    %vm307 = vmor %vm305, %vm306
    %v308 = vsel %vm307, %v300, %v304
    %v309 = vand.u32 2147483647, %v299
    %vm310 = vcmp.eq.f32.partialorder %v309, 8.507059e+37
    %v311 = vand.u32 %v299, 2147483648
    %v312 = vor.u32 1.1754944e-38, %v311
    %v313 = vsel %vm310, %v312, %v308
    %v314 = vmul.f32 1.0, %v313
    %v315 = vmul.f32 %v314, 2.0
    %v316 = vsub.f32 %v315, 1.0
    %v317 = vmul.f32 %v314, %v199
    %319 = vrot.lane.b32.xlu0 %v316, 32
    %v320 = vpop.permute.xlu0 %319
    %v322 = vmul.f32 %v314, %v320
    %324 = vrot.lane.b32.xlu0 %v322, 32
    %v325 = vpop.permute.xlu0 %324
    %v327 = vadd.f32 %v317, %v325
    %v328 = vtanh.pop %v327
    %330 = vrot.lane.b32.xlu0 %v328, 32
    %v331 = vpop.permute.xlu0 %330
    %v333 = vmul.f32 %v314, %v331
    %335 = vrot.lane.b32.xlu0 %v333, 64
    %v336 = vpop.permute.xlu0 %335
    %339 = vrot.lane.b32.xlu0 %v272, 96
    %v340 = vpop.permute.xlu0 %339
    %v342 = vsel %vm143, %v336, %v340
    %v344 = vsel %vm211, %v342, 0
    %346 = vmatpush.msra.mxu0 0.0
    %347 = vmatpush.msra.mxu0 0.0
    %348 = vmatpush.msra.mxu0 0.0
    %349 = vmatpush.msra.mxu0 0.0
    %350 = vmatpush.msra.mxu0 0.0
    %351 = vmatpush.msra.mxu0 0.0
    %352 = vmatpush.msra.mxu0 0.0
    %353 = vmatpush.msra.mxu0 0.0
    %354 = vmatpush.msra.mxu0 %v41
    %355 = vmatpush.msra.mxu0 %v40
    %356 = vmatpush.msra.mxu0 %v39
    %357 = vmatpush.msra.mxu0 %v38
    %358 = vmatpush.msra.mxu0 %v37
    %359 = vmatpush.msra.mxu0 %v36
    %360 = vmatpush.msra.mxu0 %v35
    %361 = vmatpush.msra.mxu0 %v34
    %362 = vmatmul.f32.gmra.mxu0 %v344
    %v363 = vpop.f32.mrf.mxu0
    %v364 = vadd.f32 %v62, %v363
    %365 = vdwg.mxu0
    %v366 = vxor.u32 %v364, 2147483648
    %v367 = vmul.f32 %v366, 1.442695
    %v368 = vpow.pop %v367
    %v369 = vadd.f32 %v368, 1.0
    %v370 = vrcp.pop %v369
    %v371 = vmul.f32 %v369, %v370
    %v372 = vsub.f32 1.0, %v371
    %v373 = vmul.f32 %v370, %v372
    %v374 = vadd.f32 %v370, %v373
    %vm375 = vweird.f32 %v369
    %vm376 = vweird.f32 %v370
    %vm377 = vmor %vm375, %vm376
    %v378 = vsel %vm377, %v370, %v374
    %v379 = vand.u32 2147483647, %v369
    %vm380 = vcmp.eq.f32.partialorder %v379, 8.507059e+37
    %v381 = vand.u32 %v369, 2147483648
    %v382 = vor.u32 1.1754944e-38, %v381
    %v383 = vsel %vm380, %v382, %v378
    %v384 = vmul.f32 1.0, %v383
    %v385 = vmul.f32 %v384, 2.0
    %v386 = vsub.f32 %v385, 1.0
    %v387 = vmul.f32 %v384, %v266
    %389 = vrot.lane.b32.xlu0 %v386, 32
    %v390 = vpop.permute.xlu0 %389
    %v392 = vmul.f32 %v384, %v390
    %394 = vrot.lane.b32.xlu0 %v392, 32
    %v395 = vpop.permute.xlu0 %394
    %v397 = vadd.f32 %v387, %v395
    %v398 = vtanh.pop %v397
    %400 = vrot.lane.b32.xlu0 %v398, 32
    %v401 = vpop.permute.xlu0 %400
    %v403 = vmul.f32 %v384, %v401
    %v404 = vsel %vm143, %v336, 0
    %406 = vmatpush.msra.mxu0 0.0
    %407 = vmatpush.msra.mxu0 0.0
    %408 = vmatpush.msra.mxu0 0.0
    %409 = vmatpush.msra.mxu0 0.0
    %410 = vmatpush.msra.mxu0 0.0
    %411 = vmatpush.msra.mxu0 0.0
    %412 = vmatpush.msra.mxu0 0.0
    %413 = vmatpush.msra.mxu0 0.0
    %414 = vmatpush.msra.mxu0 0.0
    %415 = vmatpush.msra.mxu0 0.0
    %416 = vmatpush.msra.mxu0 0.0
    %417 = vmatpush.msra.mxu0 0.0
    %418 = vmatpush.msra.mxu0 %v32
    %419 = vmatpush.msra.mxu0 %v31
    %420 = vmatpush.msra.mxu0 %v30
    %421 = vmatpush.msra.mxu0 %v29
    %422 = vmatmul.f32.gmra.mxu0 %v404
    %v423 = vpop.f32.mrf.mxu0
    %v424 = vadd.f32 0.0, %v423
    %425 = vdwg.mxu0
    %v426 = vadd.f32 %v126, %v424
    %v427 = vxor.u32 %v426, 2147483648
    %v428 = vmul.f32 %v427, 1.442695
    %v429 = vpow.pop %v428
    %v430 = vadd.f32 %v429, 1.0
    %v431 = vrcp.pop %v430
    %v432 = vmul.f32 %v430, %v431
    %v433 = vsub.f32 1.0, %v432
    %v434 = vmul.f32 %v431, %v433
    %v435 = vadd.f32 %v431, %v434
    %vm436 = vweird.f32 %v430
    %vm437 = vweird.f32 %v431
    %vm438 = vmor %vm436, %vm437
    %v439 = vsel %vm438, %v431, %v435
    %v440 = vand.u32 2147483647, %v430
    %vm441 = vcmp.eq.f32.partialorder %v440, 8.507059e+37
    %v442 = vand.u32 %v430, 2147483648
    %v443 = vor.u32 1.1754944e-38, %v442
    %v444 = vsel %vm441, %v443, %v439
    %v445 = vmul.f32 1.0, %v444
    %v446 = vmul.f32 %v445, 2.0
    %v447 = vsub.f32 %v446, 1.0
    %v448 = vmul.f32 %v445, %v327
    %450 = vrot.lane.b32.xlu0 %v447, 32
    %v451 = vpop.permute.xlu0 %450
    %v453 = vmul.f32 %v445, %v451
    %455 = vrot.lane.b32.xlu0 %v453, 32
    %v456 = vpop.permute.xlu0 %455
    %v458 = vadd.f32 %v448, %v456
    %v459 = vtanh.pop %v458
    %461 = vrot.lane.b32.xlu0 %v459, 32
    %v462 = vpop.permute.xlu0 %461
    %v464 = vmul.f32 %v445, %v462
    %466 = vrot.lane.b32.xlu0 %v464, 64
    %v467 = vpop.permute.xlu0 %466
    %470 = vrot.lane.b32.xlu0 %v403, 96
    %v471 = vpop.permute.xlu0 %470
    %v473 = vsel %vm143, %v467, %v471
    %v475 = vsel %vm211, %v473, 0
    %477 = vmatpush.msra.mxu0 0.0
    %478 = vmatpush.msra.mxu0 0.0
    %479 = vmatpush.msra.mxu0 0.0
    %480 = vmatpush.msra.mxu0 0.0
    %481 = vmatpush.msra.mxu0 0.0
    %482 = vmatpush.msra.mxu0 0.0
    %483 = vmatpush.msra.mxu0 0.0
    %484 = vmatpush.msra.mxu0 0.0
    %485 = vmatpush.msra.mxu0 %v41
    %486 = vmatpush.msra.mxu0 %v40
    %487 = vmatpush.msra.mxu0 %v39
    %488 = vmatpush.msra.mxu0 %v38
    %489 = vmatpush.msra.mxu0 %v37
    %490 = vmatpush.msra.mxu0 %v36
    %491 = vmatpush.msra.mxu0 %v35
    %492 = vmatpush.msra.mxu0 %v34
    %493 = vmatmul.f32.gmra.mxu0 %v475
    %v494 = vpop.f32.mrf.mxu0
    %v495 = vadd.f32 %v62, %v494
    %496 = vdwg.mxu0
    %v497 = vxor.u32 %v495, 2147483648
    %v498 = vmul.f32 %v497, 1.442695
    %v499 = vpow.pop %v498
    %v500 = vadd.f32 %v499, 1.0
    %v501 = vrcp.pop %v500
    %v502 = vmul.f32 %v500, %v501
    %v503 = vsub.f32 1.0, %v502
    %v504 = vmul.f32 %v501, %v503
    %v505 = vadd.f32 %v501, %v504
    %vm506 = vweird.f32 %v500
    %vm507 = vweird.f32 %v501
    %vm508 = vmor %vm506, %vm507
    %v509 = vsel %vm508, %v501, %v505
    %v510 = vand.u32 2147483647, %v500
    %vm511 = vcmp.eq.f32.partialorder %v510, 8.507059e+37
    %v512 = vand.u32 %v500, 2147483648
    %v513 = vor.u32 1.1754944e-38, %v512
    %v514 = vsel %vm511, %v513, %v509
    %v515 = vmul.f32 1.0, %v514
    %v516 = vmul.f32 %v515, 2.0
    %v517 = vsub.f32 %v516, 1.0
    %v518 = vmul.f32 %v515, %v397
    %520 = vrot.lane.b32.xlu0 %v517, 32
    %v521 = vpop.permute.xlu0 %520
    %v523 = vmul.f32 %v515, %v521
    %525 = vrot.lane.b32.xlu0 %v523, 32
    %v526 = vpop.permute.xlu0 %525
    %v528 = vadd.f32 %v518, %v526
    %v529 = vtanh.pop %v528
    %531 = vrot.lane.b32.xlu0 %v529, 32
    %v532 = vpop.permute.xlu0 %531
    %v534 = vmul.f32 %v515, %v532
    %v535 = vsel %vm143, %v467, 0
    %537 = vmatpush.msra.mxu0 0.0
    %538 = vmatpush.msra.mxu0 0.0
    %539 = vmatpush.msra.mxu0 0.0
    %540 = vmatpush.msra.mxu0 0.0
    %541 = vmatpush.msra.mxu0 0.0
    %542 = vmatpush.msra.mxu0 0.0
    %543 = vmatpush.msra.mxu0 0.0
    %544 = vmatpush.msra.mxu0 0.0
    %545 = vmatpush.msra.mxu0 0.0
    %546 = vmatpush.msra.mxu0 0.0
    %547 = vmatpush.msra.mxu0 0.0
    %548 = vmatpush.msra.mxu0 0.0
    %549 = vmatpush.msra.mxu0 %v32
    %550 = vmatpush.msra.mxu0 %v31
    %551 = vmatpush.msra.mxu0 %v30
    %552 = vmatpush.msra.mxu0 %v29
    %553 = vmatmul.f32.gmra.mxu0 %v535
    %v554 = vpop.f32.mrf.mxu0
    %v555 = vadd.f32 0.0, %v554
    %556 = vdwg.mxu0
    %v557 = vadd.f32 %v129, %v555
    %v558 = vxor.u32 %v557, 2147483648
    %v559 = vmul.f32 %v558, 1.442695
    %v560 = vpow.pop %v559
    %v561 = vadd.f32 %v560, 1.0
    %v562 = vrcp.pop %v561
    %v563 = vmul.f32 %v561, %v562
    %v564 = vsub.f32 1.0, %v563
    %v565 = vmul.f32 %v562, %v564
    %v566 = vadd.f32 %v562, %v565
    %vm567 = vweird.f32 %v561
    %vm568 = vweird.f32 %v562
    %vm569 = vmor %vm567, %vm568
    %v570 = vsel %vm569, %v562, %v566
    %v571 = vand.u32 2147483647, %v561
    %vm572 = vcmp.eq.f32.partialorder %v571, 8.507059e+37
    %v573 = vand.u32 %v561, 2147483648
    %v574 = vor.u32 1.1754944e-38, %v573
    %v575 = vsel %vm572, %v574, %v570
    %v576 = vmul.f32 1.0, %v575
    %v577 = vmul.f32 %v576, 2.0
    %v578 = vsub.f32 %v577, 1.0
    %v579 = vmul.f32 %v576, %v458
    %581 = vrot.lane.b32.xlu0 %v578, 32
    %v582 = vpop.permute.xlu0 %581
    %v584 = vmul.f32 %v576, %v582
    %586 = vrot.lane.b32.xlu0 %v584, 32
    %v587 = vpop.permute.xlu0 %586
    %v589 = vadd.f32 %v579, %v587
    %v590 = vtanh.pop %v589
    %592 = vrot.lane.b32.xlu0 %v590, 32
    %v593 = vpop.permute.xlu0 %592
    %v595 = vmul.f32 %v576, %v593
    %597 = vrot.lane.b32.xlu0 %v595, 64
    %v598 = vpop.permute.xlu0 %597
    %601 = vrot.lane.b32.xlu0 %v534, 96
    %v602 = vpop.permute.xlu0 %601
    %v604 = vsel %vm143, %v598, %v602
    %v606 = vsel %vm211, %v604, 0
    %608 = vmatpush.msra.mxu0 0.0
    %609 = vmatpush.msra.mxu0 0.0
    %610 = vmatpush.msra.mxu0 0.0
    %611 = vmatpush.msra.mxu0 0.0
    %612 = vmatpush.msra.mxu0 0.0
    %613 = vmatpush.msra.mxu0 0.0
    %614 = vmatpush.msra.mxu0 0.0
    %615 = vmatpush.msra.mxu0 0.0
    %616 = vmatpush.msra.mxu0 %v41
    %617 = vmatpush.msra.mxu0 %v40
    %618 = vmatpush.msra.mxu0 %v39
    %619 = vmatpush.msra.mxu0 %v38
    %620 = vmatpush.msra.mxu0 %v37
    %621 = vmatpush.msra.mxu0 %v36
    %622 = vmatpush.msra.mxu0 %v35
    %623 = vmatpush.msra.mxu0 %v34
    %624 = vmatmul.f32.gmra.mxu0 %v606
    %v625 = vpop.f32.mrf.mxu0
    %v626 = vadd.f32 %v62, %v625
    %627 = vdwg.mxu0
    %v628 = vxor.u32 %v626, 2147483648
    %v629 = vmul.f32 %v628, 1.442695
    %v630 = vpow.pop %v629
    %v631 = vadd.f32 %v630, 1.0
    %v632 = vrcp.pop %v631
    %v633 = vmul.f32 %v631, %v632
    %v634 = vsub.f32 1.0, %v633
    %v635 = vmul.f32 %v632, %v634
    %v636 = vadd.f32 %v632, %v635
    %vm637 = vweird.f32 %v631
    %vm638 = vweird.f32 %v632
    %vm639 = vmor %vm637, %vm638
    %v640 = vsel %vm639, %v632, %v636
    %v641 = vand.u32 2147483647, %v631
    %vm642 = vcmp.eq.f32.partialorder %v641, 8.507059e+37
    %v643 = vand.u32 %v631, 2147483648
    %v644 = vor.u32 1.1754944e-38, %v643
    %v645 = vsel %vm642, %v644, %v640
    %v646 = vmul.f32 1.0, %v645
    %v647 = vmul.f32 %v646, 2.0
    %v648 = vsub.f32 %v647, 1.0
    %v649 = vmul.f32 %v646, %v528
    %651 = vrot.lane.b32.xlu0 %v648, 32
    %v652 = vpop.permute.xlu0 %651
    %v654 = vmul.f32 %v646, %v652
    %656 = vrot.lane.b32.xlu0 %v654, 32
    %v657 = vpop.permute.xlu0 %656
    %v659 = vadd.f32 %v649, %v657
    %v660 = vtanh.pop %v659
    %662 = vrot.lane.b32.xlu0 %v660, 32
    %v663 = vpop.permute.xlu0 %662
    %v665 = vmul.f32 %v646, %v663
    %v666 = vsel %vm143, %v598, 0
    %668 = vmatpush.msra.mxu0 0.0
    %669 = vmatpush.msra.mxu0 0.0
    %670 = vmatpush.msra.mxu0 0.0
    %671 = vmatpush.msra.mxu0 0.0
    %672 = vmatpush.msra.mxu0 0.0
    %673 = vmatpush.msra.mxu0 0.0
    %674 = vmatpush.msra.mxu0 0.0
    %675 = vmatpush.msra.mxu0 0.0
    %676 = vmatpush.msra.mxu0 0.0
    %677 = vmatpush.msra.mxu0 0.0
    %678 = vmatpush.msra.mxu0 0.0
    %679 = vmatpush.msra.mxu0 0.0
    %680 = vmatpush.msra.mxu0 %v32
    %681 = vmatpush.msra.mxu0 %v31
    %682 = vmatpush.msra.mxu0 %v30
    %683 = vmatpush.msra.mxu0 %v29
    %684 = vmatmul.f32.gmra.mxu0 %v666
    %v685 = vpop.f32.mrf.mxu0
    %v686 = vadd.f32 0.0, %v685
    %687 = vdwg.mxu0
    %v688 = vadd.f32 %v132, %v686
    %v689 = vxor.u32 %v688, 2147483648
    %v690 = vmul.f32 %v689, 1.442695
    %v691 = vpow.pop %v690
    %v692 = vadd.f32 %v691, 1.0
    %v693 = vrcp.pop %v692
    %v694 = vmul.f32 %v692, %v693
    %v695 = vsub.f32 1.0, %v694
    %v696 = vmul.f32 %v693, %v695
    %v697 = vadd.f32 %v693, %v696
    %vm698 = vweird.f32 %v692
    %vm699 = vweird.f32 %v693
    %vm700 = vmor %vm698, %vm699
    %v701 = vsel %vm700, %v693, %v697
    %v702 = vand.u32 2147483647, %v692
    %vm703 = vcmp.eq.f32.partialorder %v702, 8.507059e+37
    %v704 = vand.u32 %v692, 2147483648
    %v705 = vor.u32 1.1754944e-38, %v704
    %v706 = vsel %vm703, %v705, %v701
    %v707 = vmul.f32 1.0, %v706
    %v708 = vmul.f32 %v707, 2.0
    %v709 = vsub.f32 %v708, 1.0
    %v710 = vmul.f32 %v707, %v589
    %712 = vrot.lane.b32.xlu0 %v709, 32
    %v713 = vpop.permute.xlu0 %712
    %v715 = vmul.f32 %v707, %v713
    %717 = vrot.lane.b32.xlu0 %v715, 32
    %v718 = vpop.permute.xlu0 %717
    %v720 = vadd.f32 %v710, %v718
    %v721 = vtanh.pop %v720
    %723 = vrot.lane.b32.xlu0 %v721, 32
    %v724 = vpop.permute.xlu0 %723
    %v726 = vmul.f32 %v707, %v724
    %728 = vrot.lane.b32.xlu0 %v726, 64
    %v729 = vpop.permute.xlu0 %728
    %732 = vrot.lane.b32.xlu0 %v665, 96
    %v733 = vpop.permute.xlu0 %732
    %v735 = vsel %vm143, %v729, %v733
    %v737 = vsel %vm211, %v735, 0
    %739 = vmatpush.msra.mxu0 0.0
    %740 = vmatpush.msra.mxu0 0.0
    %741 = vmatpush.msra.mxu0 0.0
    %742 = vmatpush.msra.mxu0 0.0
    %743 = vmatpush.msra.mxu0 0.0
    %744 = vmatpush.msra.mxu0 0.0
    %745 = vmatpush.msra.mxu0 0.0
    %746 = vmatpush.msra.mxu0 0.0
    %747 = vmatpush.msra.mxu0 %v41
    %748 = vmatpush.msra.mxu0 %v40
    %749 = vmatpush.msra.mxu0 %v39
    %750 = vmatpush.msra.mxu0 %v38
    %751 = vmatpush.msra.mxu0 %v37
    %752 = vmatpush.msra.mxu0 %v36
    %753 = vmatpush.msra.mxu0 %v35
    %754 = vmatpush.msra.mxu0 %v34
    %755 = vmatmul.f32.gmra.mxu0 %v737
    %v756 = vpop.f32.mrf.mxu0
    %v757 = vadd.f32 %v62, %v756
    %758 = vdwg.mxu0
    %v759 = vxor.u32 %v757, 2147483648
    %v760 = vmul.f32 %v759, 1.442695
    %v761 = vpow.pop %v760
    %v762 = vadd.f32 %v761, 1.0
    %v763 = vrcp.pop %v762
    %v764 = vmul.f32 %v762, %v763
    %v765 = vsub.f32 1.0, %v764
    %v766 = vmul.f32 %v763, %v765
    %v767 = vadd.f32 %v763, %v766
    %vm768 = vweird.f32 %v762
    %vm769 = vweird.f32 %v763
    %vm770 = vmor %vm768, %vm769
    %v771 = vsel %vm770, %v763, %v767
    %v772 = vand.u32 2147483647, %v762
    %vm773 = vcmp.eq.f32.partialorder %v772, 8.507059e+37
    %v774 = vand.u32 %v762, 2147483648
    %v775 = vor.u32 1.1754944e-38, %v774
    %v776 = vsel %vm773, %v775, %v771
    %v777 = vmul.f32 1.0, %v776
    %v778 = vmul.f32 %v777, 2.0
    %v779 = vsub.f32 %v778, 1.0
    %v780 = vmul.f32 %v777, %v659
    %782 = vrot.lane.b32.xlu0 %v779, 32
    %v783 = vpop.permute.xlu0 %782
    %v785 = vmul.f32 %v777, %v783
    %787 = vrot.lane.b32.xlu0 %v785, 32
    %v788 = vpop.permute.xlu0 %787
    %v790 = vadd.f32 %v780, %v788
    %v791 = vtanh.pop %v790
    %793 = vrot.lane.b32.xlu0 %v791, 32
    %v794 = vpop.permute.xlu0 %793
    %v796 = vmul.f32 %v777, %v794
    %v797 = vsel %vm143, %v729, 0
    %799 = vmatpush.msra.mxu0 0.0
    %800 = vmatpush.msra.mxu0 0.0
    %801 = vmatpush.msra.mxu0 0.0
    %802 = vmatpush.msra.mxu0 0.0
    %803 = vmatpush.msra.mxu0 0.0
    %804 = vmatpush.msra.mxu0 0.0
    %805 = vmatpush.msra.mxu0 0.0
    %806 = vmatpush.msra.mxu0 0.0
    %807 = vmatpush.msra.mxu0 0.0
    %808 = vmatpush.msra.mxu0 0.0
    %809 = vmatpush.msra.mxu0 0.0
    %810 = vmatpush.msra.mxu0 0.0
    %811 = vmatpush.msra.mxu0 %v32
    %812 = vmatpush.msra.mxu0 %v31
    %813 = vmatpush.msra.mxu0 %v30
    %814 = vmatpush.msra.mxu0 %v29
    %815 = vmatmul.f32.gmra.mxu0 %v797
    %v816 = vpop.f32.mrf.mxu0
    %v817 = vadd.f32 0.0, %v816
    %818 = vdwg.mxu0
    %v819 = vadd.f32 %v135, %v817
    %v820 = vxor.u32 %v819, 2147483648
    %v821 = vmul.f32 %v820, 1.442695
    %v822 = vpow.pop %v821
    %v823 = vadd.f32 %v822, 1.0
    %v824 = vrcp.pop %v823
    %v825 = vmul.f32 %v823, %v824
    %v826 = vsub.f32 1.0, %v825
    %v827 = vmul.f32 %v824, %v826
    %v828 = vadd.f32 %v824, %v827
    %vm829 = vweird.f32 %v823
    %vm830 = vweird.f32 %v824
    %vm831 = vmor %vm829, %vm830
    %v832 = vsel %vm831, %v824, %v828
    %v833 = vand.u32 2147483647, %v823
    %vm834 = vcmp.eq.f32.partialorder %v833, 8.507059e+37
    %v835 = vand.u32 %v823, 2147483648
    %v836 = vor.u32 1.1754944e-38, %v835
    %v837 = vsel %vm834, %v836, %v832
    %v838 = vmul.f32 1.0, %v837
    %v839 = vmul.f32 %v838, 2.0
    %v840 = vsub.f32 %v839, 1.0
    %v841 = vmul.f32 %v838, %v720
    %843 = vrot.lane.b32.xlu0 %v840, 32
    %v844 = vpop.permute.xlu0 %843
    %v846 = vmul.f32 %v838, %v844
    %848 = vrot.lane.b32.xlu0 %v846, 32
    %v849 = vpop.permute.xlu0 %848
    %v851 = vadd.f32 %v841, %v849
    %v852 = vtanh.pop %v851
    %854 = vrot.lane.b32.xlu0 %v852, 32
    %v855 = vpop.permute.xlu0 %854
    %v857 = vmul.f32 %v838, %v855
    %859 = vrot.lane.b32.xlu0 %v857, 64
    %v860 = vpop.permute.xlu0 %859
    %863 = vrot.lane.b32.xlu0 %v796, 96
    %v864 = vpop.permute.xlu0 %863
    %v866 = vsel %vm143, %v860, %v864
    %v868 = vsel %vm211, %v866, 0
    %870 = vmatpush.msra.mxu0 0.0
    %871 = vmatpush.msra.mxu0 0.0
    %872 = vmatpush.msra.mxu0 0.0
    %873 = vmatpush.msra.mxu0 0.0
    %874 = vmatpush.msra.mxu0 0.0
    %875 = vmatpush.msra.mxu0 0.0
    %876 = vmatpush.msra.mxu0 0.0
    %877 = vmatpush.msra.mxu0 0.0
    %878 = vmatpush.msra.mxu0 %v41
    %879 = vmatpush.msra.mxu0 %v40
    %880 = vmatpush.msra.mxu0 %v39
    %881 = vmatpush.msra.mxu0 %v38
    %882 = vmatpush.msra.mxu0 %v37
    %883 = vmatpush.msra.mxu0 %v36
    %884 = vmatpush.msra.mxu0 %v35
    %885 = vmatpush.msra.mxu0 %v34
    %886 = vmatmul.f32.gmra.mxu0 %v868
    %v887 = vpop.f32.mrf.mxu0
    %v888 = vadd.f32 %v62, %v887
    %889 = vdwg.mxu0
    %v890 = vxor.u32 %v888, 2147483648
    %v891 = vmul.f32 %v890, 1.442695
    %v892 = vpow.pop %v891
    %v893 = vadd.f32 %v892, 1.0
    %v894 = vrcp.pop %v893
    %v895 = vmul.f32 %v893, %v894
    %v896 = vsub.f32 1.0, %v895
    %v897 = vmul.f32 %v894, %v896
    %v898 = vadd.f32 %v894, %v897
    %vm899 = vweird.f32 %v893
    %vm900 = vweird.f32 %v894
    %vm901 = vmor %vm899, %vm900
    %v902 = vsel %vm901, %v894, %v898
    %v903 = vand.u32 2147483647, %v893
    %vm904 = vcmp.eq.f32.partialorder %v903, 8.507059e+37
    %v905 = vand.u32 %v893, 2147483648
    %v906 = vor.u32 1.1754944e-38, %v905
    %v907 = vsel %vm904, %v906, %v902
    %v908 = vmul.f32 1.0, %v907
    %v909 = vmul.f32 %v908, 2.0
    %v910 = vsub.f32 %v909, 1.0
    %v911 = vmul.f32 %v908, %v790
    %913 = vrot.lane.b32.xlu0 %v910, 32
    %v914 = vpop.permute.xlu0 %913
    %v916 = vmul.f32 %v908, %v914
    %918 = vrot.lane.b32.xlu0 %v916, 32
    %v919 = vpop.permute.xlu0 %918
    %v921 = vadd.f32 %v911, %v919
    %v922 = vtanh.pop %v921
    %924 = vrot.lane.b32.xlu0 %v922, 32
    %v925 = vpop.permute.xlu0 %924
    %v927 = vmul.f32 %v908, %v925
    %v928 = vsel %vm143, %v860, 0
    %930 = vmatpush.msra.mxu0 0.0
    %931 = vmatpush.msra.mxu0 0.0
    %932 = vmatpush.msra.mxu0 0.0
    %933 = vmatpush.msra.mxu0 0.0
    %934 = vmatpush.msra.mxu0 0.0
    %935 = vmatpush.msra.mxu0 0.0
    %936 = vmatpush.msra.mxu0 0.0
    %937 = vmatpush.msra.mxu0 0.0
    %938 = vmatpush.msra.mxu0 0.0
    %939 = vmatpush.msra.mxu0 0.0
    %940 = vmatpush.msra.mxu0 0.0
    %941 = vmatpush.msra.mxu0 0.0
    %942 = vmatpush.msra.mxu0 %v32
    %943 = vmatpush.msra.mxu0 %v31
    %944 = vmatpush.msra.mxu0 %v30
    %945 = vmatpush.msra.mxu0 %v29
    %946 = vmatmul.f32.gmra.mxu0 %v928
    %v947 = vpop.f32.mrf.mxu0
    %v948 = vadd.f32 0.0, %v947
    %949 = vdwg.mxu0
    %v950 = vadd.f32 %v138, %v948
    %v951 = vxor.u32 %v950, 2147483648
    %v952 = vmul.f32 %v951, 1.442695
    %v953 = vpow.pop %v952
    %v954 = vadd.f32 %v953, 1.0
    %v955 = vrcp.pop %v954
    %v956 = vmul.f32 %v954, %v955
    %v957 = vsub.f32 1.0, %v956
    %v958 = vmul.f32 %v955, %v957
    %v959 = vadd.f32 %v955, %v958
    %vm960 = vweird.f32 %v954
    %vm961 = vweird.f32 %v955
    %vm962 = vmor %vm960, %vm961
    %v963 = vsel %vm962, %v955, %v959
    %v964 = vand.u32 2147483647, %v954
    %vm965 = vcmp.eq.f32.partialorder %v964, 8.507059e+37
    %v966 = vand.u32 %v954, 2147483648
    %v967 = vor.u32 1.1754944e-38, %v966
    %v968 = vsel %vm965, %v967, %v963
    %v969 = vmul.f32 1.0, %v968
    %v970 = vmul.f32 %v969, 2.0
    %v971 = vsub.f32 %v970, 1.0
    %v972 = vmul.f32 %v969, %v851
    %974 = vrot.lane.b32.xlu0 %v971, 32
    %v975 = vpop.permute.xlu0 %974
    %v977 = vmul.f32 %v969, %v975
    %979 = vrot.lane.b32.xlu0 %v977, 32
    %v980 = vpop.permute.xlu0 %979
    %v982 = vadd.f32 %v972, %v980
    %v983 = vtanh.pop %v982
    %985 = vrot.lane.b32.xlu0 %v983, 32
    %v986 = vpop.permute.xlu0 %985
    %v988 = vmul.f32 %v969, %v986
    %990 = vrot.lane.b32.xlu0 %v988, 64
    %v991 = vpop.permute.xlu0 %990
    %994 = vrot.lane.b32.xlu0 %v927, 96
    %v995 = vpop.permute.xlu0 %994
    %v997 = vsel %vm143, %v991, %v995
    %v999 = vsel %vm211, %v997, 0
    %1001 = vmatpush.msra.mxu0 0.0
    %1002 = vmatpush.msra.mxu0 0.0
    %1003 = vmatpush.msra.mxu0 0.0
    %1004 = vmatpush.msra.mxu0 0.0
    %1005 = vmatpush.msra.mxu0 0.0
    %1006 = vmatpush.msra.mxu0 0.0
    %1007 = vmatpush.msra.mxu0 0.0
    %1008 = vmatpush.msra.mxu0 0.0
    %1009 = vmatpush.msra.mxu0 %v41
    %1010 = vmatpush.msra.mxu0 %v40
    %1011 = vmatpush.msra.mxu0 %v39
    %1012 = vmatpush.msra.mxu0 %v38
    %1013 = vmatpush.msra.mxu0 %v37
    %1014 = vmatpush.msra.mxu0 %v36
    %1015 = vmatpush.msra.mxu0 %v35
    %1016 = vmatpush.msra.mxu0 %v34
    %1017 = vmatmul.f32.gmra.mxu0 %v999
    %v1018 = vpop.f32.mrf.mxu0
    %v1019 = vadd.f32 %v62, %v1018
    %1020 = vdwg.mxu0
    %v1021 = vxor.u32 %v1019, 2147483648
    %v1022 = vmul.f32 %v1021, 1.442695
    %v1023 = vpow.pop %v1022
    %v1024 = vadd.f32 %v1023, 1.0
    %v1025 = vrcp.pop %v1024
    %v1026 = vmul.f32 %v1024, %v1025
    %v1027 = vsub.f32 1.0, %v1026
    %v1028 = vmul.f32 %v1025, %v1027
    %v1029 = vadd.f32 %v1025, %v1028
    %vm1030 = vweird.f32 %v1024
    %vm1031 = vweird.f32 %v1025
    %vm1032 = vmor %vm1030, %vm1031
    %v1033 = vsel %vm1032, %v1025, %v1029
    %v1034 = vand.u32 2147483647, %v1024
    %vm1035 = vcmp.eq.f32.partialorder %v1034, 8.507059e+37
    %v1036 = vand.u32 %v1024, 2147483648
    %v1037 = vor.u32 1.1754944e-38, %v1036
    %v1038 = vsel %vm1035, %v1037, %v1033
    %v1039 = vmul.f32 1.0, %v1038
    %v1040 = vmul.f32 %v1039, 2.0
    %v1041 = vsub.f32 %v1040, 1.0
    %v1042 = vmul.f32 %v1039, %v921
    %1044 = vrot.lane.b32.xlu0 %v1041, 32
    %v1045 = vpop.permute.xlu0 %1044
    %v1047 = vmul.f32 %v1039, %v1045
    %1049 = vrot.lane.b32.xlu0 %v1047, 32
    %v1050 = vpop.permute.xlu0 %1049
    %v1052 = vadd.f32 %v1042, %v1050
    %v1053 = vtanh.pop %v1052
    %1055 = vrot.lane.b32.xlu0 %v1053, 32
    %v1056 = vpop.permute.xlu0 %1055
    %v1058 = vmul.f32 %v1039, %v1056
    %v1059 = vsel %vm143, %v991, 0
    %1061 = vmatpush.msra.mxu0 0.0
    %1062 = vmatpush.msra.mxu0 0.0
    %1063 = vmatpush.msra.mxu0 0.0
    %1064 = vmatpush.msra.mxu0 0.0
    %1065 = vmatpush.msra.mxu0 0.0
    %1066 = vmatpush.msra.mxu0 0.0
    %1067 = vmatpush.msra.mxu0 0.0
    %1068 = vmatpush.msra.mxu0 0.0
    %1069 = vmatpush.msra.mxu0 0.0
    %1070 = vmatpush.msra.mxu0 0.0
    %1071 = vmatpush.msra.mxu0 0.0
    %1072 = vmatpush.msra.mxu0 0.0
    %1073 = vmatpush.msra.mxu0 %v32
    %1074 = vmatpush.msra.mxu0 %v31
    %1075 = vmatpush.msra.mxu0 %v30
    %1076 = vmatpush.msra.mxu0 %v29
    %1077 = vmatmul.f32.gmra.mxu0 %v1059
    %v1078 = vpop.f32.mrf.mxu0
    %v1079 = vadd.f32 0.0, %v1078
    %1080 = vdwg.mxu0
    %v1081 = vadd.f32 %v141, %v1079
    %v1082 = vxor.u32 %v1081, 2147483648
    %v1083 = vmul.f32 %v1082, 1.442695
    %v1084 = vpow.pop %v1083
    %v1085 = vadd.f32 %v1084, 1.0
    %v1086 = vrcp.pop %v1085
    %v1087 = vmul.f32 %v1085, %v1086
    %v1088 = vsub.f32 1.0, %v1087
    %v1089 = vmul.f32 %v1086, %v1088
    %v1090 = vadd.f32 %v1086, %v1089
    %vm1091 = vweird.f32 %v1085
    %vm1092 = vweird.f32 %v1086
    %vm1093 = vmor %vm1091, %vm1092
    %v1094 = vsel %vm1093, %v1086, %v1090
    %v1095 = vand.u32 2147483647, %v1085
    %vm1096 = vcmp.eq.f32.partialorder %v1095, 8.507059e+37
    %v1097 = vand.u32 %v1085, 2147483648
    %v1098 = vor.u32 1.1754944e-38, %v1097
    %v1099 = vsel %vm1096, %v1098, %v1094
    %v1100 = vmul.f32 1.0, %v1099
    %v1101 = vmul.f32 %v1100, 2.0
    %v1102 = vsub.f32 %v1101, 1.0
    %v1103 = vmul.f32 %v1100, %v982
    %1105 = vrot.lane.b32.xlu0 %v1102, 32
    %v1106 = vpop.permute.xlu0 %1105
    %v1108 = vmul.f32 %v1100, %v1106
    %1110 = vrot.lane.b32.xlu0 %v1108, 32
    %v1111 = vpop.permute.xlu0 %1110
    %v1113 = vadd.f32 %v1103, %v1111
    %v1114 = vtanh.pop %v1113
    %1116 = vrot.lane.b32.xlu0 %v1114, 32
    %v1117 = vpop.permute.xlu0 %1116
    %v1119 = vmul.f32 %v1100, %v1117
    %1121 = vrot.lane.b32.xlu0 %v1119, 64
    %v1122 = vpop.permute.xlu0 %1121
    %1125 = vrot.lane.b32.xlu0 %v1058, 96
    %v1126 = vpop.permute.xlu0 %1125
    %v1128 = vsel %vm143, %v1122, %v1126
    %v1130 = vsel %vm211, %v1128, 0
    %1132 = vmatpush.msra.mxu0 0.0
    %1133 = vmatpush.msra.mxu0 0.0
    %1134 = vmatpush.msra.mxu0 0.0
    %1135 = vmatpush.msra.mxu0 0.0
    %1136 = vmatpush.msra.mxu0 0.0
    %1137 = vmatpush.msra.mxu0 0.0
    %1138 = vmatpush.msra.mxu0 0.0
    %1139 = vmatpush.msra.mxu0 0.0
    %1140 = vmatpush.msra.mxu0 %v41
    %1141 = vmatpush.msra.mxu0 %v40
    %1142 = vmatpush.msra.mxu0 %v39
    %1143 = vmatpush.msra.mxu0 %v38
    %1144 = vmatpush.msra.mxu0 %v37
    %1145 = vmatpush.msra.mxu0 %v36
    %1146 = vmatpush.msra.mxu0 %v35
    %1147 = vmatpush.msra.mxu0 %v34
    %1148 = vmatmul.f32.gmra.mxu0 %v1130
    %v1149 = vpop.f32.mrf.mxu0
    %v1150 = vadd.f32 %v62, %v1149
    %1151 = vdwg.mxu0
    %v1152 = vxor.u32 %v1150, 2147483648
    %v1153 = vmul.f32 %v1152, 1.442695
    %v1154 = vpow.pop %v1153
    %v1155 = vadd.f32 %v1154, 1.0
    %v1156 = vrcp.pop %v1155
    %v1157 = vmul.f32 %v1155, %v1156
    %v1158 = vsub.f32 1.0, %v1157
    %v1159 = vmul.f32 %v1156, %v1158
    %v1160 = vadd.f32 %v1156, %v1159
    %vm1161 = vweird.f32 %v1155
    %vm1162 = vweird.f32 %v1156
    %vm1163 = vmor %vm1161, %vm1162
    %v1164 = vsel %vm1163, %v1156, %v1160
    %v1165 = vand.u32 2147483647, %v1155
    %vm1166 = vcmp.eq.f32.partialorder %v1165, 8.507059e+37
    %v1167 = vand.u32 %v1155, 2147483648
    %v1168 = vor.u32 1.1754944e-38, %v1167
    %v1169 = vsel %vm1166, %v1168, %v1164
    %v1170 = vmul.f32 1.0, %v1169
    %v1171 = vmul.f32 %v1170, 2.0
    %v1172 = vsub.f32 %v1171, 1.0
    %v1173 = vmul.f32 %v1170, %v1052
    %1175 = vrot.lane.b32.xlu0 %v1172, 32
    %v1176 = vpop.permute.xlu0 %1175
    %v1178 = vmul.f32 %v1170, %v1176
    %1180 = vrot.lane.b32.xlu0 %v1178, 32
    %v1181 = vpop.permute.xlu0 %1180
    %v1183 = vadd.f32 %v1173, %v1181
    %v1184 = vtanh.pop %v1183
    %1186 = vrot.lane.b32.xlu0 %v1184, 32
    %v1187 = vpop.permute.xlu0 %1186
    %v1189 = vmul.f32 %v1170, %v1187
    %v1190 = vperm.slane %v47, 0
    %1192 = vrot.lane.b32.xlu0 %v1189, 64
    %v1193 = vpop.permute.xlu0 %1192
    %v1194 = vsel %vm143, %v1193, 0
    %1196 = vmatpush.msra.mxu0 0.0
    %1197 = vmatpush.msra.mxu0 0.0
    %1198 = vmatpush.msra.mxu0 0.0
    %1199 = vmatpush.msra.mxu0 0.0
    %1200 = vmatpush.msra.mxu0 0.0
    %1201 = vmatpush.msra.mxu0 0.0
    %1202 = vmatpush.msra.mxu0 0.0
    %1203 = vmatpush.msra.mxu0 0.0
    %1204 = vmatpush.msra.mxu0 0.0
    %1205 = vmatpush.msra.mxu0 0.0
    %1206 = vmatpush.msra.mxu0 0.0
    %1207 = vmatpush.msra.mxu0 0.0
    %1208 = vmatpush.msra.mxu0 %v46
    %1209 = vmatpush.msra.mxu0 %v45
    %1210 = vmatpush.msra.mxu0 %v44
    %1211 = vmatpush.msra.mxu0 %v43
    %1212 = vmatmul.f32.gmra.mxu0 %v1194
    %v1213 = vpop.f32.mrf.mxu0
    %v1214 = vadd.f32 %v1190, %v1213
    %1215 = vdwg.mxu0
    %v1216 = vperm.slane %v50, 0
    %vm1217 = vcmask 130048
    %v1219 = vsel %vm1217, %v1214, 0
    %1221 = vmatpush.msra.mxu0 0.0
    %1222 = vmatpush.msra.mxu0 0.0
    %1223 = vmatpush.msra.mxu0 0.0
    %1224 = vmatpush.msra.mxu0 0.0
    %1225 = vmatpush.msra.mxu0 0.0
    %1226 = vmatpush.msra.mxu0 0.0
    %1227 = vmatpush.msra.mxu0 0.0
    %1228 = vmatpush.msra.mxu0 0.0
    %1229 = vmatpush.msra.mxu0 0.0
    %1230 = vmatpush.msra.mxu0 0.0
    %1231 = vmatpush.msra.mxu0 0.0
    %1232 = vmatpush.msra.mxu0 0.0
    %1233 = vmatpush.msra.mxu0 0.0
    %1234 = vmatpush.msra.mxu0 0.0
    %1235 = vmatpush.msra.mxu0 %v49
    %1236 = vmatpush.msra.mxu0 %v48
    %1237 = vmatmul.f32.gmra.mxu0 %v1219
    %v1238 = vpop.f32.mrf.mxu0
    %v1239 = vadd.f32 %v1216, %v1238
    %1240 = vdwg.mxu0
    %v1241 = vperm.slane %v57, 0
    %v1243 = vsel %vm143, %v1239, 0
    %1245 = vmatpush.msra.mxu0 0.0
    %1246 = vmatpush.msra.mxu0 0.0
    %1247 = vmatpush.msra.mxu0 0.0
    %1248 = vmatpush.msra.mxu0 0.0
    %1249 = vmatpush.msra.mxu0 0.0
    %1250 = vmatpush.msra.mxu0 0.0
    %1251 = vmatpush.msra.mxu0 0.0
    %1252 = vmatpush.msra.mxu0 0.0
    %1253 = vmatpush.msra.mxu0 0.0
    %1254 = vmatpush.msra.mxu0 0.0
    %1255 = vmatpush.msra.mxu0 0.0
    %1256 = vmatpush.msra.mxu0 0.0
    %1257 = vmatpush.msra.mxu0 %v54
    %1258 = vmatpush.msra.mxu0 %v53
    %1259 = vmatpush.msra.mxu0 %v52
    %1260 = vmatpush.msra.mxu0 %v51
    %1261 = vmatmul.f32.gmra.mxu0 %v1243
    %v1262 = vpop.f32.mrf.mxu0
    %v1263 = vadd.f32 %v1241, %v1262
    %1264 = vdwg.mxu0
    %v1265 = vsel %vm81, 0.0, 0
    %v1268 = vsel %vm98, %v56, 0
    %1270 = vmatpush.msra.mxu0 0.0
    %1271 = vmatpush.msra.mxu0 0.0
    %1272 = vmatpush.msra.mxu0 0.0
    %1273 = vmatpush.msra.mxu0 0.0
    %1274 = vmatpush.msra.mxu0 0.0
    %1275 = vmatpush.msra.mxu0 0.0
    %1276 = vmatpush.msra.mxu0 0.0
    %1277 = vmatpush.msra.mxu0 0.0
    %1278 = vmatpush.msra.mxu0 0.0
    %1279 = vmatpush.msra.mxu0 0.0
    %1280 = vmatpush.msra.mxu0 0.0
    %1281 = vmatpush.msra.mxu0 0.0
    %1282 = vmatpush.msra.mxu0 0.0
    %1283 = vmatpush.msra.mxu0 0.0
    %1284 = vmatpush.msra.mxu0 %v1268
    %1285 = vmatpush.msra.mxu0 %v55
    %1286 = vmatmul.f32.gmra.mxu0 %v1265
    %v1287 = vpop.f32.mrf.mxu0
    %v1288 = vadd.f32 0.0, %v1287
    %1289 = vdwg.mxu0
    %v1290 = vadd.f32 %v1263, %v1288
    %v1291 = vxor.u32 %v1290, 2147483648
    %v1292 = vmul.f32 %v1291, 1.442695
    %v1293 = vpow.pop %v1292
    %v1294 = vadd.f32 %v1293, 1.0
    %v1295 = vrcp.pop %v1294
    %v1296 = vmul.f32 %v1294, %v1295
    %v1297 = vsub.f32 1.0, %v1296
    %v1298 = vmul.f32 %v1295, %v1297
    %v1299 = vadd.f32 %v1295, %v1298
    %vm1300 = vweird.f32 %v1294
    %vm1301 = vweird.f32 %v1295
    %vm1302 = vmor %vm1300, %vm1301
    %v1303 = vsel %vm1302, %v1295, %v1299
    %v1304 = vand.u32 2147483647, %v1294
    %vm1305 = vcmp.eq.f32.partialorder %v1304, 8.507059e+37
    %v1306 = vand.u32 %v1294, 2147483648
    %v1307 = vor.u32 1.1754944e-38, %v1306
    %v1308 = vsel %vm1305, %v1307, %v1303
    %v1309 = vmul.f32 1.0, %v1308
    %v1310 = vmul.f32 %v1309, 2.0
    %v1311 = vsub.f32 %v1310, 1.0
    %v1312 = vmul.f32 %v1309, 0.0
    %1314 = vrot.lane.b32.xlu0 %v1311, 98
    %v1315 = vpop.permute.xlu0 %1314
    %v1317 = vmul.f32 %v1309, %v1315
    %1319 = vrot.lane.b32.xlu0 %v1317, 10
    %v1320 = vpop.permute.xlu0 %1319
    %v1322 = vadd.f32 %v1312, %v1320
    %v1323 = vtanh.pop %v1322
    %1325 = vrot.lane.b32.xlu0 %v1323, 10
    %v1326 = vpop.permute.xlu0 %1325
    %v1328 = vmul.f32 %v1309, %v1326
    %1330 = vrot.lane.b32.xlu0 %v1328, 108
    %v1331 = vpop.permute.xlu0 %1330
    %v1333 = vsel %vm81, %v1331, 0.0
    %vm1334 = vcmask 162816
    %v1336 = vsel %vm1334, %v1333, 0
    %vm1338 = vcmask 1043456
    %v1340 = vsel %vm1338, %v60, 0
    %1342 = vmatpush.msra.mxu0 0.0
    %1343 = vmatpush.msra.mxu0 0.0
    %1344 = vmatpush.msra.mxu0 0.0
    %1345 = vmatpush.msra.mxu0 0.0
    %1346 = vmatpush.msra.mxu0 0.0
    %1347 = vmatpush.msra.mxu0 0.0
    %1348 = vmatpush.msra.mxu0 0.0
    %1349 = vmatpush.msra.mxu0 0.0
    %1350 = vmatpush.msra.mxu0 0.0
    %1351 = vmatpush.msra.mxu0 0.0
    %1352 = vmatpush.msra.mxu0 0.0
    %1353 = vmatpush.msra.mxu0 0.0
    %1354 = vmatpush.msra.mxu0 0.0
    %1355 = vmatpush.msra.mxu0 %v1340
    %1356 = vmatpush.msra.mxu0 %v59
    %1357 = vmatpush.msra.mxu0 %v58
    %1358 = vmatmul.f32.gmra.mxu0 %v1336
    %v1359 = vpop.f32.mrf.mxu0
    %v1360 = vadd.f32 %v63, %v1359
    %1361 = vdwg.mxu0
    %v1362 = vxor.u32 %v1360, 2147483648
    %v1363 = vmul.f32 %v1362, 1.442695
    %v1364 = vpow.pop %v1363
    %v1365 = vadd.f32 %v1364, 1.0
    %v1366 = vrcp.pop %v1365
    %v1367 = vmul.f32 %v1365, %v1366
    %v1368 = vsub.f32 1.0, %v1367
    %v1369 = vmul.f32 %v1366, %v1368
    %v1370 = vadd.f32 %v1366, %v1369
    %vm1371 = vweird.f32 %v1365
    %vm1372 = vweird.f32 %v1366
    %vm1373 = vmor %vm1371, %vm1372
    %v1374 = vsel %vm1373, %v1366, %v1370
    %v1375 = vand.u32 2147483647, %v1365
    %vm1376 = vcmp.eq.f32.partialorder %v1375, 8.507059e+37
    %v1377 = vand.u32 %v1365, 2147483648
    %v1378 = vor.u32 1.1754944e-38, %v1377
    %v1379 = vsel %vm1376, %v1378, %v1374
    %v1380 = vmul.f32 1.0, %v1379
    %v1381 = vmul.f32 %v1380, 2.0
    %v1382 = vsub.f32 %v1381, 1.0
    %v1383 = vmul.f32 %v1380, 0.0
    %1385 = vrot.lane.b32.xlu0 %v1382, 98
    %v1386 = vpop.permute.xlu0 %1385
    %v1388 = vmul.f32 %v1380, %v1386
    %1390 = vrot.lane.b32.xlu0 %v1388, 10
    %v1391 = vpop.permute.xlu0 %1390
    %v1393 = vadd.f32 %v1383, %v1391
    %v1394 = vtanh.pop %v1393
    %1396 = vrot.lane.b32.xlu0 %v1394, 10
    %v1397 = vpop.permute.xlu0 %1396
    %v1399 = vmul.f32 %v1380, %v1397
    %v1400 = vsel %vm81, %v1331, 0
    %1402 = vmatpush.msra.mxu0 0.0
    %1403 = vmatpush.msra.mxu0 0.0
    %1404 = vmatpush.msra.mxu0 0.0
    %1405 = vmatpush.msra.mxu0 0.0
    %1406 = vmatpush.msra.mxu0 0.0
    %1407 = vmatpush.msra.mxu0 0.0
    %1408 = vmatpush.msra.mxu0 0.0
    %1409 = vmatpush.msra.mxu0 0.0
    %1410 = vmatpush.msra.mxu0 0.0
    %1411 = vmatpush.msra.mxu0 0.0
    %1412 = vmatpush.msra.mxu0 0.0
    %1413 = vmatpush.msra.mxu0 0.0
    %1414 = vmatpush.msra.mxu0 0.0
    %1415 = vmatpush.msra.mxu0 0.0
    %1416 = vmatpush.msra.mxu0 %v1268
    %1417 = vmatpush.msra.mxu0 %v55
    %1418 = vmatmul.f32.gmra.mxu0 %v1400
    %v1419 = vpop.f32.mrf.mxu0
    %v1420 = vadd.f32 0.0, %v1419
    %1421 = vdwg.mxu0
    %v1422 = vadd.f32 %v1263, %v1420
    %v1423 = vxor.u32 %v1422, 2147483648
    %v1424 = vmul.f32 %v1423, 1.442695
    %v1425 = vpow.pop %v1424
    %v1426 = vadd.f32 %v1425, 1.0
    %v1427 = vrcp.pop %v1426
    %v1428 = vmul.f32 %v1426, %v1427
    %v1429 = vsub.f32 1.0, %v1428
    %v1430 = vmul.f32 %v1427, %v1429
    %v1431 = vadd.f32 %v1427, %v1430
    %vm1432 = vweird.f32 %v1426
    %vm1433 = vweird.f32 %v1427
    %vm1434 = vmor %vm1432, %vm1433
    %v1435 = vsel %vm1434, %v1427, %v1431
    %v1436 = vand.u32 2147483647, %v1426
    %vm1437 = vcmp.eq.f32.partialorder %v1436, 8.507059e+37
    %v1438 = vand.u32 %v1426, 2147483648
    %v1439 = vor.u32 1.1754944e-38, %v1438
    %v1440 = vsel %vm1437, %v1439, %v1435
    %v1441 = vmul.f32 1.0, %v1440
    %v1442 = vmul.f32 %v1441, 2.0
    %v1443 = vsub.f32 %v1442, 1.0
    %v1444 = vmul.f32 %v1441, %v1322
    %1446 = vrot.lane.b32.xlu0 %v1443, 98
    %v1447 = vpop.permute.xlu0 %1446
    %v1449 = vmul.f32 %v1441, %v1447
    %1451 = vrot.lane.b32.xlu0 %v1449, 10
    %v1452 = vpop.permute.xlu0 %1451
    %v1454 = vadd.f32 %v1444, %v1452
    %v1455 = vtanh.pop %v1454
    %1457 = vrot.lane.b32.xlu0 %v1455, 10
    %v1458 = vpop.permute.xlu0 %1457
    %v1460 = vmul.f32 %v1441, %v1458
    %1462 = vrot.lane.b32.xlu0 %v1460, 108
    %v1463 = vpop.permute.xlu0 %1462
    %1466 = vrot.lane.b32.xlu0 %v1399, 118
    %v1467 = vpop.permute.xlu0 %1466
    %v1469 = vsel %vm81, %v1463, %v1467
    %v1471 = vsel %vm1334, %v1469, 0
    %1473 = vmatpush.msra.mxu0 0.0
    %1474 = vmatpush.msra.mxu0 0.0
    %1475 = vmatpush.msra.mxu0 0.0
    %1476 = vmatpush.msra.mxu0 0.0
    %1477 = vmatpush.msra.mxu0 0.0
    %1478 = vmatpush.msra.mxu0 0.0
    %1479 = vmatpush.msra.mxu0 0.0
    %1480 = vmatpush.msra.mxu0 0.0
    %1481 = vmatpush.msra.mxu0 0.0
    %1482 = vmatpush.msra.mxu0 0.0
    %1483 = vmatpush.msra.mxu0 0.0
    %1484 = vmatpush.msra.mxu0 0.0
    %1485 = vmatpush.msra.mxu0 0.0
    %1486 = vmatpush.msra.mxu0 %v1340
    %1487 = vmatpush.msra.mxu0 %v59
    %1488 = vmatpush.msra.mxu0 %v58
    %1489 = vmatmul.f32.gmra.mxu0 %v1471
    %v1490 = vpop.f32.mrf.mxu0
    %v1491 = vadd.f32 %v63, %v1490
    %1492 = vdwg.mxu0
    %v1493 = vxor.u32 %v1491, 2147483648
    %v1494 = vmul.f32 %v1493, 1.442695
    %v1495 = vpow.pop %v1494
    %v1496 = vadd.f32 %v1495, 1.0
    %v1497 = vrcp.pop %v1496
    %v1498 = vmul.f32 %v1496, %v1497
    %v1499 = vsub.f32 1.0, %v1498
    %v1500 = vmul.f32 %v1497, %v1499
    %v1501 = vadd.f32 %v1497, %v1500
    %vm1502 = vweird.f32 %v1496
    %vm1503 = vweird.f32 %v1497
    %vm1504 = vmor %vm1502, %vm1503
    %v1505 = vsel %vm1504, %v1497, %v1501
    %v1506 = vand.u32 2147483647, %v1496
    %vm1507 = vcmp.eq.f32.partialorder %v1506, 8.507059e+37
    %v1508 = vand.u32 %v1496, 2147483648
    %v1509 = vor.u32 1.1754944e-38, %v1508
    %v1510 = vsel %vm1507, %v1509, %v1505
    %v1511 = vmul.f32 1.0, %v1510
    %v1512 = vmul.f32 %v1511, 2.0
    %v1513 = vsub.f32 %v1512, 1.0
    %v1514 = vmul.f32 %v1511, %v1393
    %1516 = vrot.lane.b32.xlu0 %v1513, 98
    %v1517 = vpop.permute.xlu0 %1516
    %v1519 = vmul.f32 %v1511, %v1517
    %1521 = vrot.lane.b32.xlu0 %v1519, 10
    %v1522 = vpop.permute.xlu0 %1521
    %v1524 = vadd.f32 %v1514, %v1522
    %v1525 = vtanh.pop %v1524
    %1527 = vrot.lane.b32.xlu0 %v1525, 10
    %v1528 = vpop.permute.xlu0 %1527
    %v1530 = vmul.f32 %v1511, %v1528
    %v1531 = vsel %vm81, %v1463, 0
    %1533 = vmatpush.msra.mxu0 0.0
    %1534 = vmatpush.msra.mxu0 0.0
    %1535 = vmatpush.msra.mxu0 0.0
    %1536 = vmatpush.msra.mxu0 0.0
    %1537 = vmatpush.msra.mxu0 0.0
    %1538 = vmatpush.msra.mxu0 0.0
    %1539 = vmatpush.msra.mxu0 0.0
    %1540 = vmatpush.msra.mxu0 0.0
    %1541 = vmatpush.msra.mxu0 0.0
    %1542 = vmatpush.msra.mxu0 0.0
    %1543 = vmatpush.msra.mxu0 0.0
    %1544 = vmatpush.msra.mxu0 0.0
    %1545 = vmatpush.msra.mxu0 0.0
    %1546 = vmatpush.msra.mxu0 0.0
    %1547 = vmatpush.msra.mxu0 %v1268
    %1548 = vmatpush.msra.mxu0 %v55
    %1549 = vmatmul.f32.gmra.mxu0 %v1531
    %v1550 = vpop.f32.mrf.mxu0
    %v1551 = vadd.f32 0.0, %v1550
    %1552 = vdwg.mxu0
    %v1553 = vadd.f32 %v1263, %v1551
    %v1554 = vxor.u32 %v1553, 2147483648
    %v1555 = vmul.f32 %v1554, 1.442695
    %v1556 = vpow.pop %v1555
    %v1557 = vadd.f32 %v1556, 1.0
    %v1558 = vrcp.pop %v1557
    %v1559 = vmul.f32 %v1557, %v1558
    %v1560 = vsub.f32 1.0, %v1559
    %v1561 = vmul.f32 %v1558, %v1560
    %v1562 = vadd.f32 %v1558, %v1561
    %vm1563 = vweird.f32 %v1557
    %vm1564 = vweird.f32 %v1558
    %vm1565 = vmor %vm1563, %vm1564
    %v1566 = vsel %vm1565, %v1558, %v1562
    %v1567 = vand.u32 2147483647, %v1557
    %vm1568 = vcmp.eq.f32.partialorder %v1567, 8.507059e+37
    %v1569 = vand.u32 %v1557, 2147483648
    %v1570 = vor.u32 1.1754944e-38, %v1569
    %v1571 = vsel %vm1568, %v1570, %v1566
    %v1572 = vmul.f32 1.0, %v1571
    %v1573 = vmul.f32 %v1572, 2.0
    %v1574 = vsub.f32 %v1573, 1.0
    %v1575 = vmul.f32 %v1572, %v1454
    %1577 = vrot.lane.b32.xlu0 %v1574, 98
    %v1578 = vpop.permute.xlu0 %1577
    %v1580 = vmul.f32 %v1572, %v1578
    %1582 = vrot.lane.b32.xlu0 %v1580, 10
    %v1583 = vpop.permute.xlu0 %1582
    %v1585 = vadd.f32 %v1575, %v1583
    %v1586 = vtanh.pop %v1585
    %1588 = vrot.lane.b32.xlu0 %v1586, 10
    %v1589 = vpop.permute.xlu0 %1588
    %v1591 = vmul.f32 %v1572, %v1589
    %1593 = vrot.lane.b32.xlu0 %v1591, 108
    %v1594 = vpop.permute.xlu0 %1593
    %1597 = vrot.lane.b32.xlu0 %v1530, 118
    %v1598 = vpop.permute.xlu0 %1597
    %v1600 = vsel %vm81, %v1594, %v1598
    %v1602 = vsel %vm1334, %v1600, 0
    %1604 = vmatpush.msra.mxu0 0.0
    %1605 = vmatpush.msra.mxu0 0.0
    %1606 = vmatpush.msra.mxu0 0.0
    %1607 = vmatpush.msra.mxu0 0.0
    %1608 = vmatpush.msra.mxu0 0.0
    %1609 = vmatpush.msra.mxu0 0.0
    %1610 = vmatpush.msra.mxu0 0.0
    %1611 = vmatpush.msra.mxu0 0.0
    %1612 = vmatpush.msra.mxu0 0.0
    %1613 = vmatpush.msra.mxu0 0.0
    %1614 = vmatpush.msra.mxu0 0.0
    %1615 = vmatpush.msra.mxu0 0.0
    %1616 = vmatpush.msra.mxu0 0.0
    %1617 = vmatpush.msra.mxu0 %v1340
    %1618 = vmatpush.msra.mxu0 %v59
    %1619 = vmatpush.msra.mxu0 %v58
    %1620 = vmatmul.f32.gmra.mxu0 %v1602
    %v1621 = vpop.f32.mrf.mxu0
    %v1622 = vadd.f32 %v63, %v1621
    %1623 = vdwg.mxu0
    %v1624 = vxor.u32 %v1622, 2147483648
    %v1625 = vmul.f32 %v1624, 1.442695
    %v1626 = vpow.pop %v1625
    %v1627 = vadd.f32 %v1626, 1.0
    %v1628 = vrcp.pop %v1627
    %v1629 = vmul.f32 %v1627, %v1628
    %v1630 = vsub.f32 1.0, %v1629
    %v1631 = vmul.f32 %v1628, %v1630
    %v1632 = vadd.f32 %v1628, %v1631
    %vm1633 = vweird.f32 %v1627
    %vm1634 = vweird.f32 %v1628
    %vm1635 = vmor %vm1633, %vm1634
    %v1636 = vsel %vm1635, %v1628, %v1632
    %v1637 = vand.u32 2147483647, %v1627
    %vm1638 = vcmp.eq.f32.partialorder %v1637, 8.507059e+37
    %v1639 = vand.u32 %v1627, 2147483648
    %v1640 = vor.u32 1.1754944e-38, %v1639
    %v1641 = vsel %vm1638, %v1640, %v1636
    %v1642 = vmul.f32 1.0, %v1641
    %v1643 = vmul.f32 %v1642, 2.0
    %v1644 = vsub.f32 %v1643, 1.0
    %v1645 = vmul.f32 %v1642, %v1524
    %1647 = vrot.lane.b32.xlu0 %v1644, 98
    %v1648 = vpop.permute.xlu0 %1647
    %v1650 = vmul.f32 %v1642, %v1648
    %1652 = vrot.lane.b32.xlu0 %v1650, 10
    %v1653 = vpop.permute.xlu0 %1652
    %v1655 = vadd.f32 %v1645, %v1653
    %v1656 = vtanh.pop %v1655
    %1658 = vrot.lane.b32.xlu0 %v1656, 10
    %v1659 = vpop.permute.xlu0 %1658
    %v1661 = vmul.f32 %v1642, %v1659
    %v1662 = vsel %vm81, %v1594, 0
    %1664 = vmatpush.msra.mxu0 0.0
    %1665 = vmatpush.msra.mxu0 0.0
    %1666 = vmatpush.msra.mxu0 0.0
    %1667 = vmatpush.msra.mxu0 0.0
    %1668 = vmatpush.msra.mxu0 0.0
    %1669 = vmatpush.msra.mxu0 0.0
    %1670 = vmatpush.msra.mxu0 0.0
    %1671 = vmatpush.msra.mxu0 0.0
    %1672 = vmatpush.msra.mxu0 0.0
    %1673 = vmatpush.msra.mxu0 0.0
    %1674 = vmatpush.msra.mxu0 0.0
    %1675 = vmatpush.msra.mxu0 0.0
    %1676 = vmatpush.msra.mxu0 0.0
    %1677 = vmatpush.msra.mxu0 0.0
    %1678 = vmatpush.msra.mxu0 %v1268
    %1679 = vmatpush.msra.mxu0 %v55
    %1680 = vmatmul.f32.gmra.mxu0 %v1662
    %v1681 = vpop.f32.mrf.mxu0
    %v1682 = vadd.f32 0.0, %v1681
    %1683 = vdwg.mxu0
    %v1684 = vadd.f32 %v1263, %v1682
    %v1685 = vxor.u32 %v1684, 2147483648
    %v1686 = vmul.f32 %v1685, 1.442695
    %v1687 = vpow.pop %v1686
    %v1688 = vadd.f32 %v1687, 1.0
    %v1689 = vrcp.pop %v1688
    %v1690 = vmul.f32 %v1688, %v1689
    %v1691 = vsub.f32 1.0, %v1690
    %v1692 = vmul.f32 %v1689, %v1691
    %v1693 = vadd.f32 %v1689, %v1692
    %vm1694 = vweird.f32 %v1688
    %vm1695 = vweird.f32 %v1689
    %vm1696 = vmor %vm1694, %vm1695
    %v1697 = vsel %vm1696, %v1689, %v1693
    %v1698 = vand.u32 2147483647, %v1688
    %vm1699 = vcmp.eq.f32.partialorder %v1698, 8.507059e+37
    %v1700 = vand.u32 %v1688, 2147483648
    %v1701 = vor.u32 1.1754944e-38, %v1700
    %v1702 = vsel %vm1699, %v1701, %v1697
    %v1703 = vmul.f32 1.0, %v1702
    %v1704 = vmul.f32 %v1703, 2.0
    %v1705 = vsub.f32 %v1704, 1.0
    %v1706 = vmul.f32 %v1703, %v1585
    %1708 = vrot.lane.b32.xlu0 %v1705, 98
    %v1709 = vpop.permute.xlu0 %1708
    %v1711 = vmul.f32 %v1703, %v1709
    %1713 = vrot.lane.b32.xlu0 %v1711, 10
    %v1714 = vpop.permute.xlu0 %1713
    %v1716 = vadd.f32 %v1706, %v1714
    %v1717 = vtanh.pop %v1716
    %1719 = vrot.lane.b32.xlu0 %v1717, 10
    %v1720 = vpop.permute.xlu0 %1719
    %v1722 = vmul.f32 %v1703, %v1720
    %1724 = vrot.lane.b32.xlu0 %v1722, 108
    %v1725 = vpop.permute.xlu0 %1724
    %1728 = vrot.lane.b32.xlu0 %v1661, 118
    %v1729 = vpop.permute.xlu0 %1728
    %v1731 = vsel %vm81, %v1725, %v1729
    %v1733 = vsel %vm1334, %v1731, 0
    %1735 = vmatpush.msra.mxu0 0.0
    %1736 = vmatpush.msra.mxu0 0.0
    %1737 = vmatpush.msra.mxu0 0.0
    %1738 = vmatpush.msra.mxu0 0.0
    %1739 = vmatpush.msra.mxu0 0.0
    %1740 = vmatpush.msra.mxu0 0.0
    %1741 = vmatpush.msra.mxu0 0.0
    %1742 = vmatpush.msra.mxu0 0.0
    %1743 = vmatpush.msra.mxu0 0.0
    %1744 = vmatpush.msra.mxu0 0.0
    %1745 = vmatpush.msra.mxu0 0.0
    %1746 = vmatpush.msra.mxu0 0.0
    %1747 = vmatpush.msra.mxu0 0.0
    %1748 = vmatpush.msra.mxu0 %v1340
    %1749 = vmatpush.msra.mxu0 %v59
    %1750 = vmatpush.msra.mxu0 %v58
    %1751 = vmatmul.f32.gmra.mxu0 %v1733
    %v1752 = vpop.f32.mrf.mxu0
    %v1753 = vadd.f32 %v63, %v1752
    %1754 = vdwg.mxu0
    %v1755 = vxor.u32 %v1753, 2147483648
    %v1756 = vmul.f32 %v1755, 1.442695
    %v1757 = vpow.pop %v1756
    %v1758 = vadd.f32 %v1757, 1.0
    %v1759 = vrcp.pop %v1758
    %v1760 = vmul.f32 %v1758, %v1759
    %v1761 = vsub.f32 1.0, %v1760
    %v1762 = vmul.f32 %v1759, %v1761
    %v1763 = vadd.f32 %v1759, %v1762
    %vm1764 = vweird.f32 %v1758
    %vm1765 = vweird.f32 %v1759
    %vm1766 = vmor %vm1764, %vm1765
    %v1767 = vsel %vm1766, %v1759, %v1763
    %v1768 = vand.u32 2147483647, %v1758
    %vm1769 = vcmp.eq.f32.partialorder %v1768, 8.507059e+37
    %v1770 = vand.u32 %v1758, 2147483648
    %v1771 = vor.u32 1.1754944e-38, %v1770
    %v1772 = vsel %vm1769, %v1771, %v1767
    %v1773 = vmul.f32 1.0, %v1772
    %v1774 = vmul.f32 %v1773, 2.0
    %v1775 = vsub.f32 %v1774, 1.0
    %v1776 = vmul.f32 %v1773, %v1655
    %1778 = vrot.lane.b32.xlu0 %v1775, 98
    %v1779 = vpop.permute.xlu0 %1778
    %v1781 = vmul.f32 %v1773, %v1779
    %1783 = vrot.lane.b32.xlu0 %v1781, 10
    %v1784 = vpop.permute.xlu0 %1783
    %v1786 = vadd.f32 %v1776, %v1784
    %v1787 = vtanh.pop %v1786
    %1789 = vrot.lane.b32.xlu0 %v1787, 10
    %v1790 = vpop.permute.xlu0 %1789
    %v1792 = vmul.f32 %v1773, %v1790
    %v1793 = vsel %vm81, %v1725, 0
    %1795 = vmatpush.msra.mxu0 0.0
    %1796 = vmatpush.msra.mxu0 0.0
    %1797 = vmatpush.msra.mxu0 0.0
    %1798 = vmatpush.msra.mxu0 0.0
    %1799 = vmatpush.msra.mxu0 0.0
    %1800 = vmatpush.msra.mxu0 0.0
    %1801 = vmatpush.msra.mxu0 0.0
    %1802 = vmatpush.msra.mxu0 0.0
    %1803 = vmatpush.msra.mxu0 0.0
    %1804 = vmatpush.msra.mxu0 0.0
    %1805 = vmatpush.msra.mxu0 0.0
    %1806 = vmatpush.msra.mxu0 0.0
    %1807 = vmatpush.msra.mxu0 0.0
    %1808 = vmatpush.msra.mxu0 0.0
    %1809 = vmatpush.msra.mxu0 %v1268
    %1810 = vmatpush.msra.mxu0 %v55
    %1811 = vmatmul.f32.gmra.mxu0 %v1793
    %v1812 = vpop.f32.mrf.mxu0
    %v1813 = vadd.f32 0.0, %v1812
    %1814 = vdwg.mxu0
    %v1815 = vadd.f32 %v1263, %v1813
    %v1816 = vxor.u32 %v1815, 2147483648
    %v1817 = vmul.f32 %v1816, 1.442695
    %v1818 = vpow.pop %v1817
    %v1819 = vadd.f32 %v1818, 1.0
    %v1820 = vrcp.pop %v1819
    %v1821 = vmul.f32 %v1819, %v1820
    %v1822 = vsub.f32 1.0, %v1821
    %v1823 = vmul.f32 %v1820, %v1822
    %v1824 = vadd.f32 %v1820, %v1823
    %vm1825 = vweird.f32 %v1819
    %vm1826 = vweird.f32 %v1820
    %vm1827 = vmor %vm1825, %vm1826
    %v1828 = vsel %vm1827, %v1820, %v1824
    %v1829 = vand.u32 2147483647, %v1819
    %vm1830 = vcmp.eq.f32.partialorder %v1829, 8.507059e+37
    %v1831 = vand.u32 %v1819, 2147483648
    %v1832 = vor.u32 1.1754944e-38, %v1831
    %v1833 = vsel %vm1830, %v1832, %v1828
    %v1834 = vmul.f32 1.0, %v1833
    %v1835 = vmul.f32 %v1834, 2.0
    %v1836 = vsub.f32 %v1835, 1.0
    %v1837 = vmul.f32 %v1834, %v1716
    %1839 = vrot.lane.b32.xlu0 %v1836, 98
    %v1840 = vpop.permute.xlu0 %1839
    %v1842 = vmul.f32 %v1834, %v1840
    %1844 = vrot.lane.b32.xlu0 %v1842, 10
    %v1845 = vpop.permute.xlu0 %1844
    %v1847 = vadd.f32 %v1837, %v1845
    %v1848 = vtanh.pop %v1847
    %1850 = vrot.lane.b32.xlu0 %v1848, 10
    %v1851 = vpop.permute.xlu0 %1850
    %v1853 = vmul.f32 %v1834, %v1851
    %1855 = vrot.lane.b32.xlu0 %v1853, 108
    %v1856 = vpop.permute.xlu0 %1855
    %1859 = vrot.lane.b32.xlu0 %v1792, 118
    %v1860 = vpop.permute.xlu0 %1859
    %v1862 = vsel %vm81, %v1856, %v1860
    %v1864 = vsel %vm1334, %v1862, 0
    %1866 = vmatpush.msra.mxu0 0.0
    %1867 = vmatpush.msra.mxu0 0.0
    %1868 = vmatpush.msra.mxu0 0.0
    %1869 = vmatpush.msra.mxu0 0.0
    %1870 = vmatpush.msra.mxu0 0.0
    %1871 = vmatpush.msra.mxu0 0.0
    %1872 = vmatpush.msra.mxu0 0.0
    %1873 = vmatpush.msra.mxu0 0.0
    %1874 = vmatpush.msra.mxu0 0.0
    %1875 = vmatpush.msra.mxu0 0.0
    %1876 = vmatpush.msra.mxu0 0.0
    %1877 = vmatpush.msra.mxu0 0.0
    %1878 = vmatpush.msra.mxu0 0.0
    %1879 = vmatpush.msra.mxu0 %v1340
    %1880 = vmatpush.msra.mxu0 %v59
    %1881 = vmatpush.msra.mxu0 %v58
    %1882 = vmatmul.f32.gmra.mxu0 %v1864
    %v1883 = vpop.f32.mrf.mxu0
    %v1884 = vadd.f32 %v63, %v1883
    %1885 = vdwg.mxu0
    %v1886 = vxor.u32 %v1884, 2147483648
    %v1887 = vmul.f32 %v1886, 1.442695
    %v1888 = vpow.pop %v1887
    %v1889 = vadd.f32 %v1888, 1.0
    %v1890 = vrcp.pop %v1889
    %v1891 = vmul.f32 %v1889, %v1890
    %v1892 = vsub.f32 1.0, %v1891
    %v1893 = vmul.f32 %v1890, %v1892
    %v1894 = vadd.f32 %v1890, %v1893
    %vm1895 = vweird.f32 %v1889
    %vm1896 = vweird.f32 %v1890
    %vm1897 = vmor %vm1895, %vm1896
    %v1898 = vsel %vm1897, %v1890, %v1894
    %v1899 = vand.u32 2147483647, %v1889
    %vm1900 = vcmp.eq.f32.partialorder %v1899, 8.507059e+37
    %v1901 = vand.u32 %v1889, 2147483648
    %v1902 = vor.u32 1.1754944e-38, %v1901
    %v1903 = vsel %vm1900, %v1902, %v1898
    %v1904 = vmul.f32 1.0, %v1903
    %v1905 = vmul.f32 %v1904, 2.0
    %v1906 = vsub.f32 %v1905, 1.0
    %v1907 = vmul.f32 %v1904, %v1786
    %1909 = vrot.lane.b32.xlu0 %v1906, 98
    %v1910 = vpop.permute.xlu0 %1909
    %v1912 = vmul.f32 %v1904, %v1910
    %1914 = vrot.lane.b32.xlu0 %v1912, 10
    %v1915 = vpop.permute.xlu0 %1914
    %v1917 = vadd.f32 %v1907, %v1915
    %v1918 = vtanh.pop %v1917
    %1920 = vrot.lane.b32.xlu0 %v1918, 10
    %v1921 = vpop.permute.xlu0 %1920
    %v1923 = vmul.f32 %v1904, %v1921
    %v1924 = vsel %vm81, %v1856, 0
    %1926 = vmatpush.msra.mxu0 0.0
    %1927 = vmatpush.msra.mxu0 0.0
    %1928 = vmatpush.msra.mxu0 0.0
    %1929 = vmatpush.msra.mxu0 0.0
    %1930 = vmatpush.msra.mxu0 0.0
    %1931 = vmatpush.msra.mxu0 0.0
    %1932 = vmatpush.msra.mxu0 0.0
    %1933 = vmatpush.msra.mxu0 0.0
    %1934 = vmatpush.msra.mxu0 0.0
    %1935 = vmatpush.msra.mxu0 0.0
    %1936 = vmatpush.msra.mxu0 0.0
    %1937 = vmatpush.msra.mxu0 0.0
    %1938 = vmatpush.msra.mxu0 0.0
    %1939 = vmatpush.msra.mxu0 0.0
    %1940 = vmatpush.msra.mxu0 %v1268
    %1941 = vmatpush.msra.mxu0 %v55
    %1942 = vmatmul.f32.gmra.mxu0 %v1924
    %v1943 = vpop.f32.mrf.mxu0
    %v1944 = vadd.f32 0.0, %v1943
    %1945 = vdwg.mxu0
    %v1946 = vadd.f32 %v1263, %v1944
    %v1947 = vxor.u32 %v1946, 2147483648
    %v1948 = vmul.f32 %v1947, 1.442695
    %v1949 = vpow.pop %v1948
    %v1950 = vadd.f32 %v1949, 1.0
    %v1951 = vrcp.pop %v1950
    %v1952 = vmul.f32 %v1950, %v1951
    %v1953 = vsub.f32 1.0, %v1952
    %v1954 = vmul.f32 %v1951, %v1953
    %v1955 = vadd.f32 %v1951, %v1954
    %vm1956 = vweird.f32 %v1950
    %vm1957 = vweird.f32 %v1951
    %vm1958 = vmor %vm1956, %vm1957
    %v1959 = vsel %vm1958, %v1951, %v1955
    %v1960 = vand.u32 2147483647, %v1950
    %vm1961 = vcmp.eq.f32.partialorder %v1960, 8.507059e+37
    %v1962 = vand.u32 %v1950, 2147483648
    %v1963 = vor.u32 1.1754944e-38, %v1962
    %v1964 = vsel %vm1961, %v1963, %v1959
    %v1965 = vmul.f32 1.0, %v1964
    %v1966 = vmul.f32 %v1965, 2.0
    %v1967 = vsub.f32 %v1966, 1.0
    %v1968 = vmul.f32 %v1965, %v1847
    %1970 = vrot.lane.b32.xlu0 %v1967, 98
    %v1971 = vpop.permute.xlu0 %1970
    %v1973 = vmul.f32 %v1965, %v1971
    %1975 = vrot.lane.b32.xlu0 %v1973, 10
    %v1976 = vpop.permute.xlu0 %1975
    %v1978 = vadd.f32 %v1968, %v1976
    %v1979 = vtanh.pop %v1978
    %1981 = vrot.lane.b32.xlu0 %v1979, 10
    %v1982 = vpop.permute.xlu0 %1981
    %v1984 = vmul.f32 %v1965, %v1982
    %1986 = vrot.lane.b32.xlu0 %v1984, 108
    %v1987 = vpop.permute.xlu0 %1986
    %1990 = vrot.lane.b32.xlu0 %v1923, 118
    %v1991 = vpop.permute.xlu0 %1990
    %v1993 = vsel %vm81, %v1987, %v1991
    %v1995 = vsel %vm1334, %v1993, 0
    %1997 = vmatpush.msra.mxu0 0.0
    %1998 = vmatpush.msra.mxu0 0.0
    %1999 = vmatpush.msra.mxu0 0.0
    %2000 = vmatpush.msra.mxu0 0.0
    %2001 = vmatpush.msra.mxu0 0.0
    %2002 = vmatpush.msra.mxu0 0.0
    %2003 = vmatpush.msra.mxu0 0.0
    %2004 = vmatpush.msra.mxu0 0.0
    %2005 = vmatpush.msra.mxu0 0.0
    %2006 = vmatpush.msra.mxu0 0.0
    %2007 = vmatpush.msra.mxu0 0.0
    %2008 = vmatpush.msra.mxu0 0.0
    %2009 = vmatpush.msra.mxu0 0.0
    %2010 = vmatpush.msra.mxu0 %v1340
    %2011 = vmatpush.msra.mxu0 %v59
    %2012 = vmatpush.msra.mxu0 %v58
    %2013 = vmatmul.f32.gmra.mxu0 %v1995
    %v2014 = vpop.f32.mrf.mxu0
    %v2015 = vadd.f32 %v63, %v2014
    %2016 = vdwg.mxu0
    %v2017 = vxor.u32 %v2015, 2147483648
    %v2018 = vmul.f32 %v2017, 1.442695
    %v2019 = vpow.pop %v2018
    %v2020 = vadd.f32 %v2019, 1.0
    %v2021 = vrcp.pop %v2020
    %v2022 = vmul.f32 %v2020, %v2021
    %v2023 = vsub.f32 1.0, %v2022
    %v2024 = vmul.f32 %v2021, %v2023
    %v2025 = vadd.f32 %v2021, %v2024
    %vm2026 = vweird.f32 %v2020
    %vm2027 = vweird.f32 %v2021
    %vm2028 = vmor %vm2026, %vm2027
    %v2029 = vsel %vm2028, %v2021, %v2025
    %v2030 = vand.u32 2147483647, %v2020
    %vm2031 = vcmp.eq.f32.partialorder %v2030, 8.507059e+37
    %v2032 = vand.u32 %v2020, 2147483648
    %v2033 = vor.u32 1.1754944e-38, %v2032
    %v2034 = vsel %vm2031, %v2033, %v2029
    %v2035 = vmul.f32 1.0, %v2034
    %v2036 = vmul.f32 %v2035, 2.0
    %v2037 = vsub.f32 %v2036, 1.0
    %v2038 = vmul.f32 %v2035, %v1917
    %2040 = vrot.lane.b32.xlu0 %v2037, 98
    %v2041 = vpop.permute.xlu0 %2040
    %v2043 = vmul.f32 %v2035, %v2041
    %2045 = vrot.lane.b32.xlu0 %v2043, 10
    %v2046 = vpop.permute.xlu0 %2045
    %v2048 = vadd.f32 %v2038, %v2046
    %v2049 = vtanh.pop %v2048
    %2051 = vrot.lane.b32.xlu0 %v2049, 10
    %v2052 = vpop.permute.xlu0 %2051
    %v2054 = vmul.f32 %v2035, %v2052
    %v2055 = vsel %vm81, %v1987, 0
    %2057 = vmatpush.msra.mxu0 0.0
    %2058 = vmatpush.msra.mxu0 0.0
    %2059 = vmatpush.msra.mxu0 0.0
    %2060 = vmatpush.msra.mxu0 0.0
    %2061 = vmatpush.msra.mxu0 0.0
    %2062 = vmatpush.msra.mxu0 0.0
    %2063 = vmatpush.msra.mxu0 0.0
    %2064 = vmatpush.msra.mxu0 0.0
    %2065 = vmatpush.msra.mxu0 0.0
    %2066 = vmatpush.msra.mxu0 0.0
    %2067 = vmatpush.msra.mxu0 0.0
    %2068 = vmatpush.msra.mxu0 0.0
    %2069 = vmatpush.msra.mxu0 0.0
    %2070 = vmatpush.msra.mxu0 0.0
    %2071 = vmatpush.msra.mxu0 %v1268
    %2072 = vmatpush.msra.mxu0 %v55
    %2073 = vmatmul.f32.gmra.mxu0 %v2055
    %v2074 = vpop.f32.mrf.mxu0
    %v2075 = vadd.f32 0.0, %v2074
    %2076 = vdwg.mxu0
    %v2077 = vadd.f32 %v1263, %v2075
    %v2078 = vxor.u32 %v2077, 2147483648
    %v2079 = vmul.f32 %v2078, 1.442695
    %v2080 = vpow.pop %v2079
    %v2081 = vadd.f32 %v2080, 1.0
    %v2082 = vrcp.pop %v2081
    %v2083 = vmul.f32 %v2081, %v2082
    %v2084 = vsub.f32 1.0, %v2083
    %v2085 = vmul.f32 %v2082, %v2084
    %v2086 = vadd.f32 %v2082, %v2085
    %vm2087 = vweird.f32 %v2081
    %vm2088 = vweird.f32 %v2082
    %vm2089 = vmor %vm2087, %vm2088
    %v2090 = vsel %vm2089, %v2082, %v2086
    %v2091 = vand.u32 2147483647, %v2081
    %vm2092 = vcmp.eq.f32.partialorder %v2091, 8.507059e+37
    %v2093 = vand.u32 %v2081, 2147483648
    %v2094 = vor.u32 1.1754944e-38, %v2093
    %v2095 = vsel %vm2092, %v2094, %v2090
    %v2096 = vmul.f32 1.0, %v2095
    %v2097 = vmul.f32 %v2096, 2.0
    %v2098 = vsub.f32 %v2097, 1.0
    %v2099 = vmul.f32 %v2096, %v1978
    %2101 = vrot.lane.b32.xlu0 %v2098, 98
    %v2102 = vpop.permute.xlu0 %2101
    %v2104 = vmul.f32 %v2096, %v2102
    %2106 = vrot.lane.b32.xlu0 %v2104, 10
    %v2107 = vpop.permute.xlu0 %2106
    %v2109 = vadd.f32 %v2099, %v2107
    %v2110 = vtanh.pop %v2109
    %2112 = vrot.lane.b32.xlu0 %v2110, 10
    %v2113 = vpop.permute.xlu0 %2112
    %v2115 = vmul.f32 %v2096, %v2113
    %2117 = vrot.lane.b32.xlu0 %v2115, 108
    %v2118 = vpop.permute.xlu0 %2117
    %2121 = vrot.lane.b32.xlu0 %v2054, 118
    %v2122 = vpop.permute.xlu0 %2121
    %v2124 = vsel %vm81, %v2118, %v2122
    %v2126 = vsel %vm1334, %v2124, 0
    %2128 = vmatpush.msra.mxu0 0.0
    %2129 = vmatpush.msra.mxu0 0.0
    %2130 = vmatpush.msra.mxu0 0.0
    %2131 = vmatpush.msra.mxu0 0.0
    %2132 = vmatpush.msra.mxu0 0.0
    %2133 = vmatpush.msra.mxu0 0.0
    %2134 = vmatpush.msra.mxu0 0.0
    %2135 = vmatpush.msra.mxu0 0.0
    %2136 = vmatpush.msra.mxu0 0.0
    %2137 = vmatpush.msra.mxu0 0.0
    %2138 = vmatpush.msra.mxu0 0.0
    %2139 = vmatpush.msra.mxu0 0.0
    %2140 = vmatpush.msra.mxu0 0.0
    %2141 = vmatpush.msra.mxu0 %v1340
    %2142 = vmatpush.msra.mxu0 %v59
    %2143 = vmatpush.msra.mxu0 %v58
    %2144 = vmatmul.f32.gmra.mxu0 %v2126
    %v2145 = vpop.f32.mrf.mxu0
    %v2146 = vadd.f32 %v63, %v2145
    %2147 = vdwg.mxu0
    %v2148 = vxor.u32 %v2146, 2147483648
    %v2149 = vmul.f32 %v2148, 1.442695
    %v2150 = vpow.pop %v2149
    %v2151 = vadd.f32 %v2150, 1.0
    %v2152 = vrcp.pop %v2151
    %v2153 = vmul.f32 %v2151, %v2152
    %v2154 = vsub.f32 1.0, %v2153
    %v2155 = vmul.f32 %v2152, %v2154
    %v2156 = vadd.f32 %v2152, %v2155
    %vm2157 = vweird.f32 %v2151
    %vm2158 = vweird.f32 %v2152
    %vm2159 = vmor %vm2157, %vm2158
    %v2160 = vsel %vm2159, %v2152, %v2156
    %v2161 = vand.u32 2147483647, %v2151
    %vm2162 = vcmp.eq.f32.partialorder %v2161, 8.507059e+37
    %v2163 = vand.u32 %v2151, 2147483648
    %v2164 = vor.u32 1.1754944e-38, %v2163
    %v2165 = vsel %vm2162, %v2164, %v2160
    %v2166 = vmul.f32 1.0, %v2165
    %v2167 = vmul.f32 %v2166, 2.0
    %v2168 = vsub.f32 %v2167, 1.0
    %v2169 = vmul.f32 %v2166, %v2048
    %2171 = vrot.lane.b32.xlu0 %v2168, 98
    %v2172 = vpop.permute.xlu0 %2171
    %v2174 = vmul.f32 %v2166, %v2172
    %2176 = vrot.lane.b32.xlu0 %v2174, 10
    %v2177 = vpop.permute.xlu0 %2176
    %v2179 = vadd.f32 %v2169, %v2177
    %v2180 = vtanh.pop %v2179
    %2182 = vrot.lane.b32.xlu0 %v2180, 10
    %v2183 = vpop.permute.xlu0 %2182
    %v2185 = vmul.f32 %v2166, %v2183
    %v2186 = vsel %vm81, %v2118, 0
    %2188 = vmatpush.msra.mxu0 0.0
    %2189 = vmatpush.msra.mxu0 0.0
    %2190 = vmatpush.msra.mxu0 0.0
    %2191 = vmatpush.msra.mxu0 0.0
    %2192 = vmatpush.msra.mxu0 0.0
    %2193 = vmatpush.msra.mxu0 0.0
    %2194 = vmatpush.msra.mxu0 0.0
    %2195 = vmatpush.msra.mxu0 0.0
    %2196 = vmatpush.msra.mxu0 0.0
    %2197 = vmatpush.msra.mxu0 0.0
    %2198 = vmatpush.msra.mxu0 0.0
    %2199 = vmatpush.msra.mxu0 0.0
    %2200 = vmatpush.msra.mxu0 0.0
    %2201 = vmatpush.msra.mxu0 0.0
    %2202 = vmatpush.msra.mxu0 %v1268
    %2203 = vmatpush.msra.mxu0 %v55
    %2204 = vmatmul.f32.gmra.mxu0 %v2186
    %v2205 = vpop.f32.mrf.mxu0
    %v2206 = vadd.f32 0.0, %v2205
    %2207 = vdwg.mxu0
    %v2208 = vadd.f32 %v1263, %v2206
    %v2209 = vxor.u32 %v2208, 2147483648
    %v2210 = vmul.f32 %v2209, 1.442695
    %v2211 = vpow.pop %v2210
    %v2212 = vadd.f32 %v2211, 1.0
    %v2213 = vrcp.pop %v2212
    %v2214 = vmul.f32 %v2212, %v2213
    %v2215 = vsub.f32 1.0, %v2214
    %v2216 = vmul.f32 %v2213, %v2215
    %v2217 = vadd.f32 %v2213, %v2216
    %vm2218 = vweird.f32 %v2212
    %vm2219 = vweird.f32 %v2213
    %vm2220 = vmor %vm2218, %vm2219
    %v2221 = vsel %vm2220, %v2213, %v2217
    %v2222 = vand.u32 2147483647, %v2212
    %vm2223 = vcmp.eq.f32.partialorder %v2222, 8.507059e+37
    %v2224 = vand.u32 %v2212, 2147483648
    %v2225 = vor.u32 1.1754944e-38, %v2224
    %v2226 = vsel %vm2223, %v2225, %v2221
    %v2227 = vmul.f32 1.0, %v2226
    %v2228 = vmul.f32 %v2227, 2.0
    %v2229 = vsub.f32 %v2228, 1.0
    %v2230 = vmul.f32 %v2227, %v2109
    %2232 = vrot.lane.b32.xlu0 %v2229, 98
    %v2233 = vpop.permute.xlu0 %2232
    %v2235 = vmul.f32 %v2227, %v2233
    %2237 = vrot.lane.b32.xlu0 %v2235, 10
    %v2238 = vpop.permute.xlu0 %2237
    %v2240 = vadd.f32 %v2230, %v2238
    %v2241 = vtanh.pop %v2240
    %2243 = vrot.lane.b32.xlu0 %v2241, 10
    %v2244 = vpop.permute.xlu0 %2243
    %v2246 = vmul.f32 %v2227, %v2244
    %2248 = vrot.lane.b32.xlu0 %v2246, 108
    %v2249 = vpop.permute.xlu0 %2248
    %2252 = vrot.lane.b32.xlu0 %v2185, 118
    %v2253 = vpop.permute.xlu0 %2252
    %v2255 = vsel %vm81, %v2249, %v2253
    %v2257 = vsel %vm1334, %v2255, 0
    %2259 = vmatpush.msra.mxu0 0.0
    %2260 = vmatpush.msra.mxu0 0.0
    %2261 = vmatpush.msra.mxu0 0.0
    %2262 = vmatpush.msra.mxu0 0.0
    %2263 = vmatpush.msra.mxu0 0.0
    %2264 = vmatpush.msra.mxu0 0.0
    %2265 = vmatpush.msra.mxu0 0.0
    %2266 = vmatpush.msra.mxu0 0.0
    %2267 = vmatpush.msra.mxu0 0.0
    %2268 = vmatpush.msra.mxu0 0.0
    %2269 = vmatpush.msra.mxu0 0.0
    %2270 = vmatpush.msra.mxu0 0.0
    %2271 = vmatpush.msra.mxu0 0.0
    %2272 = vmatpush.msra.mxu0 %v1340
    %2273 = vmatpush.msra.mxu0 %v59
    %2274 = vmatpush.msra.mxu0 %v58
    %2275 = vmatmul.f32.gmra.mxu0 %v2257
    %v2276 = vpop.f32.mrf.mxu0
    %v2277 = vadd.f32 %v63, %v2276
    %2278 = vdwg.mxu0
    %v2279 = vxor.u32 %v2277, 2147483648
    %v2280 = vmul.f32 %v2279, 1.442695
    %v2281 = vpow.pop %v2280
    %v2282 = vadd.f32 %v2281, 1.0
    %v2283 = vrcp.pop %v2282
    %v2284 = vmul.f32 %v2282, %v2283
    %v2285 = vsub.f32 1.0, %v2284
    %v2286 = vmul.f32 %v2283, %v2285
    %v2287 = vadd.f32 %v2283, %v2286
    %vm2288 = vweird.f32 %v2282
    %vm2289 = vweird.f32 %v2283
    %vm2290 = vmor %vm2288, %vm2289
    %v2291 = vsel %vm2290, %v2283, %v2287
    %v2292 = vand.u32 2147483647, %v2282
    %vm2293 = vcmp.eq.f32.partialorder %v2292, 8.507059e+37
    %v2294 = vand.u32 %v2282, 2147483648
    %v2295 = vor.u32 1.1754944e-38, %v2294
    %v2296 = vsel %vm2293, %v2295, %v2291
    %v2297 = vmul.f32 1.0, %v2296
    %v2298 = vmul.f32 %v2297, 2.0
    %v2299 = vsub.f32 %v2298, 1.0
    %v2300 = vmul.f32 %v2297, %v2179
    %2302 = vrot.lane.b32.xlu0 %v2299, 98
    %v2303 = vpop.permute.xlu0 %2302
    %v2305 = vmul.f32 %v2297, %v2303
    %2307 = vrot.lane.b32.xlu0 %v2305, 10
    %v2308 = vpop.permute.xlu0 %2307
    %v2310 = vadd.f32 %v2300, %v2308
    %v2311 = vtanh.pop %v2310
    %2313 = vrot.lane.b32.xlu0 %v2311, 10
    %v2314 = vpop.permute.xlu0 %2313
    %v2316 = vmul.f32 %v2297, %v2314
    %2317 = vrot.lane.b32.xlu0 %v1399, 108
    %v2318 = vpop.permute.xlu0 %2317
    %2320 = vrot.lane.b32.xlu0 %v1792, 10
    %v2321 = vpop.permute.xlu0 %2320
    %2323 = vrot.lane.b32.xlu0 %v1923, 20
    %v2324 = vpop.permute.xlu0 %2323
    %2326 = vrot.lane.b32.xlu0 %v2054, 30
    %v2327 = vpop.permute.xlu0 %2326
    %2329 = vrot.lane.b32.xlu0 %v2185, 40
    %v2330 = vpop.permute.xlu0 %2329
    %2333 = vrot.lane.b32.xlu0 %v2316, 50
    %v2334 = vpop.permute.xlu0 %2333
    %v2336 = vsel %vm81, %v2318, %v1598
    %v2337 = vsel %vm1334, %v2336, %v1661
    %vm2338 = vcmask 244736
    %v2339 = vsel %vm2338, %v2337, %v2321
    %vm2340 = vcmask 326656
    %v2341 = vsel %vm2340, %v2339, %v2324
    %vm2342 = vcmask 408576
    %v2343 = vsel %vm2342, %v2341, %v2327
    %vm2344 = vcmask 490496
    %v2345 = vsel %vm2344, %v2343, %v2330
    %vm2346 = vcmask 572416
    %v2347 = vsel %vm2346, %v2345, %v2334
    %vm2348 = vcmask 648192
    %2349 = vst.msk [vmem:[%s2] sm:$0x3] %vm2348, %v2347
    // Predicated region
    $region14: #{lstm_autoencoder_forward.1} parent=1 // pred_check
      _
    $region15: #{lstm_autoencoder_forward.1} parent=1 // pred_check_branch
      %2351 = sbr.rel (0) target = $region17
    $region16: #{lstm_autoencoder_forward.1} parent=1 // pred_region
      _
    $region17: #{lstm_autoencoder_forward.1} parent=1 // pred_fallthru
      _
    // Predicated region
    $region18: #{lstm_autoencoder_forward.1} parent=1 // pred_check
      _
    $region19: #{lstm_autoencoder_forward.1} parent=1 // pred_check_branch
      %2353 = sbr.rel (0) target = $region21
    $region20: #{lstm_autoencoder_forward.1} parent=1 // pred_region
      _
    $region21: #{lstm_autoencoder_forward.1} parent=1 // pred_fallthru
      _
    %2354 = vsyncpa [#allocation3], 1

</llo_original>
